<compile_context>
chip_gen: v5e
topology: v5e:2x2
jax: 0.10.0
libtpu: 0.0.40
codegen_flags: <defaults>
</compile_context>

<pallas_src>
import functools

import jax
import jax.numpy as jnp
from jax.experimental import pallas as pl
from jax.experimental.pallas import tpu as pltpu

EPS = 1e-5


def _bn_relu_kernel(x_ref, gb_ref, o_ref, *, eps, inv_count, c_tile):
    """Training-mode BatchNorm (biased batch stats) + ReLU for one channel tile.

    x_ref : (N, C_TILE, H*W) f32   — channels on sublanes, spatial on lanes
    gb_ref: (C, 2)           f32   — resident slab; col 0 = gamma, col 1 = beta
    o_ref : (N, C_TILE, H*W) f32
    """
    # --- per-channel statistics: Σx and Σx², each streamed from the ref ------
    # (re-reading x_ref per traversal keeps vreg pressure bounded; VMEM read
    #  bandwidth is not the bottleneck on this launch-bound op)
    s1 = jnp.sum(jnp.sum(x_ref[...], axis=2, keepdims=True), axis=0)  # (C_T, 1)
    s2 = jnp.sum(jnp.sum(jnp.square(x_ref[...]), axis=2, keepdims=True), axis=0)

    mean = s1 * inv_count                                             # (C_T, 1)
    var = jnp.maximum(s2 * inv_count - mean * mean, 0.0)              # clamp >=0
    inv_std = jax.lax.rsqrt(var + eps)                                # EUP slot

    # Resident gamma/beta slab: slice out this tile's rows.
    c0 = pl.multiple_of(pl.program_id(0) * c_tile, 8)
    gb = gb_ref[pl.ds(c0, c_tile), :]                                 # (C_T, 2)
    gamma = gb[:, 0:1]                                                # (C_T, 1)
    beta = gb[:, 1:2]                                                 # (C_T, 1)
    scale = gamma * inv_std
    shift = beta - mean * scale

    # y = (x - mean) * inv_std * gamma + beta == x * scale + shift; then ReLU.
    # Fresh read of x_ref here (third traversal) — no long live range of x.
    o_ref[...] = jnp.maximum(x_ref[...] * scale + shift, 0.0).astype(o_ref.dtype)


def _num_tensorcores():
    """Best-effort #TensorCores per chip (v7x = 2, everything else = 1)."""
    try:
        info = pltpu.get_tpu_info()
        for attr in ("num_cores", "num_tensorcores", "tensorcores_per_chip",
                     "cores_per_chip", "core_count"):
            v = getattr(info, attr, None)
            if isinstance(v, int) and v >= 1:
                return v
    except Exception:
        pass
    try:
        kind = jax.devices()[0].device_kind.lower()
        if "v7" in kind:
            return 2
    except Exception:
        pass
    return 1


def _vmem_live_budget_bytes():
    """Conservative live-VMEM budget (fits v5e's 16 MiB scoped default)."""
    budget = 8 << 20
    try:
        cap = getattr(pltpu.get_tpu_info(), "vmem_capacity_bytes", None)
        if isinstance(cap, int) and cap > 0:
            budget = min(budget, cap // 4)
    except Exception:
        pass
    return budget


def _pick_c_tile(c, per_channel_block_bytes, max_live_bytes, target_tiles):
    """Largest channel tile that divides C, is sublane-aligned (×8, or == C),
    keeps ~4 live pipeline buffers within the VMEM budget, and — if possible —
    yields exactly `target_tiles` grid steps (= #TensorCores)."""
    cands = [d for d in range(8, c + 1, 8) if c % d == 0]
    if c % 8:
        cands.append(c)  # whole-C block is always legal (equals full dim)
    # 4 live buffers: 2x input (double-buffered) + 2x output.
    fitting = [d for d in cands if 4 * d * per_channel_block_bytes <= max_live_bytes]
    if not fitting:
        fitting = [min(cands)]
    exact = [d for d in fitting if c // d == target_tiles]
    if exact:
        return max(exact)
    return max(fitting)  # otherwise: fewest grid steps that fit


def batchnorm_relu(x_nchw, gamma, beta, eps=EPS):
    """x_nchw: (N, C, H, W) float32; gamma/beta: (C,) float32."""
    N, C, H, W = x_nchw.shape
    hw = H * W

    # Zero-copy views: NCHW -> (N, C, H*W); gamma/beta stacked into one (C, 2).
    x3 = x_nchw.reshape(N, C, hw)
    gb = jnp.stack([gamma, beta], axis=1)  # (C, 2)

    lane_hw = ((hw + 127) // 128) * 128  # lane-padded width actually held in VMEM
    per_channel_block_bytes = N * lane_hw * x_nchw.dtype.itemsize

    num_cores = _num_tensorcores()
    c_tile = _pick_c_tile(
        C,
        per_channel_block_bytes=per_channel_block_bytes,
        max_live_bytes=_vmem_live_budget_bytes(),
        target_tiles=num_cores,
    )
    grid = (C // c_tile,)

    kernel = functools.partial(
        _bn_relu_kernel, eps=eps, inv_count=1.0 / (N * hw), c_tile=c_tile
    )

    out3 = pl.pallas_call(
        kernel,
        out_shape=jax.ShapeDtypeStruct((N, C, hw), x_nchw.dtype),
        grid=grid,
        in_specs=[
            pl.BlockSpec((N, c_tile, hw), lambda i: (0, i, 0)),
            # Constant block index -> gamma/beta slab is fetched once, resident.
            pl.BlockSpec((C, 2), lambda i: (0, 0)),
        ],
        out_specs=pl.BlockSpec((N, c_tile, hw), lambda i: (0, i, 0)),
        compiler_params=pltpu.CompilerParams(
            # Channel tiles are statistically independent -> megacore-parallel
            # (no-op when the grid collapses to a single step on 1-TC chips).
            dimension_semantics=("parallel",),
        ),
    )(x3, gb)

    return out3.reshape(N, C, H, W)


if __name__ == "__main__":
    key = jax.random.PRNGKey(0)
    kx, kg, kb = jax.random.split(key, 3)

    # Shapes implied by the module: BatchNorm2d(864) on a (1, 864, 7, 7) input.
    N, C, H, W = 1, 864, 7, 7
    x = jax.random.normal(kx, (N, C, H, W), dtype=jnp.float32)
    # Deterministic affine params (perturbed so the affine path is exercised).
    gamma = 1.0 + 0.1 * jax.random.normal(kg, (C,), dtype=jnp.float32)
    beta = 0.1 * jax.random.normal(kb, (C,), dtype=jnp.float32)

    out = jax.block_until_ready(batchnorm_relu(x, gamma, beta))

    # Pure-JAX reference with identical semantics (biased training-mode stats).
    mean = jnp.mean(x, axis=(0, 2, 3), keepdims=True)
    var = jnp.mean((x - mean) ** 2, axis=(0, 2, 3), keepdims=True)
    ref = (x - mean) * jax.lax.rsqrt(var + EPS)
    ref = ref * gamma.reshape(1, C, 1, 1) + beta.reshape(1, C, 1, 1)
    ref = jnp.maximum(ref, 0.0)

    assert out.shape == (N, C, H, W)
    err = float(jnp.max(jnp.abs(out - ref)))
    assert err < 1e-4, err

    print("KERNEL_OK")
</pallas_src>

<mosaic_0001>
module attributes {stable_mosaic.version = 11 : i64} {
  func.func @_bn_relu_kernel(%arg0: i32, %arg1: memref<1x864x49xf32, #tpu.memory_space<vmem>>, %arg2: memref<864x2xf32, #tpu.memory_space<vmem>>, %arg3: memref<1x864x49xf32, #tpu.memory_space<vmem>>) attributes {dimension_semantics = [#tpu.dimension_semantics<parallel>], iteration_bounds = array<i64: 1>, scalar_prefetch = 0 : i64, scratch_operands = 0 : i64, tpu.core_type = #tpu.core_type<tc>, window_params = [{transform_indices = @transform_0, window_bounds = array<i64: 1, 864, 49>}, {pipeline_mode = #tpu.pipeline_mode<synchronous>, transform_indices = @transform_1, window_bounds = array<i64: 864, 2>}, {transform_indices = @transform_2, window_bounds = array<i64: 1, 864, 49>}]} {
    %c0 = arith.constant 0 : index
    %c0_0 = arith.constant 0 : index
    %c0_1 = arith.constant 0 : index
    %0 = vector.load %arg1[%c0, %c0_0, %c0_1] : memref<1x864x49xf32, #tpu.memory_space<vmem>>, vector<1x864x49xf32>
    %cst = arith.constant dense<0.000000e+00> : vector<1x864xf32>
    %1 = vector.multi_reduction <add>, %0, %cst [2] : vector<1x864x49xf32> to vector<1x864xf32>
    %2 = vector.shape_cast %1 : vector<1x864xf32> to vector<1x864x1xf32>
    %cst_2 = arith.constant dense<0.000000e+00> : vector<864x1xf32>
    %3 = vector.multi_reduction <add>, %2, %cst_2 [0] : vector<1x864x1xf32> to vector<864x1xf32>
    %c0_3 = arith.constant 0 : index
    %c0_4 = arith.constant 0 : index
    %c0_5 = arith.constant 0 : index
    %4 = vector.load %arg1[%c0_3, %c0_4, %c0_5] : memref<1x864x49xf32, #tpu.memory_space<vmem>>, vector<1x864x49xf32>
    %5 = arith.mulf %4, %4 : vector<1x864x49xf32>
    %cst_6 = arith.constant dense<0.000000e+00> : vector<1x864xf32>
    %6 = vector.multi_reduction <add>, %5, %cst_6 [2] : vector<1x864x49xf32> to vector<1x864xf32>
    %7 = vector.shape_cast %6 : vector<1x864xf32> to vector<1x864x1xf32>
    %cst_7 = arith.constant dense<0.000000e+00> : vector<864x1xf32>
    %8 = vector.multi_reduction <add>, %7, %cst_7 [0] : vector<1x864x1xf32> to vector<864x1xf32>
    %cst_8 = arith.constant 0.0204081628 : f32
    %9 = vector.broadcast %cst_8 : f32 to vector<864x1xf32>
    %10 = arith.mulf %3, %9 : vector<864x1xf32>
    %cst_9 = arith.constant 0.0204081628 : f32
    %11 = vector.broadcast %cst_9 : f32 to vector<864x1xf32>
    %12 = arith.mulf %8, %11 : vector<864x1xf32>
    %13 = arith.mulf %10, %10 : vector<864x1xf32>
    %14 = arith.subf %12, %13 : vector<864x1xf32>
    %cst_10 = arith.constant 0.000000e+00 : f32
    %15 = vector.broadcast %cst_10 : f32 to vector<864x1xf32>
    %16 = arith.maximumf %14, %15 : vector<864x1xf32>
    %cst_11 = arith.constant 9.99999974E-6 : f32
    %17 = vector.broadcast %cst_11 : f32 to vector<864x1xf32>
    %18 = arith.addf %16, %17 : vector<864x1xf32>
    %19 = math.rsqrt %18 : vector<864x1xf32>
    %c864_i32 = arith.constant 864 : i32
    %20 = arith.muli %arg0, %c864_i32 : i32
    %21 = tpu.assume_multiple %20, 8 : i32
    %22 = arith.index_cast %21 : i32 to index
    %c0_12 = arith.constant 0 : index
    %23 = vector.load %arg2[%22, %c0_12] : memref<864x2xf32, #tpu.memory_space<vmem>>, vector<864x2xf32>
    %24 = vector.extract_strided_slice %23 {offsets = [0, 0], sizes = [864, 1], strides = [1, 1]} : vector<864x2xf32> to vector<864x1xf32>
    %25 = vector.extract_strided_slice %23 {offsets = [0, 1], sizes = [864, 1], strides = [1, 1]} : vector<864x2xf32> to vector<864x1xf32>
    %26 = arith.mulf %24, %19 : vector<864x1xf32>
    %27 = arith.mulf %10, %26 : vector<864x1xf32>
    %28 = arith.subf %25, %27 : vector<864x1xf32>
    %c0_13 = arith.constant 0 : index
    %c0_14 = arith.constant 0 : index
    %c0_15 = arith.constant 0 : index
    %29 = vector.load %arg1[%c0_13, %c0_14, %c0_15] : memref<1x864x49xf32, #tpu.memory_space<vmem>>, vector<1x864x49xf32>
    %30 = vector.shape_cast %26 : vector<864x1xf32> to vector<1x864x1xf32>
    %31 = vector.broadcast %30 : vector<1x864x1xf32> to vector<1x864x49xf32>
    %32 = arith.mulf %29, %31 : vector<1x864x49xf32>
    %33 = vector.shape_cast %28 : vector<864x1xf32> to vector<1x864x1xf32>
    %34 = vector.broadcast %33 : vector<1x864x1xf32> to vector<1x864x49xf32>
    %35 = arith.addf %32, %34 : vector<1x864x49xf32>
    %cst_16 = arith.constant 0.000000e+00 : f32
    %36 = vector.broadcast %cst_16 : f32 to vector<1x864x49xf32>
    %37 = arith.maximumf %35, %36 : vector<1x864x49xf32>
    %c0_17 = arith.constant 0 : index
    %c0_18 = arith.constant 0 : index
    %c0_19 = arith.constant 0 : index
    %38 = vector.load %arg3[%c0_17, %c0_18, %c0_19] : memref<1x864x49xf32, #tpu.memory_space<vmem>>, vector<1x864x49xf32>
    tpu.vector_store %arg3[%c0_17, %c0_18, %c0_19], %37 {strides = array<i32>} : memref<1x864x49xf32, #tpu.memory_space<vmem>>, vector<1x864x49xf32>,
    return
  }
  func.func @transform_0(%arg0: i32) -> (i32, i32, i32) {
    %c0_i32 = arith.constant 0 : i32
    %c0_i32_0 = arith.constant 0 : i32
    %c0_i32_1 = arith.constant 0 : i32
    return %c0_i32, %arg0, %c0_i32_0 : i32, i32, i32
  }
  func.func @transform_1(%arg0: i32) -> (i32, i32) {
    %c0_i32 = arith.constant 0 : i32
    %c0_i32_0 = arith.constant 0 : i32
    %c0_i32_1 = arith.constant 0 : i32
    return %c0_i32, %c0_i32_0 : i32, i32
  }
  func.func @transform_2(%arg0: i32) -> (i32, i32, i32) {
    %c0_i32 = arith.constant 0 : i32
    %c0_i32_0 = arith.constant 0 : i32
    %c0_i32_1 = arith.constant 0 : i32
    return %c0_i32, %arg0, %c0_i32_0 : i32, i32, i32
  }
}

</mosaic_0001>

<llo_original>
// kernel: tpu_custom_call.1
$region0: #{tpu_custom_call.1}
  #allocation0 [shape = 'u32[]', space=smem, size = 0x4, offset = 0x4, fixed_abs, tag = 'smem constant byte address 0x4 - core index']
  #allocation1 [shape = 'u32[72,128]{1,0:T(1,128)}', space=vmem, size = 0x9000, scoped, tag = 'internal scratch']
  %s0 = inlined_call_operand.vmem [shape: f32[1,864,49], index: 0, kind: input, shape index: {}]
  %s1 = inlined_call_operand.vmem [shape: f32[864,2], index: 1, kind: input, shape index: {}]
  %s2 = inlined_call_operand.vmem [shape: f32[1,864,49], index: 2, kind: output, shape index: {}]
  %s3 = sld [smem:[#allocation0]]
  $region18: #{tpu_custom_call.1} parent=0
    _
  %s5 = ssub.s32 1, %s3
  %s6 = scalar_select 0, %s5, %s3
  // Predicated region
  $region2: #{tpu_custom_call.1} parent=0 // pred_check
    _
  $region3: #{tpu_custom_call.1} parent=0 // pred_check_branch
    %8 = sbr.rel (0) target = $region5
  $region4: #{tpu_custom_call.1} parent=0 // pred_region
    _
  $region5: #{tpu_custom_call.1} parent=0 // pred_fallthru
    _
  // Predicated region
  $region6: #{tpu_custom_call.1} parent=0 // pred_check
    _
  $region7: #{tpu_custom_call.1} parent=0 // pred_check_branch
    %10 = sbr.rel (0) target = $region9
  $region8: #{tpu_custom_call.1} parent=0 // pred_region
    _
  $region9: #{tpu_custom_call.1} parent=0 // pred_fallthru
    _
  %v11 = vld [vmem:[%s0] sm:$0xff]
  %v12 = vld [vmem:[%s0 + $0x8] sm:$0xff]
  %v13 = vld [vmem:[%s0 + $0x10] sm:$0xff]
  %v14 = vld [vmem:[%s0 + $0x18] sm:$0xff]
  %v15 = vld [vmem:[%s0 + $0x20] sm:$0xff]
  %v16 = vld [vmem:[%s0 + $0x28] sm:$0xff]
  %v17 = vld [vmem:[%s0 + $0x30] sm:$0xff]
  %v18 = vld [vmem:[%s0 + $0x38] sm:$0xff]
  %v19 = vld [vmem:[%s0 + $0x40] sm:$0xff]
  %v20 = vld [vmem:[%s0 + $0x48] sm:$0xff]
  %v21 = vld [vmem:[%s0 + $0x50] sm:$0xff]
  %v22 = vld [vmem:[%s0 + $0x58] sm:$0xff]
  %v23 = vld [vmem:[%s0 + $0x60] sm:$0xff]
  %v24 = vld [vmem:[%s0 + $0x68] sm:$0xff]
  %v25 = vld [vmem:[%s0 + $0x70] sm:$0xff]
  %v26 = vld [vmem:[%s0 + $0x78] sm:$0xff]
  %v27 = vld [vmem:[%s0 + $0x80] sm:$0xff]
  %v28 = vld [vmem:[%s0 + $0x88] sm:$0xff]
  %v29 = vld [vmem:[%s0 + $0x90] sm:$0xff]
  %v30 = vld [vmem:[%s0 + $0x98] sm:$0xff]
  %v31 = vld [vmem:[%s0 + $0xa0] sm:$0xff]
  %v32 = vld [vmem:[%s0 + $0xa8] sm:$0xff]
  %v33 = vld [vmem:[%s0 + $0xb0] sm:$0xff]
  %v34 = vld [vmem:[%s0 + $0xb8] sm:$0xff]
  %v35 = vld [vmem:[%s0 + $0xc0] sm:$0xff]
  %v36 = vld [vmem:[%s0 + $0xc8] sm:$0xff]
  %v37 = vld [vmem:[%s0 + $0xd0] sm:$0xff]
  %v38 = vld [vmem:[%s0 + $0xd8] sm:$0xff]
  %v39 = vld [vmem:[%s0 + $0xe0] sm:$0xff]
  %v40 = vld [vmem:[%s0 + $0xe8] sm:$0xff]
  %v41 = vld [vmem:[%s0 + $0xf0] sm:$0xff]
  %v42 = vld [vmem:[%s0 + $0xf8] sm:$0xff]
  %v43 = vld [vmem:[%s0 + $0x100] sm:$0xff]
  %v44 = vld [vmem:[%s0 + $0x108] sm:$0xff]
  %v45 = vld [vmem:[%s0 + $0x110] sm:$0xff]
  %v46 = vld [vmem:[%s0 + $0x118] sm:$0xff]
  %v47 = vld [vmem:[%s0 + $0x120] sm:$0xff]
  %v48 = vld [vmem:[%s0 + $0x128] sm:$0xff]
  %v49 = vld [vmem:[%s0 + $0x130] sm:$0xff]
  %v50 = vld [vmem:[%s0 + $0x138] sm:$0xff]
  %v51 = vld [vmem:[%s0 + $0x140] sm:$0xff]
  %v52 = vld [vmem:[%s0 + $0x148] sm:$0xff]
  %v53 = vld [vmem:[%s0 + $0x150] sm:$0xff]
  %v54 = vld [vmem:[%s0 + $0x158] sm:$0xff]
  %v55 = vld [vmem:[%s0 + $0x160] sm:$0xff]
  %v56 = vld [vmem:[%s0 + $0x168] sm:$0xff]
  %v57 = vld [vmem:[%s0 + $0x170] sm:$0xff]
  %v58 = vld [vmem:[%s0 + $0x178] sm:$0xff]
  %v59 = vld [vmem:[%s0 + $0x180] sm:$0xff]
  %v60 = vld [vmem:[%s0 + $0x188] sm:$0xff]
  %v61 = vld [vmem:[%s0 + $0x190] sm:$0xff]
  %v62 = vld [vmem:[%s0 + $0x198] sm:$0xff]
  %v63 = vld [vmem:[%s0 + $0x1a0] sm:$0xff]
  %v64 = vld [vmem:[%s0 + $0x1a8] sm:$0xff]
  %v65 = vld [vmem:[%s0 + $0x1b0] sm:$0xff]
  %v66 = vld [vmem:[%s0 + $0x1b8] sm:$0xff]
  %v67 = vld [vmem:[%s0 + $0x1c0] sm:$0xff]
  %v68 = vld [vmem:[%s0 + $0x1c8] sm:$0xff]
  %v69 = vld [vmem:[%s0 + $0x1d0] sm:$0xff]
  %v70 = vld [vmem:[%s0 + $0x1d8] sm:$0xff]
  %v71 = vld [vmem:[%s0 + $0x1e0] sm:$0xff]
  %v72 = vld [vmem:[%s0 + $0x1e8] sm:$0xff]
  %v73 = vld [vmem:[%s0 + $0x1f0] sm:$0xff]
  %v74 = vld [vmem:[%s0 + $0x1f8] sm:$0xff]
  %v75 = vld [vmem:[%s0 + $0x200] sm:$0xff]
  %v76 = vld [vmem:[%s0 + $0x208] sm:$0xff]
  %v77 = vld [vmem:[%s0 + $0x210] sm:$0xff]
  %v78 = vld [vmem:[%s0 + $0x218] sm:$0xff]
  %v79 = vld [vmem:[%s0 + $0x220] sm:$0xff]
  %v80 = vld [vmem:[%s0 + $0x228] sm:$0xff]
  %v81 = vld [vmem:[%s0 + $0x230] sm:$0xff]
  %v82 = vld [vmem:[%s0 + $0x238] sm:$0xff]
  %v83 = vld [vmem:[%s0 + $0x240] sm:$0xff]
  %v84 = vld [vmem:[%s0 + $0x248] sm:$0xff]
  %v85 = vld [vmem:[%s0 + $0x250] sm:$0xff]
  %v86 = vld [vmem:[%s0 + $0x258] sm:$0xff]
  %v87 = vld [vmem:[%s0 + $0x260] sm:$0xff]
  %v88 = vld [vmem:[%s0 + $0x268] sm:$0xff]
  %v89 = vld [vmem:[%s0 + $0x270] sm:$0xff]
  %v90 = vld [vmem:[%s0 + $0x278] sm:$0xff]
  %v91 = vld [vmem:[%s0 + $0x280] sm:$0xff]
  %v92 = vld [vmem:[%s0 + $0x288] sm:$0xff]
  %v93 = vld [vmem:[%s0 + $0x290] sm:$0xff]
  %v94 = vld [vmem:[%s0 + $0x298] sm:$0xff]
  %v95 = vld [vmem:[%s0 + $0x2a0] sm:$0xff]
  %v96 = vld [vmem:[%s0 + $0x2a8] sm:$0xff]
  %v97 = vld [vmem:[%s0 + $0x2b0] sm:$0xff]
  %v98 = vld [vmem:[%s0 + $0x2b8] sm:$0xff]
  %v99 = vld [vmem:[%s0 + $0x2c0] sm:$0xff]
  %v100 = vld [vmem:[%s0 + $0x2c8] sm:$0xff]
  %v101 = vld [vmem:[%s0 + $0x2d0] sm:$0xff]
  %v102 = vld [vmem:[%s0 + $0x2d8] sm:$0xff]
  %v103 = vld [vmem:[%s0 + $0x2e0] sm:$0xff]
  %v104 = vld [vmem:[%s0 + $0x2e8] sm:$0xff]
  %v105 = vld [vmem:[%s0 + $0x2f0] sm:$0xff]
  %v106 = vld [vmem:[%s0 + $0x2f8] sm:$0xff]
  %v107 = vld [vmem:[%s0 + $0x300] sm:$0xff]
  %v108 = vld [vmem:[%s0 + $0x308] sm:$0xff]
  %v109 = vld [vmem:[%s0 + $0x310] sm:$0xff]
  %v110 = vld [vmem:[%s0 + $0x318] sm:$0xff]
  %v111 = vld [vmem:[%s0 + $0x320] sm:$0xff]
  %v112 = vld [vmem:[%s0 + $0x328] sm:$0xff]
  %v113 = vld [vmem:[%s0 + $0x330] sm:$0xff]
  %v114 = vld [vmem:[%s0 + $0x338] sm:$0xff]
  %v115 = vld [vmem:[%s0 + $0x340] sm:$0xff]
  %v116 = vld [vmem:[%s0 + $0x348] sm:$0xff]
  %v117 = vld [vmem:[%s0 + $0x350] sm:$0xff]
  %v118 = vld [vmem:[%s0 + $0x358] sm:$0xff]
  %vm119 = vcmask 400384
  %v120 = vsel %vm119, %v11, 0.0
  %121 = vadd.xlane.f32.xlu0 %v120
  %v122 = vpop.xlane.xlu0 %121
  %v123 = vsel %vm119, %v12, 0.0
  %124 = vadd.xlane.f32.xlu0 %v123
  %v125 = vpop.xlane.xlu0 %124
  %v126 = vsel %vm119, %v13, 0.0
  %127 = vadd.xlane.f32.xlu0 %v126
  %v128 = vpop.xlane.xlu0 %127
  %v129 = vsel %vm119, %v14, 0.0
  %130 = vadd.xlane.f32.xlu0 %v129
  %v131 = vpop.xlane.xlu0 %130
  %v132 = vsel %vm119, %v15, 0.0
  %133 = vadd.xlane.f32.xlu0 %v132
  %v134 = vpop.xlane.xlu0 %133
  %v135 = vsel %vm119, %v16, 0.0
  %136 = vadd.xlane.f32.xlu0 %v135
  %v137 = vpop.xlane.xlu0 %136
  %v138 = vsel %vm119, %v17, 0.0
  %139 = vadd.xlane.f32.xlu0 %v138
  %v140 = vpop.xlane.xlu0 %139
  %v141 = vsel %vm119, %v18, 0.0
  %142 = vadd.xlane.f32.xlu0 %v141
  %v143 = vpop.xlane.xlu0 %142
  %v144 = vsel %vm119, %v19, 0.0
  %145 = vadd.xlane.f32.xlu0 %v144
  %v146 = vpop.xlane.xlu0 %145
  %v147 = vsel %vm119, %v20, 0.0
  %148 = vadd.xlane.f32.xlu0 %v147
  %v149 = vpop.xlane.xlu0 %148
  %v150 = vsel %vm119, %v21, 0.0
  %151 = vadd.xlane.f32.xlu0 %v150
  %v152 = vpop.xlane.xlu0 %151
  %v153 = vsel %vm119, %v22, 0.0
  %154 = vadd.xlane.f32.xlu0 %v153
  %v155 = vpop.xlane.xlu0 %154
  %v156 = vsel %vm119, %v23, 0.0
  %157 = vadd.xlane.f32.xlu0 %v156
  %v158 = vpop.xlane.xlu0 %157
  %v159 = vsel %vm119, %v24, 0.0
  %160 = vadd.xlane.f32.xlu0 %v159
  %v161 = vpop.xlane.xlu0 %160
  %v162 = vsel %vm119, %v25, 0.0
  %163 = vadd.xlane.f32.xlu0 %v162
  %v164 = vpop.xlane.xlu0 %163
  %v165 = vsel %vm119, %v26, 0.0
  %166 = vadd.xlane.f32.xlu0 %v165
  %v167 = vpop.xlane.xlu0 %166
  %v168 = vsel %vm119, %v27, 0.0
  %169 = vadd.xlane.f32.xlu0 %v168
  %v170 = vpop.xlane.xlu0 %169
  %v171 = vsel %vm119, %v28, 0.0
  %172 = vadd.xlane.f32.xlu0 %v171
  %v173 = vpop.xlane.xlu0 %172
  %v174 = vsel %vm119, %v29, 0.0
  %175 = vadd.xlane.f32.xlu0 %v174
  %v176 = vpop.xlane.xlu0 %175
  %v177 = vsel %vm119, %v30, 0.0
  %178 = vadd.xlane.f32.xlu0 %v177
  %v179 = vpop.xlane.xlu0 %178
  %v180 = vsel %vm119, %v31, 0.0
  %181 = vadd.xlane.f32.xlu0 %v180
  %v182 = vpop.xlane.xlu0 %181
  %v183 = vsel %vm119, %v32, 0.0
  %184 = vadd.xlane.f32.xlu0 %v183
  %v185 = vpop.xlane.xlu0 %184
  %v186 = vsel %vm119, %v33, 0.0
  %187 = vadd.xlane.f32.xlu0 %v186
  %v188 = vpop.xlane.xlu0 %187
  %v189 = vsel %vm119, %v34, 0.0
  %190 = vadd.xlane.f32.xlu0 %v189
  %v191 = vpop.xlane.xlu0 %190
  %v192 = vsel %vm119, %v35, 0.0
  %193 = vadd.xlane.f32.xlu0 %v192
  %v194 = vpop.xlane.xlu0 %193
  %v195 = vsel %vm119, %v36, 0.0
  %196 = vadd.xlane.f32.xlu0 %v195
  %v197 = vpop.xlane.xlu0 %196
  %v198 = vsel %vm119, %v37, 0.0
  %199 = vadd.xlane.f32.xlu0 %v198
  %v200 = vpop.xlane.xlu0 %199
  %v201 = vsel %vm119, %v38, 0.0
  %202 = vadd.xlane.f32.xlu0 %v201
  %v203 = vpop.xlane.xlu0 %202
  %v204 = vsel %vm119, %v39, 0.0
  %205 = vadd.xlane.f32.xlu0 %v204
  %v206 = vpop.xlane.xlu0 %205
  %v207 = vsel %vm119, %v40, 0.0
  %208 = vadd.xlane.f32.xlu0 %v207
  %v209 = vpop.xlane.xlu0 %208
  %v210 = vsel %vm119, %v41, 0.0
  %211 = vadd.xlane.f32.xlu0 %v210
  %v212 = vpop.xlane.xlu0 %211
  %v213 = vsel %vm119, %v42, 0.0
  %214 = vadd.xlane.f32.xlu0 %v213
  %v215 = vpop.xlane.xlu0 %214
  %v216 = vsel %vm119, %v43, 0.0
  %217 = vadd.xlane.f32.xlu0 %v216
  %v218 = vpop.xlane.xlu0 %217
  %v219 = vsel %vm119, %v44, 0.0
  %220 = vadd.xlane.f32.xlu0 %v219
  %v221 = vpop.xlane.xlu0 %220
  %v222 = vsel %vm119, %v45, 0.0
  %223 = vadd.xlane.f32.xlu0 %v222
  %v224 = vpop.xlane.xlu0 %223
  %v225 = vsel %vm119, %v46, 0.0
  %226 = vadd.xlane.f32.xlu0 %v225
  %v227 = vpop.xlane.xlu0 %226
  %v228 = vsel %vm119, %v47, 0.0
  %229 = vadd.xlane.f32.xlu0 %v228
  %v230 = vpop.xlane.xlu0 %229
  %v231 = vsel %vm119, %v48, 0.0
  %232 = vadd.xlane.f32.xlu0 %v231
  %v233 = vpop.xlane.xlu0 %232
  %v234 = vsel %vm119, %v49, 0.0
  %235 = vadd.xlane.f32.xlu0 %v234
  %v236 = vpop.xlane.xlu0 %235
  %v237 = vsel %vm119, %v50, 0.0
  %238 = vadd.xlane.f32.xlu0 %v237
  %v239 = vpop.xlane.xlu0 %238
  %v240 = vsel %vm119, %v51, 0.0
  %241 = vadd.xlane.f32.xlu0 %v240
  %v242 = vpop.xlane.xlu0 %241
  %v243 = vsel %vm119, %v52, 0.0
  %244 = vadd.xlane.f32.xlu0 %v243
  %v245 = vpop.xlane.xlu0 %244
  %v246 = vsel %vm119, %v53, 0.0
  %247 = vadd.xlane.f32.xlu0 %v246
  %v248 = vpop.xlane.xlu0 %247
  %v249 = vsel %vm119, %v54, 0.0
  %250 = vadd.xlane.f32.xlu0 %v249
  %v251 = vpop.xlane.xlu0 %250
  %v252 = vsel %vm119, %v55, 0.0
  %253 = vadd.xlane.f32.xlu0 %v252
  %v254 = vpop.xlane.xlu0 %253
  %v255 = vsel %vm119, %v56, 0.0
  %256 = vadd.xlane.f32.xlu0 %v255
  %v257 = vpop.xlane.xlu0 %256
  %v258 = vsel %vm119, %v57, 0.0
  %259 = vadd.xlane.f32.xlu0 %v258
  %v260 = vpop.xlane.xlu0 %259
  %v261 = vsel %vm119, %v58, 0.0
  %262 = vadd.xlane.f32.xlu0 %v261
  %v263 = vpop.xlane.xlu0 %262
  %v264 = vsel %vm119, %v59, 0.0
  %265 = vadd.xlane.f32.xlu0 %v264
  %v266 = vpop.xlane.xlu0 %265
  %v267 = vsel %vm119, %v60, 0.0
  %268 = vadd.xlane.f32.xlu0 %v267
  %v269 = vpop.xlane.xlu0 %268
  %v270 = vsel %vm119, %v61, 0.0
  %271 = vadd.xlane.f32.xlu0 %v270
  %v272 = vpop.xlane.xlu0 %271
  %v273 = vsel %vm119, %v62, 0.0
  %274 = vadd.xlane.f32.xlu0 %v273
  %v275 = vpop.xlane.xlu0 %274
  %v276 = vsel %vm119, %v63, 0.0
  %277 = vadd.xlane.f32.xlu0 %v276
  %v278 = vpop.xlane.xlu0 %277
  %v279 = vsel %vm119, %v64, 0.0
  %280 = vadd.xlane.f32.xlu0 %v279
  %v281 = vpop.xlane.xlu0 %280
  %v282 = vsel %vm119, %v65, 0.0
  %283 = vadd.xlane.f32.xlu0 %v282
  %v284 = vpop.xlane.xlu0 %283
  %v285 = vsel %vm119, %v66, 0.0
  %286 = vadd.xlane.f32.xlu0 %v285
  %v287 = vpop.xlane.xlu0 %286
  %v288 = vsel %vm119, %v67, 0.0
  %289 = vadd.xlane.f32.xlu0 %v288
  %v290 = vpop.xlane.xlu0 %289
  %v291 = vsel %vm119, %v68, 0.0
  %292 = vadd.xlane.f32.xlu0 %v291
  %v293 = vpop.xlane.xlu0 %292
  %v294 = vsel %vm119, %v69, 0.0
  %295 = vadd.xlane.f32.xlu0 %v294
  %v296 = vpop.xlane.xlu0 %295
  %v297 = vsel %vm119, %v70, 0.0
  %298 = vadd.xlane.f32.xlu0 %v297
  %v299 = vpop.xlane.xlu0 %298
  %v300 = vsel %vm119, %v71, 0.0
  %301 = vadd.xlane.f32.xlu0 %v300
  %v302 = vpop.xlane.xlu0 %301
  %v303 = vsel %vm119, %v72, 0.0
  %304 = vadd.xlane.f32.xlu0 %v303
  %v305 = vpop.xlane.xlu0 %304
  %v306 = vsel %vm119, %v73, 0.0
  %307 = vadd.xlane.f32.xlu0 %v306
  %v308 = vpop.xlane.xlu0 %307
  %v309 = vsel %vm119, %v74, 0.0
  %310 = vadd.xlane.f32.xlu0 %v309
  %v311 = vpop.xlane.xlu0 %310
  %v312 = vsel %vm119, %v75, 0.0
  %313 = vadd.xlane.f32.xlu0 %v312
  %v314 = vpop.xlane.xlu0 %313
  %v315 = vsel %vm119, %v76, 0.0
  %316 = vadd.xlane.f32.xlu0 %v315
  %v317 = vpop.xlane.xlu0 %316
  %v318 = vsel %vm119, %v77, 0.0
  %319 = vadd.xlane.f32.xlu0 %v318
  %v320 = vpop.xlane.xlu0 %319
  %v321 = vsel %vm119, %v78, 0.0
  %322 = vadd.xlane.f32.xlu0 %v321
  %v323 = vpop.xlane.xlu0 %322
  %v324 = vsel %vm119, %v79, 0.0
  %325 = vadd.xlane.f32.xlu0 %v324
  %v326 = vpop.xlane.xlu0 %325
  %v327 = vsel %vm119, %v80, 0.0
  %328 = vadd.xlane.f32.xlu0 %v327
  %v329 = vpop.xlane.xlu0 %328
  %v330 = vsel %vm119, %v81, 0.0
  %331 = vadd.xlane.f32.xlu0 %v330
  %v332 = vpop.xlane.xlu0 %331
  %v333 = vsel %vm119, %v82, 0.0
  %334 = vadd.xlane.f32.xlu0 %v333
  %v335 = vpop.xlane.xlu0 %334
  %v336 = vsel %vm119, %v83, 0.0
  %337 = vadd.xlane.f32.xlu0 %v336
  %v338 = vpop.xlane.xlu0 %337
  %v339 = vsel %vm119, %v84, 0.0
  %340 = vadd.xlane.f32.xlu0 %v339
  %v341 = vpop.xlane.xlu0 %340
  %v342 = vsel %vm119, %v85, 0.0
  %343 = vadd.xlane.f32.xlu0 %v342
  %v344 = vpop.xlane.xlu0 %343
  %v345 = vsel %vm119, %v86, 0.0
  %346 = vadd.xlane.f32.xlu0 %v345
  %v347 = vpop.xlane.xlu0 %346
  %v348 = vsel %vm119, %v87, 0.0
  %349 = vadd.xlane.f32.xlu0 %v348
  %v350 = vpop.xlane.xlu0 %349
  %v351 = vsel %vm119, %v88, 0.0
  %352 = vadd.xlane.f32.xlu0 %v351
  %v353 = vpop.xlane.xlu0 %352
  %v354 = vsel %vm119, %v89, 0.0
  %355 = vadd.xlane.f32.xlu0 %v354
  %v356 = vpop.xlane.xlu0 %355
  %v357 = vsel %vm119, %v90, 0.0
  %358 = vadd.xlane.f32.xlu0 %v357
  %v359 = vpop.xlane.xlu0 %358
  %v360 = vsel %vm119, %v91, 0.0
  %361 = vadd.xlane.f32.xlu0 %v360
  %v362 = vpop.xlane.xlu0 %361
  %v363 = vsel %vm119, %v92, 0.0
  %364 = vadd.xlane.f32.xlu0 %v363
  %v365 = vpop.xlane.xlu0 %364
  %v366 = vsel %vm119, %v93, 0.0
  %367 = vadd.xlane.f32.xlu0 %v366
  %v368 = vpop.xlane.xlu0 %367
  %v369 = vsel %vm119, %v94, 0.0
  %370 = vadd.xlane.f32.xlu0 %v369
  %v371 = vpop.xlane.xlu0 %370
  %v372 = vsel %vm119, %v95, 0.0
  %373 = vadd.xlane.f32.xlu0 %v372
  %v374 = vpop.xlane.xlu0 %373
  %v375 = vsel %vm119, %v96, 0.0
  %376 = vadd.xlane.f32.xlu0 %v375
  %v377 = vpop.xlane.xlu0 %376
  %v378 = vsel %vm119, %v97, 0.0
  %379 = vadd.xlane.f32.xlu0 %v378
  %v380 = vpop.xlane.xlu0 %379
  %v381 = vsel %vm119, %v98, 0.0
  %382 = vadd.xlane.f32.xlu0 %v381
  %v383 = vpop.xlane.xlu0 %382
  %v384 = vsel %vm119, %v99, 0.0
  %385 = vadd.xlane.f32.xlu0 %v384
  %v386 = vpop.xlane.xlu0 %385
  %v387 = vsel %vm119, %v100, 0.0
  %388 = vadd.xlane.f32.xlu0 %v387
  %v389 = vpop.xlane.xlu0 %388
  %v390 = vsel %vm119, %v101, 0.0
  %391 = vadd.xlane.f32.xlu0 %v390
  %v392 = vpop.xlane.xlu0 %391
  %v393 = vsel %vm119, %v102, 0.0
  %394 = vadd.xlane.f32.xlu0 %v393
  %v395 = vpop.xlane.xlu0 %394
  %v396 = vsel %vm119, %v103, 0.0
  %397 = vadd.xlane.f32.xlu0 %v396
  %v398 = vpop.xlane.xlu0 %397
  %v399 = vsel %vm119, %v104, 0.0
  %400 = vadd.xlane.f32.xlu0 %v399
  %v401 = vpop.xlane.xlu0 %400
  %v402 = vsel %vm119, %v105, 0.0
  %403 = vadd.xlane.f32.xlu0 %v402
  %v404 = vpop.xlane.xlu0 %403
  %v405 = vsel %vm119, %v106, 0.0
  %406 = vadd.xlane.f32.xlu0 %v405
  %v407 = vpop.xlane.xlu0 %406
  %v408 = vsel %vm119, %v107, 0.0
  %409 = vadd.xlane.f32.xlu0 %v408
  %v410 = vpop.xlane.xlu0 %409
  %v411 = vsel %vm119, %v108, 0.0
  %412 = vadd.xlane.f32.xlu0 %v411
  %v413 = vpop.xlane.xlu0 %412
  %v414 = vsel %vm119, %v109, 0.0
  %415 = vadd.xlane.f32.xlu0 %v414
  %v416 = vpop.xlane.xlu0 %415
  %v417 = vsel %vm119, %v110, 0.0
  %418 = vadd.xlane.f32.xlu0 %v417
  %v419 = vpop.xlane.xlu0 %418
  %v420 = vsel %vm119, %v111, 0.0
  %421 = vadd.xlane.f32.xlu0 %v420
  %v422 = vpop.xlane.xlu0 %421
  %v423 = vsel %vm119, %v112, 0.0
  %424 = vadd.xlane.f32.xlu0 %v423
  %v425 = vpop.xlane.xlu0 %424
  %v426 = vsel %vm119, %v113, 0.0
  %427 = vadd.xlane.f32.xlu0 %v426
  %v428 = vpop.xlane.xlu0 %427
  %v429 = vsel %vm119, %v114, 0.0
  %430 = vadd.xlane.f32.xlu0 %v429
  %v431 = vpop.xlane.xlu0 %430
  %v432 = vsel %vm119, %v115, 0.0
  %433 = vadd.xlane.f32.xlu0 %v432
  %v434 = vpop.xlane.xlu0 %433
  %v435 = vsel %vm119, %v116, 0.0
  %436 = vadd.xlane.f32.xlu0 %v435
  %v437 = vpop.xlane.xlu0 %436
  %v438 = vsel %vm119, %v117, 0.0
  %439 = vadd.xlane.f32.xlu0 %v438
  %v440 = vpop.xlane.xlu0 %439
  %v441 = vsel %vm119, %v118, 0.0
  %442 = vadd.xlane.f32.xlu0 %v441
  %v443 = vpop.xlane.xlu0 %442
  %v444 = vadd.f32 %v122, 0.0
  %v445 = vadd.f32 %v125, 0.0
  %v446 = vadd.f32 %v128, 0.0
  %v447 = vadd.f32 %v131, 0.0
  %v448 = vadd.f32 %v134, 0.0
  %v449 = vadd.f32 %v137, 0.0
  %v450 = vadd.f32 %v140, 0.0
  %v451 = vadd.f32 %v143, 0.0
  %v452 = vadd.f32 %v146, 0.0
  %v453 = vadd.f32 %v149, 0.0
  %v454 = vadd.f32 %v152, 0.0
  %v455 = vadd.f32 %v155, 0.0
  %v456 = vadd.f32 %v158, 0.0
  %v457 = vadd.f32 %v161, 0.0
  %v458 = vadd.f32 %v164, 0.0
  %v459 = vadd.f32 %v167, 0.0
  %v460 = vadd.f32 %v170, 0.0
  %v461 = vadd.f32 %v173, 0.0
  %v462 = vadd.f32 %v176, 0.0
  %v463 = vadd.f32 %v179, 0.0
  %v464 = vadd.f32 %v182, 0.0
  %v465 = vadd.f32 %v185, 0.0
  %v466 = vadd.f32 %v188, 0.0
  %v467 = vadd.f32 %v191, 0.0
  %v468 = vadd.f32 %v194, 0.0
  %v469 = vadd.f32 %v197, 0.0
  %v470 = vadd.f32 %v200, 0.0
  %v471 = vadd.f32 %v203, 0.0
  %v472 = vadd.f32 %v206, 0.0
  %v473 = vadd.f32 %v209, 0.0
  %v474 = vadd.f32 %v212, 0.0
  %v475 = vadd.f32 %v215, 0.0
  %v476 = vadd.f32 %v218, 0.0
  %v477 = vadd.f32 %v221, 0.0
  %v478 = vadd.f32 %v224, 0.0
  %v479 = vadd.f32 %v227, 0.0
  %v480 = vadd.f32 %v230, 0.0
  %v481 = vadd.f32 %v233, 0.0
  %v482 = vadd.f32 %v236, 0.0
  %v483 = vadd.f32 %v239, 0.0
  %v484 = vadd.f32 %v242, 0.0
  %v485 = vadd.f32 %v245, 0.0
  %v486 = vadd.f32 %v248, 0.0
  %v487 = vadd.f32 %v251, 0.0
  %v488 = vadd.f32 %v254, 0.0
  %v489 = vadd.f32 %v257, 0.0
  %v490 = vadd.f32 %v260, 0.0
  %v491 = vadd.f32 %v263, 0.0
  %v492 = vadd.f32 %v266, 0.0
  %v493 = vadd.f32 %v269, 0.0
  %v494 = vadd.f32 %v272, 0.0
  %v495 = vadd.f32 %v275, 0.0
  %v496 = vadd.f32 %v278, 0.0
  %v497 = vadd.f32 %v281, 0.0
  %v498 = vadd.f32 %v284, 0.0
  %v499 = vadd.f32 %v287, 0.0
  %v500 = vadd.f32 %v290, 0.0
  %v501 = vadd.f32 %v293, 0.0
  %v502 = vadd.f32 %v296, 0.0
  %v503 = vadd.f32 %v299, 0.0
  %v504 = vadd.f32 %v302, 0.0
  %v505 = vadd.f32 %v305, 0.0
  %v506 = vadd.f32 %v308, 0.0
  %v507 = vadd.f32 %v311, 0.0
  %v508 = vadd.f32 %v314, 0.0
  %v509 = vadd.f32 %v317, 0.0
  %v510 = vadd.f32 %v320, 0.0
  %v511 = vadd.f32 %v323, 0.0
  %v512 = vadd.f32 %v326, 0.0
  %v513 = vadd.f32 %v329, 0.0
  %v514 = vadd.f32 %v332, 0.0
  %v515 = vadd.f32 %v335, 0.0
  %v516 = vadd.f32 %v338, 0.0
  %v517 = vadd.f32 %v341, 0.0
  %v518 = vadd.f32 %v344, 0.0
  %v519 = vadd.f32 %v347, 0.0
  %v520 = vadd.f32 %v350, 0.0
  %v521 = vadd.f32 %v353, 0.0
  %v522 = vadd.f32 %v356, 0.0
  %v523 = vadd.f32 %v359, 0.0
  %v524 = vadd.f32 %v362, 0.0
  %v525 = vadd.f32 %v365, 0.0
  %v526 = vadd.f32 %v368, 0.0
  %v527 = vadd.f32 %v371, 0.0
  %v528 = vadd.f32 %v374, 0.0
  %v529 = vadd.f32 %v377, 0.0
  %v530 = vadd.f32 %v380, 0.0
  %v531 = vadd.f32 %v383, 0.0
  %v532 = vadd.f32 %v386, 0.0
  %v533 = vadd.f32 %v389, 0.0
  %v534 = vadd.f32 %v392, 0.0
  %v535 = vadd.f32 %v395, 0.0
  %v536 = vadd.f32 %v398, 0.0
  %v537 = vadd.f32 %v401, 0.0
  %v538 = vadd.f32 %v404, 0.0
  %v539 = vadd.f32 %v407, 0.0
  %v540 = vadd.f32 %v410, 0.0
  %v541 = vadd.f32 %v413, 0.0
  %v542 = vadd.f32 %v416, 0.0
  %v543 = vadd.f32 %v419, 0.0
  %v544 = vadd.f32 %v422, 0.0
  %v545 = vadd.f32 %v425, 0.0
  %v546 = vadd.f32 %v428, 0.0
  %v547 = vadd.f32 %v431, 0.0
  %v548 = vadd.f32 %v434, 0.0
  %v549 = vadd.f32 %v437, 0.0
  %v550 = vadd.f32 %v440, 0.0
  %v551 = vadd.f32 %v443, 0.0
  %v552 = vmul.f32 %v11, %v11
  %v553 = vmul.f32 %v12, %v12
  %v554 = vmul.f32 %v13, %v13
  %v555 = vmul.f32 %v14, %v14
  %v556 = vmul.f32 %v15, %v15
  %v557 = vmul.f32 %v16, %v16
  %v558 = vmul.f32 %v17, %v17
  %v559 = vmul.f32 %v18, %v18
  %v560 = vmul.f32 %v19, %v19
  %v561 = vmul.f32 %v20, %v20
  %v562 = vmul.f32 %v21, %v21
  %v563 = vmul.f32 %v22, %v22
  %v564 = vmul.f32 %v23, %v23
  %v565 = vmul.f32 %v24, %v24
  %v566 = vmul.f32 %v25, %v25
  %v567 = vmul.f32 %v26, %v26
  %v568 = vmul.f32 %v27, %v27
  %v569 = vmul.f32 %v28, %v28
  %v570 = vmul.f32 %v29, %v29
  %v571 = vmul.f32 %v30, %v30
  %v572 = vmul.f32 %v31, %v31
  %v573 = vmul.f32 %v32, %v32
  %v574 = vmul.f32 %v33, %v33
  %v575 = vmul.f32 %v34, %v34
  %v576 = vmul.f32 %v35, %v35
  %v577 = vmul.f32 %v36, %v36
  %v578 = vmul.f32 %v37, %v37
  %v579 = vmul.f32 %v38, %v38
  %v580 = vmul.f32 %v39, %v39
  %v581 = vmul.f32 %v40, %v40
  %v582 = vmul.f32 %v41, %v41
  %v583 = vmul.f32 %v42, %v42
  %v584 = vmul.f32 %v43, %v43
  %v585 = vmul.f32 %v44, %v44
  %v586 = vmul.f32 %v45, %v45
  %v587 = vmul.f32 %v46, %v46
  %v588 = vmul.f32 %v47, %v47
  %v589 = vmul.f32 %v48, %v48
  %v590 = vmul.f32 %v49, %v49
  %v591 = vmul.f32 %v50, %v50
  %v592 = vmul.f32 %v51, %v51
  %v593 = vmul.f32 %v52, %v52
  %v594 = vmul.f32 %v53, %v53
  %v595 = vmul.f32 %v54, %v54
  %v596 = vmul.f32 %v55, %v55
  %v597 = vmul.f32 %v56, %v56
  %v598 = vmul.f32 %v57, %v57
  %v599 = vmul.f32 %v58, %v58
  %v600 = vmul.f32 %v59, %v59
  %v601 = vmul.f32 %v60, %v60
  %v602 = vmul.f32 %v61, %v61
  %v603 = vmul.f32 %v62, %v62
  %v604 = vmul.f32 %v63, %v63
  %v605 = vmul.f32 %v64, %v64
  %v606 = vmul.f32 %v65, %v65
  %v607 = vmul.f32 %v66, %v66
  %v608 = vmul.f32 %v67, %v67
  %v609 = vmul.f32 %v68, %v68
  %v610 = vmul.f32 %v69, %v69
  %v611 = vmul.f32 %v70, %v70
  %v612 = vmul.f32 %v71, %v71
  %v613 = vmul.f32 %v72, %v72
  %v614 = vmul.f32 %v73, %v73
  %v615 = vmul.f32 %v74, %v74
  %v616 = vmul.f32 %v75, %v75
  %v617 = vmul.f32 %v76, %v76
  %v618 = vmul.f32 %v77, %v77
  %v619 = vmul.f32 %v78, %v78
  %v620 = vmul.f32 %v79, %v79
  %v621 = vmul.f32 %v80, %v80
  %v622 = vmul.f32 %v81, %v81
  %v623 = vmul.f32 %v82, %v82
  %v624 = vmul.f32 %v83, %v83
  %v625 = vmul.f32 %v84, %v84
  %v626 = vmul.f32 %v85, %v85
  %v627 = vmul.f32 %v86, %v86
  %v628 = vmul.f32 %v87, %v87
  %v629 = vmul.f32 %v88, %v88
  %v630 = vmul.f32 %v89, %v89
  %v631 = vmul.f32 %v90, %v90
  %v632 = vmul.f32 %v91, %v91
  %v633 = vmul.f32 %v92, %v92
  %v634 = vmul.f32 %v93, %v93
  %v635 = vmul.f32 %v94, %v94
  %v636 = vmul.f32 %v95, %v95
  %v637 = vmul.f32 %v96, %v96
  %v638 = vmul.f32 %v97, %v97
  %v639 = vmul.f32 %v98, %v98
  %v640 = vmul.f32 %v99, %v99
  %v641 = vmul.f32 %v100, %v100
  %v642 = vmul.f32 %v101, %v101
  %v643 = vmul.f32 %v102, %v102
  %v644 = vmul.f32 %v103, %v103
  %v645 = vmul.f32 %v104, %v104
  %v646 = vmul.f32 %v105, %v105
  %v647 = vmul.f32 %v106, %v106
  %v648 = vmul.f32 %v107, %v107
  %v649 = vmul.f32 %v108, %v108
  %v650 = vmul.f32 %v109, %v109
  %v651 = vmul.f32 %v110, %v110
  %v652 = vmul.f32 %v111, %v111
  %v653 = vmul.f32 %v112, %v112
  %v654 = vmul.f32 %v113, %v113
  %v655 = vmul.f32 %v114, %v114
  %v656 = vmul.f32 %v115, %v115
  %v657 = vmul.f32 %v116, %v116
  %v658 = vmul.f32 %v117, %v117
  %v659 = vmul.f32 %v118, %v118
  %v660 = vsel %vm119, %v552, 0.0
  %661 = vadd.xlane.f32.xlu0 %v660
  %v662 = vpop.xlane.xlu0 %661
  %v663 = vsel %vm119, %v553, 0.0
  %664 = vadd.xlane.f32.xlu0 %v663
  %v665 = vpop.xlane.xlu0 %664
  %v666 = vsel %vm119, %v554, 0.0
  %667 = vadd.xlane.f32.xlu0 %v666
  %v668 = vpop.xlane.xlu0 %667
  %v669 = vsel %vm119, %v555, 0.0
  %670 = vadd.xlane.f32.xlu0 %v669
  %v671 = vpop.xlane.xlu0 %670
  %v672 = vsel %vm119, %v556, 0.0
  %673 = vadd.xlane.f32.xlu0 %v672
  %v674 = vpop.xlane.xlu0 %673
  %v675 = vsel %vm119, %v557, 0.0
  %676 = vadd.xlane.f32.xlu0 %v675
  %v677 = vpop.xlane.xlu0 %676
  %v678 = vsel %vm119, %v558, 0.0
  %679 = vadd.xlane.f32.xlu0 %v678
  %v680 = vpop.xlane.xlu0 %679
  %v681 = vsel %vm119, %v559, 0.0
  %682 = vadd.xlane.f32.xlu0 %v681
  %v683 = vpop.xlane.xlu0 %682
  %v684 = vsel %vm119, %v560, 0.0
  %685 = vadd.xlane.f32.xlu0 %v684
  %v686 = vpop.xlane.xlu0 %685
  %v687 = vsel %vm119, %v561, 0.0
  %688 = vadd.xlane.f32.xlu0 %v687
  %v689 = vpop.xlane.xlu0 %688
  %v690 = vsel %vm119, %v562, 0.0
  %691 = vadd.xlane.f32.xlu0 %v690
  %v692 = vpop.xlane.xlu0 %691
  %v693 = vsel %vm119, %v563, 0.0
  %694 = vadd.xlane.f32.xlu0 %v693
  %v695 = vpop.xlane.xlu0 %694
  %v696 = vsel %vm119, %v564, 0.0
  %697 = vadd.xlane.f32.xlu0 %v696
  %v698 = vpop.xlane.xlu0 %697
  %v699 = vsel %vm119, %v565, 0.0
  %700 = vadd.xlane.f32.xlu0 %v699
  %v701 = vpop.xlane.xlu0 %700
  %v702 = vsel %vm119, %v566, 0.0
  %703 = vadd.xlane.f32.xlu0 %v702
  %v704 = vpop.xlane.xlu0 %703
  %v705 = vsel %vm119, %v567, 0.0
  %706 = vadd.xlane.f32.xlu0 %v705
  %v707 = vpop.xlane.xlu0 %706
  %v708 = vsel %vm119, %v568, 0.0
  %709 = vadd.xlane.f32.xlu0 %v708
  %v710 = vpop.xlane.xlu0 %709
  %v711 = vsel %vm119, %v569, 0.0
  %712 = vadd.xlane.f32.xlu0 %v711
  %v713 = vpop.xlane.xlu0 %712
  %v714 = vsel %vm119, %v570, 0.0
  %715 = vadd.xlane.f32.xlu0 %v714
  %v716 = vpop.xlane.xlu0 %715
  %v717 = vsel %vm119, %v571, 0.0
  %718 = vadd.xlane.f32.xlu0 %v717
  %v719 = vpop.xlane.xlu0 %718
  %v720 = vsel %vm119, %v572, 0.0
  %721 = vadd.xlane.f32.xlu0 %v720
  %v722 = vpop.xlane.xlu0 %721
  %v723 = vsel %vm119, %v573, 0.0
  %724 = vadd.xlane.f32.xlu0 %v723
  %v725 = vpop.xlane.xlu0 %724
  %v726 = vsel %vm119, %v574, 0.0
  %727 = vadd.xlane.f32.xlu0 %v726
  %v728 = vpop.xlane.xlu0 %727
  %v729 = vsel %vm119, %v575, 0.0
  %730 = vadd.xlane.f32.xlu0 %v729
  %v731 = vpop.xlane.xlu0 %730
  %v732 = vsel %vm119, %v576, 0.0
  %733 = vadd.xlane.f32.xlu0 %v732
  %v734 = vpop.xlane.xlu0 %733
  %v735 = vsel %vm119, %v577, 0.0
  %736 = vadd.xlane.f32.xlu0 %v735
  %v737 = vpop.xlane.xlu0 %736
  %v738 = vsel %vm119, %v578, 0.0
  %739 = vadd.xlane.f32.xlu0 %v738
  %v740 = vpop.xlane.xlu0 %739
  %v741 = vsel %vm119, %v579, 0.0
  %742 = vadd.xlane.f32.xlu0 %v741
  %v743 = vpop.xlane.xlu0 %742
  %v744 = vsel %vm119, %v580, 0.0
  %745 = vadd.xlane.f32.xlu0 %v744
  %v746 = vpop.xlane.xlu0 %745
  %v747 = vsel %vm119, %v581, 0.0
  %748 = vadd.xlane.f32.xlu0 %v747
  %v749 = vpop.xlane.xlu0 %748
  %v750 = vsel %vm119, %v582, 0.0
  %751 = vadd.xlane.f32.xlu0 %v750
  %v752 = vpop.xlane.xlu0 %751
  %v753 = vsel %vm119, %v583, 0.0
  %754 = vadd.xlane.f32.xlu0 %v753
  %v755 = vpop.xlane.xlu0 %754
  %v756 = vsel %vm119, %v584, 0.0
  %757 = vadd.xlane.f32.xlu0 %v756
  %v758 = vpop.xlane.xlu0 %757
  %v759 = vsel %vm119, %v585, 0.0
  %760 = vadd.xlane.f32.xlu0 %v759
  %v761 = vpop.xlane.xlu0 %760
  %v762 = vsel %vm119, %v586, 0.0
  %763 = vadd.xlane.f32.xlu0 %v762
  %v764 = vpop.xlane.xlu0 %763
  %v765 = vsel %vm119, %v587, 0.0
  %766 = vadd.xlane.f32.xlu0 %v765
  %v767 = vpop.xlane.xlu0 %766
  %v768 = vsel %vm119, %v588, 0.0
  %769 = vadd.xlane.f32.xlu0 %v768
  %v770 = vpop.xlane.xlu0 %769
  %v771 = vsel %vm119, %v589, 0.0
  %772 = vadd.xlane.f32.xlu0 %v771
  %v773 = vpop.xlane.xlu0 %772
  %v774 = vsel %vm119, %v590, 0.0
  %775 = vadd.xlane.f32.xlu0 %v774
  %v776 = vpop.xlane.xlu0 %775
  %v777 = vsel %vm119, %v591, 0.0
  %778 = vadd.xlane.f32.xlu0 %v777
  %v779 = vpop.xlane.xlu0 %778
  %v780 = vsel %vm119, %v592, 0.0
  %781 = vadd.xlane.f32.xlu0 %v780
  %v782 = vpop.xlane.xlu0 %781
  %v783 = vsel %vm119, %v593, 0.0
  %784 = vadd.xlane.f32.xlu0 %v783
  %v785 = vpop.xlane.xlu0 %784
  %v786 = vsel %vm119, %v594, 0.0
  %787 = vadd.xlane.f32.xlu0 %v786
  %v788 = vpop.xlane.xlu0 %787
  %v789 = vsel %vm119, %v595, 0.0
  %790 = vadd.xlane.f32.xlu0 %v789
  %v791 = vpop.xlane.xlu0 %790
  %v792 = vsel %vm119, %v596, 0.0
  %793 = vadd.xlane.f32.xlu0 %v792
  %v794 = vpop.xlane.xlu0 %793
  %v795 = vsel %vm119, %v597, 0.0
  %796 = vadd.xlane.f32.xlu0 %v795
  %v797 = vpop.xlane.xlu0 %796
  %v798 = vsel %vm119, %v598, 0.0
  %799 = vadd.xlane.f32.xlu0 %v798
  %v800 = vpop.xlane.xlu0 %799
  %v801 = vsel %vm119, %v599, 0.0
  %802 = vadd.xlane.f32.xlu0 %v801
  %v803 = vpop.xlane.xlu0 %802
  %v804 = vsel %vm119, %v600, 0.0
  %805 = vadd.xlane.f32.xlu0 %v804
  %v806 = vpop.xlane.xlu0 %805
  %v807 = vsel %vm119, %v601, 0.0
  %808 = vadd.xlane.f32.xlu0 %v807
  %v809 = vpop.xlane.xlu0 %808
  %v810 = vsel %vm119, %v602, 0.0
  %811 = vadd.xlane.f32.xlu0 %v810
  %v812 = vpop.xlane.xlu0 %811
  %v813 = vsel %vm119, %v603, 0.0
  %814 = vadd.xlane.f32.xlu0 %v813
  %v815 = vpop.xlane.xlu0 %814
  %v816 = vsel %vm119, %v604, 0.0
  %817 = vadd.xlane.f32.xlu0 %v816
  %v818 = vpop.xlane.xlu0 %817
  %v819 = vsel %vm119, %v605, 0.0
  %820 = vadd.xlane.f32.xlu0 %v819
  %v821 = vpop.xlane.xlu0 %820
  %v822 = vsel %vm119, %v606, 0.0
  %823 = vadd.xlane.f32.xlu0 %v822
  %v824 = vpop.xlane.xlu0 %823
  %v825 = vsel %vm119, %v607, 0.0
  %826 = vadd.xlane.f32.xlu0 %v825
  %v827 = vpop.xlane.xlu0 %826
  %v828 = vsel %vm119, %v608, 0.0
  %829 = vadd.xlane.f32.xlu0 %v828
  %v830 = vpop.xlane.xlu0 %829
  %v831 = vsel %vm119, %v609, 0.0
  %832 = vadd.xlane.f32.xlu0 %v831
  %v833 = vpop.xlane.xlu0 %832
  %v834 = vsel %vm119, %v610, 0.0
  %835 = vadd.xlane.f32.xlu0 %v834
  %v836 = vpop.xlane.xlu0 %835
  %v837 = vsel %vm119, %v611, 0.0
  %838 = vadd.xlane.f32.xlu0 %v837
  %v839 = vpop.xlane.xlu0 %838
  %v840 = vsel %vm119, %v612, 0.0
  %841 = vadd.xlane.f32.xlu0 %v840
  %v842 = vpop.xlane.xlu0 %841
  %v843 = vsel %vm119, %v613, 0.0
  %844 = vadd.xlane.f32.xlu0 %v843
  %v845 = vpop.xlane.xlu0 %844
  %v846 = vsel %vm119, %v614, 0.0
  %847 = vadd.xlane.f32.xlu0 %v846
  %v848 = vpop.xlane.xlu0 %847
  %v849 = vsel %vm119, %v615, 0.0
  %850 = vadd.xlane.f32.xlu0 %v849
  %v851 = vpop.xlane.xlu0 %850
  %v852 = vsel %vm119, %v616, 0.0
  %853 = vadd.xlane.f32.xlu0 %v852
  %v854 = vpop.xlane.xlu0 %853
  %v855 = vsel %vm119, %v617, 0.0
  %856 = vadd.xlane.f32.xlu0 %v855
  %v857 = vpop.xlane.xlu0 %856
  %v858 = vsel %vm119, %v618, 0.0
  %859 = vadd.xlane.f32.xlu0 %v858
  %v860 = vpop.xlane.xlu0 %859
  %v861 = vsel %vm119, %v619, 0.0
  %862 = vadd.xlane.f32.xlu0 %v861
  %v863 = vpop.xlane.xlu0 %862
  %v864 = vsel %vm119, %v620, 0.0
  %865 = vadd.xlane.f32.xlu0 %v864
  %v866 = vpop.xlane.xlu0 %865
  %v867 = vsel %vm119, %v621, 0.0
  %868 = vadd.xlane.f32.xlu0 %v867
  %v869 = vpop.xlane.xlu0 %868
  %v870 = vsel %vm119, %v622, 0.0
  %871 = vadd.xlane.f32.xlu0 %v870
  %v872 = vpop.xlane.xlu0 %871
  %v873 = vsel %vm119, %v623, 0.0
  %874 = vadd.xlane.f32.xlu0 %v873
  %v875 = vpop.xlane.xlu0 %874
  %v876 = vsel %vm119, %v624, 0.0
  %877 = vadd.xlane.f32.xlu0 %v876
  %v878 = vpop.xlane.xlu0 %877
  %v879 = vsel %vm119, %v625, 0.0
  %880 = vadd.xlane.f32.xlu0 %v879
  %v881 = vpop.xlane.xlu0 %880
  %v882 = vsel %vm119, %v626, 0.0
  %883 = vadd.xlane.f32.xlu0 %v882
  %v884 = vpop.xlane.xlu0 %883
  %v885 = vsel %vm119, %v627, 0.0
  %886 = vadd.xlane.f32.xlu0 %v885
  %v887 = vpop.xlane.xlu0 %886
  %v888 = vsel %vm119, %v628, 0.0
  %889 = vadd.xlane.f32.xlu0 %v888
  %v890 = vpop.xlane.xlu0 %889
  %v891 = vsel %vm119, %v629, 0.0
  %892 = vadd.xlane.f32.xlu0 %v891
  %v893 = vpop.xlane.xlu0 %892
  %v894 = vsel %vm119, %v630, 0.0
  %895 = vadd.xlane.f32.xlu0 %v894
  %v896 = vpop.xlane.xlu0 %895
  %v897 = vsel %vm119, %v631, 0.0
  %898 = vadd.xlane.f32.xlu0 %v897
  %v899 = vpop.xlane.xlu0 %898
  %v900 = vsel %vm119, %v632, 0.0
  %901 = vadd.xlane.f32.xlu0 %v900
  %v902 = vpop.xlane.xlu0 %901
  %v903 = vsel %vm119, %v633, 0.0
  %904 = vadd.xlane.f32.xlu0 %v903
  %v905 = vpop.xlane.xlu0 %904
  %v906 = vsel %vm119, %v634, 0.0
  %907 = vadd.xlane.f32.xlu0 %v906
  %v908 = vpop.xlane.xlu0 %907
  %v909 = vsel %vm119, %v635, 0.0
  %910 = vadd.xlane.f32.xlu0 %v909
  %v911 = vpop.xlane.xlu0 %910
  %v912 = vsel %vm119, %v636, 0.0
  %913 = vadd.xlane.f32.xlu0 %v912
  %v914 = vpop.xlane.xlu0 %913
  %v915 = vsel %vm119, %v637, 0.0
  %916 = vadd.xlane.f32.xlu0 %v915
  %v917 = vpop.xlane.xlu0 %916
  %v918 = vsel %vm119, %v638, 0.0
  %919 = vadd.xlane.f32.xlu0 %v918
  %v920 = vpop.xlane.xlu0 %919
  %v921 = vsel %vm119, %v639, 0.0
  %922 = vadd.xlane.f32.xlu0 %v921
  %v923 = vpop.xlane.xlu0 %922
  %v924 = vsel %vm119, %v640, 0.0
  %925 = vadd.xlane.f32.xlu0 %v924
  %v926 = vpop.xlane.xlu0 %925
  %v927 = vsel %vm119, %v641, 0.0
  %928 = vadd.xlane.f32.xlu0 %v927
  %v929 = vpop.xlane.xlu0 %928
  %v930 = vsel %vm119, %v642, 0.0
  %931 = vadd.xlane.f32.xlu0 %v930
  %v932 = vpop.xlane.xlu0 %931
  %v933 = vsel %vm119, %v643, 0.0
  %934 = vadd.xlane.f32.xlu0 %v933
  %v935 = vpop.xlane.xlu0 %934
  %v936 = vsel %vm119, %v644, 0.0
  %937 = vadd.xlane.f32.xlu0 %v936
  %v938 = vpop.xlane.xlu0 %937
  %v939 = vsel %vm119, %v645, 0.0
  %940 = vadd.xlane.f32.xlu0 %v939
  %v941 = vpop.xlane.xlu0 %940
  %v942 = vsel %vm119, %v646, 0.0
  %943 = vadd.xlane.f32.xlu0 %v942
  %v944 = vpop.xlane.xlu0 %943
  %v945 = vsel %vm119, %v647, 0.0
  %946 = vadd.xlane.f32.xlu0 %v945
  %v947 = vpop.xlane.xlu0 %946
  %v948 = vsel %vm119, %v648, 0.0
  %949 = vadd.xlane.f32.xlu0 %v948
  %v950 = vpop.xlane.xlu0 %949
  %v951 = vsel %vm119, %v649, 0.0
  %952 = vadd.xlane.f32.xlu0 %v951
  %v953 = vpop.xlane.xlu0 %952
  %v954 = vsel %vm119, %v650, 0.0
  %955 = vadd.xlane.f32.xlu0 %v954
  %v956 = vpop.xlane.xlu0 %955
  %v957 = vsel %vm119, %v651, 0.0
  %958 = vadd.xlane.f32.xlu0 %v957
  %v959 = vpop.xlane.xlu0 %958
  %v960 = vsel %vm119, %v652, 0.0
  %961 = vadd.xlane.f32.xlu0 %v960
  %v962 = vpop.xlane.xlu0 %961
  %v963 = vsel %vm119, %v653, 0.0
  %964 = vadd.xlane.f32.xlu0 %v963
  %v965 = vpop.xlane.xlu0 %964
  %v966 = vsel %vm119, %v654, 0.0
  %967 = vadd.xlane.f32.xlu0 %v966
  %v968 = vpop.xlane.xlu0 %967
  %v969 = vsel %vm119, %v655, 0.0
  %970 = vadd.xlane.f32.xlu0 %v969
  %v971 = vpop.xlane.xlu0 %970
  %v972 = vsel %vm119, %v656, 0.0
  %973 = vadd.xlane.f32.xlu0 %v972
  %v974 = vpop.xlane.xlu0 %973
  %v975 = vsel %vm119, %v657, 0.0
  %976 = vadd.xlane.f32.xlu0 %v975
  %v977 = vpop.xlane.xlu0 %976
  %v978 = vsel %vm119, %v658, 0.0
  %979 = vadd.xlane.f32.xlu0 %v978
  %v980 = vpop.xlane.xlu0 %979
  %v981 = vsel %vm119, %v659, 0.0
  %982 = vadd.xlane.f32.xlu0 %v981
  %v983 = vpop.xlane.xlu0 %982
  %v984 = vadd.f32 %v662, 0.0
  %v985 = vadd.f32 %v665, 0.0
  %v986 = vadd.f32 %v668, 0.0
  %v987 = vadd.f32 %v671, 0.0
  %v988 = vadd.f32 %v674, 0.0
  %v989 = vadd.f32 %v677, 0.0
  %v990 = vadd.f32 %v680, 0.0
  %v991 = vadd.f32 %v683, 0.0
  %v992 = vadd.f32 %v686, 0.0
  %v993 = vadd.f32 %v689, 0.0
  %v994 = vadd.f32 %v692, 0.0
  %v995 = vadd.f32 %v695, 0.0
  %v996 = vadd.f32 %v698, 0.0
  %v997 = vadd.f32 %v701, 0.0
  %v998 = vadd.f32 %v704, 0.0
  %v999 = vadd.f32 %v707, 0.0
  %v1000 = vadd.f32 %v710, 0.0
  %v1001 = vadd.f32 %v713, 0.0
  %v1002 = vadd.f32 %v716, 0.0
  %v1003 = vadd.f32 %v719, 0.0
  %v1004 = vadd.f32 %v722, 0.0
  %v1005 = vadd.f32 %v725, 0.0
  %v1006 = vadd.f32 %v728, 0.0
  %v1007 = vadd.f32 %v731, 0.0
  %v1008 = vadd.f32 %v734, 0.0
  %v1009 = vadd.f32 %v737, 0.0
  %v1010 = vadd.f32 %v740, 0.0
  %v1011 = vadd.f32 %v743, 0.0
  %v1012 = vadd.f32 %v746, 0.0
  %v1013 = vadd.f32 %v749, 0.0
  %v1014 = vadd.f32 %v752, 0.0
  %v1015 = vadd.f32 %v755, 0.0
  %v1016 = vadd.f32 %v758, 0.0
  %v1017 = vadd.f32 %v761, 0.0
  %v1018 = vadd.f32 %v764, 0.0
  %v1019 = vadd.f32 %v767, 0.0
  %v1020 = vadd.f32 %v770, 0.0
  %v1021 = vadd.f32 %v773, 0.0
  %v1022 = vadd.f32 %v776, 0.0
  %v1023 = vadd.f32 %v779, 0.0
  %v1024 = vadd.f32 %v782, 0.0
  %v1025 = vadd.f32 %v785, 0.0
  %v1026 = vadd.f32 %v788, 0.0
  %v1027 = vadd.f32 %v791, 0.0
  %v1028 = vadd.f32 %v794, 0.0
  %v1029 = vadd.f32 %v797, 0.0
  %v1030 = vadd.f32 %v800, 0.0
  %v1031 = vadd.f32 %v803, 0.0
  %v1032 = vadd.f32 %v806, 0.0
  %v1033 = vadd.f32 %v809, 0.0
  %v1034 = vadd.f32 %v812, 0.0
  %v1035 = vadd.f32 %v815, 0.0
  %v1036 = vadd.f32 %v818, 0.0
  %v1037 = vadd.f32 %v821, 0.0
  %v1038 = vadd.f32 %v824, 0.0
  %v1039 = vadd.f32 %v827, 0.0
  %v1040 = vadd.f32 %v830, 0.0
  %v1041 = vadd.f32 %v833, 0.0
  %v1042 = vadd.f32 %v836, 0.0
  %v1043 = vadd.f32 %v839, 0.0
  %v1044 = vadd.f32 %v842, 0.0
  %v1045 = vadd.f32 %v845, 0.0
  %v1046 = vadd.f32 %v848, 0.0
  %v1047 = vadd.f32 %v851, 0.0
  %v1048 = vadd.f32 %v854, 0.0
  %v1049 = vadd.f32 %v857, 0.0
  %v1050 = vadd.f32 %v860, 0.0
  %v1051 = vadd.f32 %v863, 0.0
  %v1052 = vadd.f32 %v866, 0.0
  %v1053 = vadd.f32 %v869, 0.0
  %v1054 = vadd.f32 %v872, 0.0
  %v1055 = vadd.f32 %v875, 0.0
  %v1056 = vadd.f32 %v878, 0.0
  %v1057 = vadd.f32 %v881, 0.0
  %v1058 = vadd.f32 %v884, 0.0
  %v1059 = vadd.f32 %v887, 0.0
  %v1060 = vadd.f32 %v890, 0.0
  %v1061 = vadd.f32 %v893, 0.0
  %v1062 = vadd.f32 %v896, 0.0
  %v1063 = vadd.f32 %v899, 0.0
  %v1064 = vadd.f32 %v902, 0.0
  %v1065 = vadd.f32 %v905, 0.0
  %v1066 = vadd.f32 %v908, 0.0
  %v1067 = vadd.f32 %v911, 0.0
  %v1068 = vadd.f32 %v914, 0.0
  %v1069 = vadd.f32 %v917, 0.0
  %v1070 = vadd.f32 %v920, 0.0
  %v1071 = vadd.f32 %v923, 0.0
  %v1072 = vadd.f32 %v926, 0.0
  %v1073 = vadd.f32 %v929, 0.0
  %v1074 = vadd.f32 %v932, 0.0
  %v1075 = vadd.f32 %v935, 0.0
  %v1076 = vadd.f32 %v938, 0.0
  %v1077 = vadd.f32 %v941, 0.0
  %v1078 = vadd.f32 %v944, 0.0
  %v1079 = vadd.f32 %v947, 0.0
  %v1080 = vadd.f32 %v950, 0.0
  %v1081 = vadd.f32 %v953, 0.0
  %v1082 = vadd.f32 %v956, 0.0
  %v1083 = vadd.f32 %v959, 0.0
  %v1084 = vadd.f32 %v962, 0.0
  %v1085 = vadd.f32 %v965, 0.0
  %v1086 = vadd.f32 %v968, 0.0
  %v1087 = vadd.f32 %v971, 0.0
  %v1088 = vadd.f32 %v974, 0.0
  %v1089 = vadd.f32 %v977, 0.0
  %v1090 = vadd.f32 %v980, 0.0
  %v1091 = vadd.f32 %v983, 0.0
  %v1092 = vmul.f32 %v444, 0.020408163
  %v1093 = vmul.f32 %v445, 0.020408163
  %v1094 = vmul.f32 %v446, 0.020408163
  %v1095 = vmul.f32 %v447, 0.020408163
  %v1096 = vmul.f32 %v448, 0.020408163
  %v1097 = vmul.f32 %v449, 0.020408163
  %v1098 = vmul.f32 %v450, 0.020408163
  %v1099 = vmul.f32 %v451, 0.020408163
  %v1100 = vmul.f32 %v452, 0.020408163
  %v1101 = vmul.f32 %v453, 0.020408163
  %v1102 = vmul.f32 %v454, 0.020408163
  %v1103 = vmul.f32 %v455, 0.020408163
  %v1104 = vmul.f32 %v456, 0.020408163
  %v1105 = vmul.f32 %v457, 0.020408163
  %v1106 = vmul.f32 %v458, 0.020408163
  %v1107 = vmul.f32 %v459, 0.020408163
  %v1108 = vmul.f32 %v460, 0.020408163
  %v1109 = vmul.f32 %v461, 0.020408163
  %v1110 = vmul.f32 %v462, 0.020408163
  %v1111 = vmul.f32 %v463, 0.020408163
  %v1112 = vmul.f32 %v464, 0.020408163
  %v1113 = vmul.f32 %v465, 0.020408163
  %v1114 = vmul.f32 %v466, 0.020408163
  %v1115 = vmul.f32 %v467, 0.020408163
  %v1116 = vmul.f32 %v468, 0.020408163
  %v1117 = vmul.f32 %v469, 0.020408163
  %v1118 = vmul.f32 %v470, 0.020408163
  %v1119 = vmul.f32 %v471, 0.020408163
  %v1120 = vmul.f32 %v472, 0.020408163
  %v1121 = vmul.f32 %v473, 0.020408163
  %v1122 = vmul.f32 %v474, 0.020408163
  %v1123 = vmul.f32 %v475, 0.020408163
  %v1124 = vmul.f32 %v476, 0.020408163
  %v1125 = vmul.f32 %v477, 0.020408163
  %v1126 = vmul.f32 %v478, 0.020408163
  %v1127 = vmul.f32 %v479, 0.020408163
  %v1128 = vmul.f32 %v480, 0.020408163
  %v1129 = vmul.f32 %v481, 0.020408163
  %v1130 = vmul.f32 %v482, 0.020408163
  %v1131 = vmul.f32 %v483, 0.020408163
  %v1132 = vmul.f32 %v484, 0.020408163
  %v1133 = vmul.f32 %v485, 0.020408163
  %v1134 = vmul.f32 %v486, 0.020408163
  %v1135 = vmul.f32 %v487, 0.020408163
  %v1136 = vmul.f32 %v488, 0.020408163
  %v1137 = vmul.f32 %v489, 0.020408163
  %v1138 = vmul.f32 %v490, 0.020408163
  %v1139 = vmul.f32 %v491, 0.020408163
  %v1140 = vmul.f32 %v492, 0.020408163
  %v1141 = vmul.f32 %v493, 0.020408163
  %v1142 = vmul.f32 %v494, 0.020408163
  %v1143 = vmul.f32 %v495, 0.020408163
  %v1144 = vmul.f32 %v496, 0.020408163
  %v1145 = vmul.f32 %v497, 0.020408163
  %v1146 = vmul.f32 %v498, 0.020408163
  %v1147 = vmul.f32 %v499, 0.020408163
  %v1148 = vmul.f32 %v500, 0.020408163
  %v1149 = vmul.f32 %v501, 0.020408163
  %v1150 = vmul.f32 %v502, 0.020408163
  %v1151 = vmul.f32 %v503, 0.020408163
  %v1152 = vmul.f32 %v504, 0.020408163
  %v1153 = vmul.f32 %v505, 0.020408163
  %v1154 = vmul.f32 %v506, 0.020408163
  %v1155 = vmul.f32 %v507, 0.020408163
  %v1156 = vmul.f32 %v508, 0.020408163
  %v1157 = vmul.f32 %v509, 0.020408163
  %v1158 = vmul.f32 %v510, 0.020408163
  %v1159 = vmul.f32 %v511, 0.020408163
  %v1160 = vmul.f32 %v512, 0.020408163
  %v1161 = vmul.f32 %v513, 0.020408163
  %v1162 = vmul.f32 %v514, 0.020408163
  %v1163 = vmul.f32 %v515, 0.020408163
  %v1164 = vmul.f32 %v516, 0.020408163
  %v1165 = vmul.f32 %v517, 0.020408163
  %v1166 = vmul.f32 %v518, 0.020408163
  %v1167 = vmul.f32 %v519, 0.020408163
  %v1168 = vmul.f32 %v520, 0.020408163
  %v1169 = vmul.f32 %v521, 0.020408163
  %v1170 = vmul.f32 %v522, 0.020408163
  %v1171 = vmul.f32 %v523, 0.020408163
  %v1172 = vmul.f32 %v524, 0.020408163
  %v1173 = vmul.f32 %v525, 0.020408163
  %v1174 = vmul.f32 %v526, 0.020408163
  %v1175 = vmul.f32 %v527, 0.020408163
  %v1176 = vmul.f32 %v528, 0.020408163
  %v1177 = vmul.f32 %v529, 0.020408163
  %v1178 = vmul.f32 %v530, 0.020408163
  %v1179 = vmul.f32 %v531, 0.020408163
  %v1180 = vmul.f32 %v532, 0.020408163
  %v1181 = vmul.f32 %v533, 0.020408163
  %v1182 = vmul.f32 %v534, 0.020408163
  %v1183 = vmul.f32 %v535, 0.020408163
  %v1184 = vmul.f32 %v536, 0.020408163
  %v1185 = vmul.f32 %v537, 0.020408163
  %v1186 = vmul.f32 %v538, 0.020408163
  %v1187 = vmul.f32 %v539, 0.020408163
  %v1188 = vmul.f32 %v540, 0.020408163
  %v1189 = vmul.f32 %v541, 0.020408163
  %v1190 = vmul.f32 %v542, 0.020408163
  %v1191 = vmul.f32 %v543, 0.020408163
  %v1192 = vmul.f32 %v544, 0.020408163
  %v1193 = vmul.f32 %v545, 0.020408163
  %v1194 = vmul.f32 %v546, 0.020408163
  %v1195 = vmul.f32 %v547, 0.020408163
  %v1196 = vmul.f32 %v548, 0.020408163
  %v1197 = vmul.f32 %v549, 0.020408163
  %v1198 = vmul.f32 %v550, 0.020408163
  %v1199 = vmul.f32 %v551, 0.020408163
  %v1200 = vmul.f32 %v984, 0.020408163
  %v1201 = vmul.f32 %v985, 0.020408163
  %v1202 = vmul.f32 %v986, 0.020408163
  %v1203 = vmul.f32 %v987, 0.020408163
  %v1204 = vmul.f32 %v988, 0.020408163
  %v1205 = vmul.f32 %v989, 0.020408163
  %v1206 = vmul.f32 %v990, 0.020408163
  %v1207 = vmul.f32 %v991, 0.020408163
  %v1208 = vmul.f32 %v992, 0.020408163
  %v1209 = vmul.f32 %v993, 0.020408163
  %v1210 = vmul.f32 %v994, 0.020408163
  %v1211 = vmul.f32 %v995, 0.020408163
  %v1212 = vmul.f32 %v996, 0.020408163
  %v1213 = vmul.f32 %v997, 0.020408163
  %v1214 = vmul.f32 %v998, 0.020408163
  %v1215 = vmul.f32 %v999, 0.020408163
  %v1216 = vmul.f32 %v1000, 0.020408163
  %v1217 = vmul.f32 %v1001, 0.020408163
  %v1218 = vmul.f32 %v1002, 0.020408163
  %v1219 = vmul.f32 %v1003, 0.020408163
  %v1220 = vmul.f32 %v1004, 0.020408163
  %v1221 = vmul.f32 %v1005, 0.020408163
  %v1222 = vmul.f32 %v1006, 0.020408163
  %v1223 = vmul.f32 %v1007, 0.020408163
  %v1224 = vmul.f32 %v1008, 0.020408163
  %v1225 = vmul.f32 %v1009, 0.020408163
  %v1226 = vmul.f32 %v1010, 0.020408163
  %v1227 = vmul.f32 %v1011, 0.020408163
  %v1228 = vmul.f32 %v1012, 0.020408163
  %v1229 = vmul.f32 %v1013, 0.020408163
  %v1230 = vmul.f32 %v1014, 0.020408163
  %v1231 = vmul.f32 %v1015, 0.020408163
  %v1232 = vmul.f32 %v1016, 0.020408163
  %v1233 = vmul.f32 %v1017, 0.020408163
  %v1234 = vmul.f32 %v1018, 0.020408163
  %v1235 = vmul.f32 %v1019, 0.020408163
  %v1236 = vmul.f32 %v1020, 0.020408163
  %v1237 = vmul.f32 %v1021, 0.020408163
  %v1238 = vmul.f32 %v1022, 0.020408163
  %v1239 = vmul.f32 %v1023, 0.020408163
  %v1240 = vmul.f32 %v1024, 0.020408163
  %v1241 = vmul.f32 %v1025, 0.020408163
  %v1242 = vmul.f32 %v1026, 0.020408163
  %v1243 = vmul.f32 %v1027, 0.020408163
  %v1244 = vmul.f32 %v1028, 0.020408163
  %v1245 = vmul.f32 %v1029, 0.020408163
  %v1246 = vmul.f32 %v1030, 0.020408163
  %v1247 = vmul.f32 %v1031, 0.020408163
  %v1248 = vmul.f32 %v1032, 0.020408163
  %v1249 = vmul.f32 %v1033, 0.020408163
  %v1250 = vmul.f32 %v1034, 0.020408163
  %v1251 = vmul.f32 %v1035, 0.020408163
  %v1252 = vmul.f32 %v1036, 0.020408163
  %v1253 = vmul.f32 %v1037, 0.020408163
  %v1254 = vmul.f32 %v1038, 0.020408163
  %v1255 = vmul.f32 %v1039, 0.020408163
  %v1256 = vmul.f32 %v1040, 0.020408163
  %v1257 = vmul.f32 %v1041, 0.020408163
  %v1258 = vmul.f32 %v1042, 0.020408163
  %v1259 = vmul.f32 %v1043, 0.020408163
  %v1260 = vmul.f32 %v1044, 0.020408163
  %v1261 = vmul.f32 %v1045, 0.020408163
  %v1262 = vmul.f32 %v1046, 0.020408163
  %v1263 = vmul.f32 %v1047, 0.020408163
  %v1264 = vmul.f32 %v1048, 0.020408163
  %v1265 = vmul.f32 %v1049, 0.020408163
  %v1266 = vmul.f32 %v1050, 0.020408163
  %v1267 = vmul.f32 %v1051, 0.020408163
  %v1268 = vmul.f32 %v1052, 0.020408163
  %v1269 = vmul.f32 %v1053, 0.020408163
  %v1270 = vmul.f32 %v1054, 0.020408163
  %v1271 = vmul.f32 %v1055, 0.020408163
  %v1272 = vmul.f32 %v1056, 0.020408163
  %v1273 = vmul.f32 %v1057, 0.020408163
  %v1274 = vmul.f32 %v1058, 0.020408163
  %v1275 = vmul.f32 %v1059, 0.020408163
  %v1276 = vmul.f32 %v1060, 0.020408163
  %v1277 = vmul.f32 %v1061, 0.020408163
  %v1278 = vmul.f32 %v1062, 0.020408163
  %v1279 = vmul.f32 %v1063, 0.020408163
  %v1280 = vmul.f32 %v1064, 0.020408163
  %v1281 = vmul.f32 %v1065, 0.020408163
  %v1282 = vmul.f32 %v1066, 0.020408163
  %v1283 = vmul.f32 %v1067, 0.020408163
  %v1284 = vmul.f32 %v1068, 0.020408163
  %v1285 = vmul.f32 %v1069, 0.020408163
  %v1286 = vmul.f32 %v1070, 0.020408163
  %v1287 = vmul.f32 %v1071, 0.020408163
  %v1288 = vmul.f32 %v1072, 0.020408163
  %v1289 = vmul.f32 %v1073, 0.020408163
  %v1290 = vmul.f32 %v1074, 0.020408163
  %v1291 = vmul.f32 %v1075, 0.020408163
  %v1292 = vmul.f32 %v1076, 0.020408163
  %v1293 = vmul.f32 %v1077, 0.020408163
  %v1294 = vmul.f32 %v1078, 0.020408163
  %v1295 = vmul.f32 %v1079, 0.020408163
  %v1296 = vmul.f32 %v1080, 0.020408163
  %v1297 = vmul.f32 %v1081, 0.020408163
  %v1298 = vmul.f32 %v1082, 0.020408163
  %v1299 = vmul.f32 %v1083, 0.020408163
  %v1300 = vmul.f32 %v1084, 0.020408163
  %v1301 = vmul.f32 %v1085, 0.020408163
  %v1302 = vmul.f32 %v1086, 0.020408163
  %v1303 = vmul.f32 %v1087, 0.020408163
  %v1304 = vmul.f32 %v1088, 0.020408163
  %v1305 = vmul.f32 %v1089, 0.020408163
  %v1306 = vmul.f32 %v1090, 0.020408163
  %v1307 = vmul.f32 %v1091, 0.020408163
  %v1308 = vmul.f32 %v1092, %v1092
  %v1309 = vmul.f32 %v1093, %v1093
  %v1310 = vmul.f32 %v1094, %v1094
  %v1311 = vmul.f32 %v1095, %v1095
  %v1312 = vmul.f32 %v1096, %v1096
  %v1313 = vmul.f32 %v1097, %v1097
  %v1314 = vmul.f32 %v1098, %v1098
  %v1315 = vmul.f32 %v1099, %v1099
  %v1316 = vmul.f32 %v1100, %v1100
  %v1317 = vmul.f32 %v1101, %v1101
  %v1318 = vmul.f32 %v1102, %v1102
  %v1319 = vmul.f32 %v1103, %v1103
  %v1320 = vmul.f32 %v1104, %v1104
  %v1321 = vmul.f32 %v1105, %v1105
  %v1322 = vmul.f32 %v1106, %v1106
  %v1323 = vmul.f32 %v1107, %v1107
  %v1324 = vmul.f32 %v1108, %v1108
  %v1325 = vmul.f32 %v1109, %v1109
  %v1326 = vmul.f32 %v1110, %v1110
  %v1327 = vmul.f32 %v1111, %v1111
  %v1328 = vmul.f32 %v1112, %v1112
  %v1329 = vmul.f32 %v1113, %v1113
  %v1330 = vmul.f32 %v1114, %v1114
  %v1331 = vmul.f32 %v1115, %v1115
  %v1332 = vmul.f32 %v1116, %v1116
  %v1333 = vmul.f32 %v1117, %v1117
  %v1334 = vmul.f32 %v1118, %v1118
  %v1335 = vmul.f32 %v1119, %v1119
  %v1336 = vmul.f32 %v1120, %v1120
  %v1337 = vmul.f32 %v1121, %v1121
  %v1338 = vmul.f32 %v1122, %v1122
  %v1339 = vmul.f32 %v1123, %v1123
  %v1340 = vmul.f32 %v1124, %v1124
  %v1341 = vmul.f32 %v1125, %v1125
  %v1342 = vmul.f32 %v1126, %v1126
  %v1343 = vmul.f32 %v1127, %v1127
  %v1344 = vmul.f32 %v1128, %v1128
  %v1345 = vmul.f32 %v1129, %v1129
  %v1346 = vmul.f32 %v1130, %v1130
  %v1347 = vmul.f32 %v1131, %v1131
  %v1348 = vmul.f32 %v1132, %v1132
  %v1349 = vmul.f32 %v1133, %v1133
  %v1350 = vmul.f32 %v1134, %v1134
  %v1351 = vmul.f32 %v1135, %v1135
  %v1352 = vmul.f32 %v1136, %v1136
  %v1353 = vmul.f32 %v1137, %v1137
  %v1354 = vmul.f32 %v1138, %v1138
  %v1355 = vmul.f32 %v1139, %v1139
  %v1356 = vmul.f32 %v1140, %v1140
  %v1357 = vmul.f32 %v1141, %v1141
  %v1358 = vmul.f32 %v1142, %v1142
  %v1359 = vmul.f32 %v1143, %v1143
  %v1360 = vmul.f32 %v1144, %v1144
  %v1361 = vmul.f32 %v1145, %v1145
  %v1362 = vmul.f32 %v1146, %v1146
  %v1363 = vmul.f32 %v1147, %v1147
  %v1364 = vmul.f32 %v1148, %v1148
  %v1365 = vmul.f32 %v1149, %v1149
  %v1366 = vmul.f32 %v1150, %v1150
  %v1367 = vmul.f32 %v1151, %v1151
  %v1368 = vmul.f32 %v1152, %v1152
  %v1369 = vmul.f32 %v1153, %v1153
  %v1370 = vmul.f32 %v1154, %v1154
  %v1371 = vmul.f32 %v1155, %v1155
  %v1372 = vmul.f32 %v1156, %v1156
  %v1373 = vmul.f32 %v1157, %v1157
  %v1374 = vmul.f32 %v1158, %v1158
  %v1375 = vmul.f32 %v1159, %v1159
  %v1376 = vmul.f32 %v1160, %v1160
  %v1377 = vmul.f32 %v1161, %v1161
  %v1378 = vmul.f32 %v1162, %v1162
  %v1379 = vmul.f32 %v1163, %v1163
  %v1380 = vmul.f32 %v1164, %v1164
  %v1381 = vmul.f32 %v1165, %v1165
  %v1382 = vmul.f32 %v1166, %v1166
  %v1383 = vmul.f32 %v1167, %v1167
  %v1384 = vmul.f32 %v1168, %v1168
  %v1385 = vmul.f32 %v1169, %v1169
  %v1386 = vmul.f32 %v1170, %v1170
  %v1387 = vmul.f32 %v1171, %v1171
  %v1388 = vmul.f32 %v1172, %v1172
  %v1389 = vmul.f32 %v1173, %v1173
  %v1390 = vmul.f32 %v1174, %v1174
  %v1391 = vmul.f32 %v1175, %v1175
  %v1392 = vmul.f32 %v1176, %v1176
  %v1393 = vmul.f32 %v1177, %v1177
  %v1394 = vmul.f32 %v1178, %v1178
  %v1395 = vmul.f32 %v1179, %v1179
  %v1396 = vmul.f32 %v1180, %v1180
  %v1397 = vmul.f32 %v1181, %v1181
  %v1398 = vmul.f32 %v1182, %v1182
  %v1399 = vmul.f32 %v1183, %v1183
  %v1400 = vmul.f32 %v1184, %v1184
  %v1401 = vmul.f32 %v1185, %v1185
  %v1402 = vmul.f32 %v1186, %v1186
  %v1403 = vmul.f32 %v1187, %v1187
  %v1404 = vmul.f32 %v1188, %v1188
  %v1405 = vmul.f32 %v1189, %v1189
  %v1406 = vmul.f32 %v1190, %v1190
  %v1407 = vmul.f32 %v1191, %v1191
  %v1408 = vmul.f32 %v1192, %v1192
  %v1409 = vmul.f32 %v1193, %v1193
  %v1410 = vmul.f32 %v1194, %v1194
  %v1411 = vmul.f32 %v1195, %v1195
  %v1412 = vmul.f32 %v1196, %v1196
  %v1413 = vmul.f32 %v1197, %v1197
  %v1414 = vmul.f32 %v1198, %v1198
  %v1415 = vmul.f32 %v1199, %v1199
  %v1416 = vsub.f32 %v1200, %v1308
  %v1417 = vsub.f32 %v1201, %v1309
  %v1418 = vsub.f32 %v1202, %v1310
  %v1419 = vsub.f32 %v1203, %v1311
  %v1420 = vsub.f32 %v1204, %v1312
  %v1421 = vsub.f32 %v1205, %v1313
  %v1422 = vsub.f32 %v1206, %v1314
  %v1423 = vsub.f32 %v1207, %v1315
  %v1424 = vsub.f32 %v1208, %v1316
  %v1425 = vsub.f32 %v1209, %v1317
  %v1426 = vsub.f32 %v1210, %v1318
  %v1427 = vsub.f32 %v1211, %v1319
  %v1428 = vsub.f32 %v1212, %v1320
  %v1429 = vsub.f32 %v1213, %v1321
  %v1430 = vsub.f32 %v1214, %v1322
  %v1431 = vsub.f32 %v1215, %v1323
  %v1432 = vsub.f32 %v1216, %v1324
  %v1433 = vsub.f32 %v1217, %v1325
  %v1434 = vsub.f32 %v1218, %v1326
  %v1435 = vsub.f32 %v1219, %v1327
  %v1436 = vsub.f32 %v1220, %v1328
  %v1437 = vsub.f32 %v1221, %v1329
  %v1438 = vsub.f32 %v1222, %v1330
  %v1439 = vsub.f32 %v1223, %v1331
  %v1440 = vsub.f32 %v1224, %v1332
  %v1441 = vsub.f32 %v1225, %v1333
  %v1442 = vsub.f32 %v1226, %v1334
  %v1443 = vsub.f32 %v1227, %v1335
  %v1444 = vsub.f32 %v1228, %v1336
  %v1445 = vsub.f32 %v1229, %v1337
  %v1446 = vsub.f32 %v1230, %v1338
  %v1447 = vsub.f32 %v1231, %v1339
  %v1448 = vsub.f32 %v1232, %v1340
  %v1449 = vsub.f32 %v1233, %v1341
  %v1450 = vsub.f32 %v1234, %v1342
  %v1451 = vsub.f32 %v1235, %v1343
  %v1452 = vsub.f32 %v1236, %v1344
  %v1453 = vsub.f32 %v1237, %v1345
  %v1454 = vsub.f32 %v1238, %v1346
  %v1455 = vsub.f32 %v1239, %v1347
  %v1456 = vsub.f32 %v1240, %v1348
  %v1457 = vsub.f32 %v1241, %v1349
  %v1458 = vsub.f32 %v1242, %v1350
  %v1459 = vsub.f32 %v1243, %v1351
  %v1460 = vsub.f32 %v1244, %v1352
  %v1461 = vsub.f32 %v1245, %v1353
  %v1462 = vsub.f32 %v1246, %v1354
  %v1463 = vsub.f32 %v1247, %v1355
  %v1464 = vsub.f32 %v1248, %v1356
  %v1465 = vsub.f32 %v1249, %v1357
  %v1466 = vsub.f32 %v1250, %v1358
  %v1467 = vsub.f32 %v1251, %v1359
  %v1468 = vsub.f32 %v1252, %v1360
  %v1469 = vsub.f32 %v1253, %v1361
  %v1470 = vsub.f32 %v1254, %v1362
  %v1471 = vsub.f32 %v1255, %v1363
  %v1472 = vsub.f32 %v1256, %v1364
  %v1473 = vsub.f32 %v1257, %v1365
  %v1474 = vsub.f32 %v1258, %v1366
  %v1475 = vsub.f32 %v1259, %v1367
  %v1476 = vsub.f32 %v1260, %v1368
  %v1477 = vsub.f32 %v1261, %v1369
  %v1478 = vsub.f32 %v1262, %v1370
  %v1479 = vsub.f32 %v1263, %v1371
  %v1480 = vsub.f32 %v1264, %v1372
  %v1481 = vsub.f32 %v1265, %v1373
  %v1482 = vsub.f32 %v1266, %v1374
  %v1483 = vsub.f32 %v1267, %v1375
  %v1484 = vsub.f32 %v1268, %v1376
  %v1485 = vsub.f32 %v1269, %v1377
  %v1486 = vsub.f32 %v1270, %v1378
  %v1487 = vsub.f32 %v1271, %v1379
  %v1488 = vsub.f32 %v1272, %v1380
  %v1489 = vsub.f32 %v1273, %v1381
  %v1490 = vsub.f32 %v1274, %v1382
  %v1491 = vsub.f32 %v1275, %v1383
  %v1492 = vsub.f32 %v1276, %v1384
  %v1493 = vsub.f32 %v1277, %v1385
  %v1494 = vsub.f32 %v1278, %v1386
  %v1495 = vsub.f32 %v1279, %v1387
  %v1496 = vsub.f32 %v1280, %v1388
  %v1497 = vsub.f32 %v1281, %v1389
  %v1498 = vsub.f32 %v1282, %v1390
  %v1499 = vsub.f32 %v1283, %v1391
  %v1500 = vsub.f32 %v1284, %v1392
  %v1501 = vsub.f32 %v1285, %v1393
  %v1502 = vsub.f32 %v1286, %v1394
  %v1503 = vsub.f32 %v1287, %v1395
  %v1504 = vsub.f32 %v1288, %v1396
  %v1505 = vsub.f32 %v1289, %v1397
  %v1506 = vsub.f32 %v1290, %v1398
  %v1507 = vsub.f32 %v1291, %v1399
  %v1508 = vsub.f32 %v1292, %v1400
  %v1509 = vsub.f32 %v1293, %v1401
  %v1510 = vsub.f32 %v1294, %v1402
  %v1511 = vsub.f32 %v1295, %v1403
  %v1512 = vsub.f32 %v1296, %v1404
  %v1513 = vsub.f32 %v1297, %v1405
  %v1514 = vsub.f32 %v1298, %v1406
  %v1515 = vsub.f32 %v1299, %v1407
  %v1516 = vsub.f32 %v1300, %v1408
  %v1517 = vsub.f32 %v1301, %v1409
  %v1518 = vsub.f32 %v1302, %v1410
  %v1519 = vsub.f32 %v1303, %v1411
  %v1520 = vsub.f32 %v1304, %v1412
  %v1521 = vsub.f32 %v1305, %v1413
  %v1522 = vsub.f32 %v1306, %v1414
  %v1523 = vsub.f32 %v1307, %v1415
  %v1524 = vmax.f32 %v1416, 0.0
  %v1525 = vmax.f32 %v1417, 0.0
  %v1526 = vmax.f32 %v1418, 0.0
  %v1527 = vmax.f32 %v1419, 0.0
  %v1528 = vmax.f32 %v1420, 0.0
  %v1529 = vmax.f32 %v1421, 0.0
  %v1530 = vmax.f32 %v1422, 0.0
  %v1531 = vmax.f32 %v1423, 0.0
  %v1532 = vmax.f32 %v1424, 0.0
  %v1533 = vmax.f32 %v1425, 0.0
  %v1534 = vmax.f32 %v1426, 0.0
  %v1535 = vmax.f32 %v1427, 0.0
  %v1536 = vmax.f32 %v1428, 0.0
  %v1537 = vmax.f32 %v1429, 0.0
  %v1538 = vmax.f32 %v1430, 0.0
  %v1539 = vmax.f32 %v1431, 0.0
  %v1540 = vmax.f32 %v1432, 0.0
  %v1541 = vmax.f32 %v1433, 0.0
  %v1542 = vmax.f32 %v1434, 0.0
  %v1543 = vmax.f32 %v1435, 0.0
  %v1544 = vmax.f32 %v1436, 0.0
  %v1545 = vmax.f32 %v1437, 0.0
  %v1546 = vmax.f32 %v1438, 0.0
  %v1547 = vmax.f32 %v1439, 0.0
  %v1548 = vmax.f32 %v1440, 0.0
  %v1549 = vmax.f32 %v1441, 0.0
  %v1550 = vmax.f32 %v1442, 0.0
  %v1551 = vmax.f32 %v1443, 0.0
  %v1552 = vmax.f32 %v1444, 0.0
  %v1553 = vmax.f32 %v1445, 0.0
  %v1554 = vmax.f32 %v1446, 0.0
  %v1555 = vmax.f32 %v1447, 0.0
  %v1556 = vmax.f32 %v1448, 0.0
  %v1557 = vmax.f32 %v1449, 0.0
  %v1558 = vmax.f32 %v1450, 0.0
  %v1559 = vmax.f32 %v1451, 0.0
  %v1560 = vmax.f32 %v1452, 0.0
  %v1561 = vmax.f32 %v1453, 0.0
  %v1562 = vmax.f32 %v1454, 0.0
  %v1563 = vmax.f32 %v1455, 0.0
  %v1564 = vmax.f32 %v1456, 0.0
  %v1565 = vmax.f32 %v1457, 0.0
  %v1566 = vmax.f32 %v1458, 0.0
  %v1567 = vmax.f32 %v1459, 0.0
  %v1568 = vmax.f32 %v1460, 0.0
  %v1569 = vmax.f32 %v1461, 0.0
  %v1570 = vmax.f32 %v1462, 0.0
  %v1571 = vmax.f32 %v1463, 0.0
  %v1572 = vmax.f32 %v1464, 0.0
  %v1573 = vmax.f32 %v1465, 0.0
  %v1574 = vmax.f32 %v1466, 0.0
  %v1575 = vmax.f32 %v1467, 0.0
  %v1576 = vmax.f32 %v1468, 0.0
  %v1577 = vmax.f32 %v1469, 0.0
  %v1578 = vmax.f32 %v1470, 0.0
  %v1579 = vmax.f32 %v1471, 0.0
  %v1580 = vmax.f32 %v1472, 0.0
  %v1581 = vmax.f32 %v1473, 0.0
  %v1582 = vmax.f32 %v1474, 0.0
  %v1583 = vmax.f32 %v1475, 0.0
  %v1584 = vmax.f32 %v1476, 0.0
  %v1585 = vmax.f32 %v1477, 0.0
  %v1586 = vmax.f32 %v1478, 0.0
  %v1587 = vmax.f32 %v1479, 0.0
  %v1588 = vmax.f32 %v1480, 0.0
  %v1589 = vmax.f32 %v1481, 0.0
  %v1590 = vmax.f32 %v1482, 0.0
  %v1591 = vmax.f32 %v1483, 0.0
  %v1592 = vmax.f32 %v1484, 0.0
  %v1593 = vmax.f32 %v1485, 0.0
  %v1594 = vmax.f32 %v1486, 0.0
  %v1595 = vmax.f32 %v1487, 0.0
  %v1596 = vmax.f32 %v1488, 0.0
  %v1597 = vmax.f32 %v1489, 0.0
  %v1598 = vmax.f32 %v1490, 0.0
  %v1599 = vmax.f32 %v1491, 0.0
  %v1600 = vmax.f32 %v1492, 0.0
  %v1601 = vmax.f32 %v1493, 0.0
  %v1602 = vmax.f32 %v1494, 0.0
  %v1603 = vmax.f32 %v1495, 0.0
  %v1604 = vmax.f32 %v1496, 0.0
  %v1605 = vmax.f32 %v1497, 0.0
  %v1606 = vmax.f32 %v1498, 0.0
  %v1607 = vmax.f32 %v1499, 0.0
  %v1608 = vmax.f32 %v1500, 0.0
  %v1609 = vmax.f32 %v1501, 0.0
  %v1610 = vmax.f32 %v1502, 0.0
  %v1611 = vmax.f32 %v1503, 0.0
  %v1612 = vmax.f32 %v1504, 0.0
  %v1613 = vmax.f32 %v1505, 0.0
  %v1614 = vmax.f32 %v1506, 0.0
  %v1615 = vmax.f32 %v1507, 0.0
  %v1616 = vmax.f32 %v1508, 0.0
  %v1617 = vmax.f32 %v1509, 0.0
  %v1618 = vmax.f32 %v1510, 0.0
  %v1619 = vmax.f32 %v1511, 0.0
  %v1620 = vmax.f32 %v1512, 0.0
  %v1621 = vmax.f32 %v1513, 0.0
  %v1622 = vmax.f32 %v1514, 0.0
  %v1623 = vmax.f32 %v1515, 0.0
  %v1624 = vmax.f32 %v1516, 0.0
  %v1625 = vmax.f32 %v1517, 0.0
  %v1626 = vmax.f32 %v1518, 0.0
  %v1627 = vmax.f32 %v1519, 0.0
  %v1628 = vmax.f32 %v1520, 0.0
  %v1629 = vmax.f32 %v1521, 0.0
  %v1630 = vmax.f32 %v1522, 0.0
  %v1631 = vmax.f32 %v1523, 0.0
  %v1632 = vadd.f32 %v1524, 1e-05
  %v1633 = vadd.f32 %v1525, 1e-05
  %v1634 = vadd.f32 %v1526, 1e-05
  %v1635 = vadd.f32 %v1527, 1e-05
  %v1636 = vadd.f32 %v1528, 1e-05
  %v1637 = vadd.f32 %v1529, 1e-05
  %v1638 = vadd.f32 %v1530, 1e-05
  %v1639 = vadd.f32 %v1531, 1e-05
  %v1640 = vadd.f32 %v1532, 1e-05
  %v1641 = vadd.f32 %v1533, 1e-05
  %v1642 = vadd.f32 %v1534, 1e-05
  %v1643 = vadd.f32 %v1535, 1e-05
  %v1644 = vadd.f32 %v1536, 1e-05
  %v1645 = vadd.f32 %v1537, 1e-05
  %v1646 = vadd.f32 %v1538, 1e-05
  %v1647 = vadd.f32 %v1539, 1e-05
  %v1648 = vadd.f32 %v1540, 1e-05
  %v1649 = vadd.f32 %v1541, 1e-05
  %v1650 = vadd.f32 %v1542, 1e-05
  %v1651 = vadd.f32 %v1543, 1e-05
  %v1652 = vadd.f32 %v1544, 1e-05
  %v1653 = vadd.f32 %v1545, 1e-05
  %v1654 = vadd.f32 %v1546, 1e-05
  %v1655 = vadd.f32 %v1547, 1e-05
  %v1656 = vadd.f32 %v1548, 1e-05
  %v1657 = vadd.f32 %v1549, 1e-05
  %v1658 = vadd.f32 %v1550, 1e-05
  %v1659 = vadd.f32 %v1551, 1e-05
  %v1660 = vadd.f32 %v1552, 1e-05
  %v1661 = vadd.f32 %v1553, 1e-05
  %v1662 = vadd.f32 %v1554, 1e-05
  %v1663 = vadd.f32 %v1555, 1e-05
  %v1664 = vadd.f32 %v1556, 1e-05
  %v1665 = vadd.f32 %v1557, 1e-05
  %v1666 = vadd.f32 %v1558, 1e-05
  %v1667 = vadd.f32 %v1559, 1e-05
  %v1668 = vadd.f32 %v1560, 1e-05
  %v1669 = vadd.f32 %v1561, 1e-05
  %v1670 = vadd.f32 %v1562, 1e-05
  %v1671 = vadd.f32 %v1563, 1e-05
  %v1672 = vadd.f32 %v1564, 1e-05
  %v1673 = vadd.f32 %v1565, 1e-05
  %v1674 = vadd.f32 %v1566, 1e-05
  %v1675 = vadd.f32 %v1567, 1e-05
  %v1676 = vadd.f32 %v1568, 1e-05
  %v1677 = vadd.f32 %v1569, 1e-05
  %v1678 = vadd.f32 %v1570, 1e-05
  %v1679 = vadd.f32 %v1571, 1e-05
  %v1680 = vadd.f32 %v1572, 1e-05
  %v1681 = vadd.f32 %v1573, 1e-05
  %v1682 = vadd.f32 %v1574, 1e-05
  %v1683 = vadd.f32 %v1575, 1e-05
  %v1684 = vadd.f32 %v1576, 1e-05
  %v1685 = vadd.f32 %v1577, 1e-05
  %v1686 = vadd.f32 %v1578, 1e-05
  %v1687 = vadd.f32 %v1579, 1e-05
  %v1688 = vadd.f32 %v1580, 1e-05
  %v1689 = vadd.f32 %v1581, 1e-05
  %v1690 = vadd.f32 %v1582, 1e-05
  %v1691 = vadd.f32 %v1583, 1e-05
  %v1692 = vadd.f32 %v1584, 1e-05
  %v1693 = vadd.f32 %v1585, 1e-05
  %v1694 = vadd.f32 %v1586, 1e-05
  %v1695 = vadd.f32 %v1587, 1e-05
  %v1696 = vadd.f32 %v1588, 1e-05
  %v1697 = vadd.f32 %v1589, 1e-05
  %v1698 = vadd.f32 %v1590, 1e-05
  %v1699 = vadd.f32 %v1591, 1e-05
  %v1700 = vadd.f32 %v1592, 1e-05
  %v1701 = vadd.f32 %v1593, 1e-05
  %v1702 = vadd.f32 %v1594, 1e-05
  %v1703 = vadd.f32 %v1595, 1e-05
  %v1704 = vadd.f32 %v1596, 1e-05
  %v1705 = vadd.f32 %v1597, 1e-05
  %v1706 = vadd.f32 %v1598, 1e-05
  %v1707 = vadd.f32 %v1599, 1e-05
  %v1708 = vadd.f32 %v1600, 1e-05
  %v1709 = vadd.f32 %v1601, 1e-05
  %v1710 = vadd.f32 %v1602, 1e-05
  %v1711 = vadd.f32 %v1603, 1e-05
  %v1712 = vadd.f32 %v1604, 1e-05
  %v1713 = vadd.f32 %v1605, 1e-05
  %v1714 = vadd.f32 %v1606, 1e-05
  %v1715 = vadd.f32 %v1607, 1e-05
  %v1716 = vadd.f32 %v1608, 1e-05
  %v1717 = vadd.f32 %v1609, 1e-05
  %v1718 = vadd.f32 %v1610, 1e-05
  %v1719 = vadd.f32 %v1611, 1e-05
  %v1720 = vadd.f32 %v1612, 1e-05
  %v1721 = vadd.f32 %v1613, 1e-05
  %v1722 = vadd.f32 %v1614, 1e-05
  %v1723 = vadd.f32 %v1615, 1e-05
  %v1724 = vadd.f32 %v1616, 1e-05
  %v1725 = vadd.f32 %v1617, 1e-05
  %v1726 = vadd.f32 %v1618, 1e-05
  %v1727 = vadd.f32 %v1619, 1e-05
  %v1728 = vadd.f32 %v1620, 1e-05
  %v1729 = vadd.f32 %v1621, 1e-05
  %v1730 = vadd.f32 %v1622, 1e-05
  %v1731 = vadd.f32 %v1623, 1e-05
  %v1732 = vadd.f32 %v1624, 1e-05
  %v1733 = vadd.f32 %v1625, 1e-05
  %v1734 = vadd.f32 %v1626, 1e-05
  %v1735 = vadd.f32 %v1627, 1e-05
  %v1736 = vadd.f32 %v1628, 1e-05
  %v1737 = vadd.f32 %v1629, 1e-05
  %v1738 = vadd.f32 %v1630, 1e-05
  %v1739 = vadd.f32 %v1631, 1e-05
  %v1740 = vrsqrt.pop %v1632
  %v1741 = vmul.f32 %v1740, %v1632
  %v1742 = vmul.f32 %v1741, %v1740
  %v1743 = vmul.f32 0.5, %v1742
  %v1744 = vsub.f32 1.5, %v1743
  %v1745 = vmul.f32 %v1740, %v1744
  %vm1746 = vweird.f32 %v1632
  %vm1747 = vweird.f32 %v1740
  %vm1748 = vmor %vm1746, %vm1747
  %v1749 = vsel %vm1748, %v1740, %v1745
  %v1750 = vrsqrt.pop %v1633
  %v1751 = vmul.f32 %v1750, %v1633
  %v1752 = vmul.f32 %v1751, %v1750
  %v1753 = vmul.f32 0.5, %v1752
  %v1754 = vsub.f32 1.5, %v1753
  %v1755 = vmul.f32 %v1750, %v1754
  %vm1756 = vweird.f32 %v1633
  %vm1757 = vweird.f32 %v1750
  %vm1758 = vmor %vm1756, %vm1757
  %v1759 = vsel %vm1758, %v1750, %v1755
  %v1760 = vrsqrt.pop %v1634
  %v1761 = vmul.f32 %v1760, %v1634
  %v1762 = vmul.f32 %v1761, %v1760
  %v1763 = vmul.f32 0.5, %v1762
  %v1764 = vsub.f32 1.5, %v1763
  %v1765 = vmul.f32 %v1760, %v1764
  %vm1766 = vweird.f32 %v1634
  %vm1767 = vweird.f32 %v1760
  %vm1768 = vmor %vm1766, %vm1767
  %v1769 = vsel %vm1768, %v1760, %v1765
  %v1770 = vrsqrt.pop %v1635
  %v1771 = vmul.f32 %v1770, %v1635
  %v1772 = vmul.f32 %v1771, %v1770
  %v1773 = vmul.f32 0.5, %v1772
  %v1774 = vsub.f32 1.5, %v1773
  %v1775 = vmul.f32 %v1770, %v1774
  %vm1776 = vweird.f32 %v1635
  %vm1777 = vweird.f32 %v1770
  %vm1778 = vmor %vm1776, %vm1777
  %v1779 = vsel %vm1778, %v1770, %v1775
  %v1780 = vrsqrt.pop %v1636
  %v1781 = vmul.f32 %v1780, %v1636
  %v1782 = vmul.f32 %v1781, %v1780
  %v1783 = vmul.f32 0.5, %v1782
  %v1784 = vsub.f32 1.5, %v1783
  %v1785 = vmul.f32 %v1780, %v1784
  %vm1786 = vweird.f32 %v1636
  %vm1787 = vweird.f32 %v1780
  %vm1788 = vmor %vm1786, %vm1787
  %v1789 = vsel %vm1788, %v1780, %v1785
  %v1790 = vrsqrt.pop %v1637
  %v1791 = vmul.f32 %v1790, %v1637
  %v1792 = vmul.f32 %v1791, %v1790
  %v1793 = vmul.f32 0.5, %v1792
  %v1794 = vsub.f32 1.5, %v1793
  %v1795 = vmul.f32 %v1790, %v1794
  %vm1796 = vweird.f32 %v1637
  %vm1797 = vweird.f32 %v1790
  %vm1798 = vmor %vm1796, %vm1797
  %v1799 = vsel %vm1798, %v1790, %v1795
  %v1800 = vrsqrt.pop %v1638
  %v1801 = vmul.f32 %v1800, %v1638
  %v1802 = vmul.f32 %v1801, %v1800
  %v1803 = vmul.f32 0.5, %v1802
  %v1804 = vsub.f32 1.5, %v1803
  %v1805 = vmul.f32 %v1800, %v1804
  %vm1806 = vweird.f32 %v1638
  %vm1807 = vweird.f32 %v1800
  %vm1808 = vmor %vm1806, %vm1807
  %v1809 = vsel %vm1808, %v1800, %v1805
  %v1810 = vrsqrt.pop %v1639
  %v1811 = vmul.f32 %v1810, %v1639
  %v1812 = vmul.f32 %v1811, %v1810
  %v1813 = vmul.f32 0.5, %v1812
  %v1814 = vsub.f32 1.5, %v1813
  %v1815 = vmul.f32 %v1810, %v1814
  %vm1816 = vweird.f32 %v1639
  %vm1817 = vweird.f32 %v1810
  %vm1818 = vmor %vm1816, %vm1817
  %v1819 = vsel %vm1818, %v1810, %v1815
  %v1820 = vrsqrt.pop %v1640
  %v1821 = vmul.f32 %v1820, %v1640
  %v1822 = vmul.f32 %v1821, %v1820
  %v1823 = vmul.f32 0.5, %v1822
  %v1824 = vsub.f32 1.5, %v1823
  %v1825 = vmul.f32 %v1820, %v1824
  %vm1826 = vweird.f32 %v1640
  %vm1827 = vweird.f32 %v1820
  %vm1828 = vmor %vm1826, %vm1827
  %v1829 = vsel %vm1828, %v1820, %v1825
  %v1830 = vrsqrt.pop %v1641
  %v1831 = vmul.f32 %v1830, %v1641
  %v1832 = vmul.f32 %v1831, %v1830
  %v1833 = vmul.f32 0.5, %v1832
  %v1834 = vsub.f32 1.5, %v1833
  %v1835 = vmul.f32 %v1830, %v1834
  %vm1836 = vweird.f32 %v1641
  %vm1837 = vweird.f32 %v1830
  %vm1838 = vmor %vm1836, %vm1837
  %v1839 = vsel %vm1838, %v1830, %v1835
  %v1840 = vrsqrt.pop %v1642
  %v1841 = vmul.f32 %v1840, %v1642
  %v1842 = vmul.f32 %v1841, %v1840
  %v1843 = vmul.f32 0.5, %v1842
  %v1844 = vsub.f32 1.5, %v1843
  %v1845 = vmul.f32 %v1840, %v1844
  %vm1846 = vweird.f32 %v1642
  %vm1847 = vweird.f32 %v1840
  %vm1848 = vmor %vm1846, %vm1847
  %v1849 = vsel %vm1848, %v1840, %v1845
  %v1850 = vrsqrt.pop %v1643
  %v1851 = vmul.f32 %v1850, %v1643
  %v1852 = vmul.f32 %v1851, %v1850
  %v1853 = vmul.f32 0.5, %v1852
  %v1854 = vsub.f32 1.5, %v1853
  %v1855 = vmul.f32 %v1850, %v1854
  %vm1856 = vweird.f32 %v1643
  %vm1857 = vweird.f32 %v1850
  %vm1858 = vmor %vm1856, %vm1857
  %v1859 = vsel %vm1858, %v1850, %v1855
  %v1860 = vrsqrt.pop %v1644
  %v1861 = vmul.f32 %v1860, %v1644
  %v1862 = vmul.f32 %v1861, %v1860
  %v1863 = vmul.f32 0.5, %v1862
  %v1864 = vsub.f32 1.5, %v1863
  %v1865 = vmul.f32 %v1860, %v1864
  %vm1866 = vweird.f32 %v1644
  %vm1867 = vweird.f32 %v1860
  %vm1868 = vmor %vm1866, %vm1867
  %v1869 = vsel %vm1868, %v1860, %v1865
  %v1870 = vrsqrt.pop %v1645
  %v1871 = vmul.f32 %v1870, %v1645
  %v1872 = vmul.f32 %v1871, %v1870
  %v1873 = vmul.f32 0.5, %v1872
  %v1874 = vsub.f32 1.5, %v1873
  %v1875 = vmul.f32 %v1870, %v1874
  %vm1876 = vweird.f32 %v1645
  %vm1877 = vweird.f32 %v1870
  %vm1878 = vmor %vm1876, %vm1877
  %v1879 = vsel %vm1878, %v1870, %v1875
  %v1880 = vrsqrt.pop %v1646
  %v1881 = vmul.f32 %v1880, %v1646
  %v1882 = vmul.f32 %v1881, %v1880
  %v1883 = vmul.f32 0.5, %v1882
  %v1884 = vsub.f32 1.5, %v1883
  %v1885 = vmul.f32 %v1880, %v1884
  %vm1886 = vweird.f32 %v1646
  %vm1887 = vweird.f32 %v1880
  %vm1888 = vmor %vm1886, %vm1887
  %v1889 = vsel %vm1888, %v1880, %v1885
  %v1890 = vrsqrt.pop %v1647
  %v1891 = vmul.f32 %v1890, %v1647
  %v1892 = vmul.f32 %v1891, %v1890
  %v1893 = vmul.f32 0.5, %v1892
  %v1894 = vsub.f32 1.5, %v1893
  %v1895 = vmul.f32 %v1890, %v1894
  %vm1896 = vweird.f32 %v1647
  %vm1897 = vweird.f32 %v1890
  %vm1898 = vmor %vm1896, %vm1897
  %v1899 = vsel %vm1898, %v1890, %v1895
  %v1900 = vrsqrt.pop %v1648
  %v1901 = vmul.f32 %v1900, %v1648
  %v1902 = vmul.f32 %v1901, %v1900
  %v1903 = vmul.f32 0.5, %v1902
  %v1904 = vsub.f32 1.5, %v1903
  %v1905 = vmul.f32 %v1900, %v1904
  %vm1906 = vweird.f32 %v1648
  %vm1907 = vweird.f32 %v1900
  %vm1908 = vmor %vm1906, %vm1907
  %v1909 = vsel %vm1908, %v1900, %v1905
  %v1910 = vrsqrt.pop %v1649
  %v1911 = vmul.f32 %v1910, %v1649
  %v1912 = vmul.f32 %v1911, %v1910
  %v1913 = vmul.f32 0.5, %v1912
  %v1914 = vsub.f32 1.5, %v1913
  %v1915 = vmul.f32 %v1910, %v1914
  %vm1916 = vweird.f32 %v1649
  %vm1917 = vweird.f32 %v1910
  %vm1918 = vmor %vm1916, %vm1917
  %v1919 = vsel %vm1918, %v1910, %v1915
  %v1920 = vrsqrt.pop %v1650
  %v1921 = vmul.f32 %v1920, %v1650
  %v1922 = vmul.f32 %v1921, %v1920
  %v1923 = vmul.f32 0.5, %v1922
  %v1924 = vsub.f32 1.5, %v1923
  %v1925 = vmul.f32 %v1920, %v1924
  %vm1926 = vweird.f32 %v1650
  %vm1927 = vweird.f32 %v1920
  %vm1928 = vmor %vm1926, %vm1927
  %v1929 = vsel %vm1928, %v1920, %v1925
  %v1930 = vrsqrt.pop %v1651
  %v1931 = vmul.f32 %v1930, %v1651
  %v1932 = vmul.f32 %v1931, %v1930
  %v1933 = vmul.f32 0.5, %v1932
  %v1934 = vsub.f32 1.5, %v1933
  %v1935 = vmul.f32 %v1930, %v1934
  %vm1936 = vweird.f32 %v1651
  %vm1937 = vweird.f32 %v1930
  %vm1938 = vmor %vm1936, %vm1937
  %v1939 = vsel %vm1938, %v1930, %v1935
  %v1940 = vrsqrt.pop %v1652
  %v1941 = vmul.f32 %v1940, %v1652
  %v1942 = vmul.f32 %v1941, %v1940
  %v1943 = vmul.f32 0.5, %v1942
  %v1944 = vsub.f32 1.5, %v1943
  %v1945 = vmul.f32 %v1940, %v1944
  %vm1946 = vweird.f32 %v1652
  %vm1947 = vweird.f32 %v1940
  %vm1948 = vmor %vm1946, %vm1947
  %v1949 = vsel %vm1948, %v1940, %v1945
  %v1950 = vrsqrt.pop %v1653
  %v1951 = vmul.f32 %v1950, %v1653
  %v1952 = vmul.f32 %v1951, %v1950
  %v1953 = vmul.f32 0.5, %v1952
  %v1954 = vsub.f32 1.5, %v1953
  %v1955 = vmul.f32 %v1950, %v1954
  %vm1956 = vweird.f32 %v1653
  %vm1957 = vweird.f32 %v1950
  %vm1958 = vmor %vm1956, %vm1957
  %v1959 = vsel %vm1958, %v1950, %v1955
  %v1960 = vrsqrt.pop %v1654
  %v1961 = vmul.f32 %v1960, %v1654
  %v1962 = vmul.f32 %v1961, %v1960
  %v1963 = vmul.f32 0.5, %v1962
  %v1964 = vsub.f32 1.5, %v1963
  %v1965 = vmul.f32 %v1960, %v1964
  %vm1966 = vweird.f32 %v1654
  %vm1967 = vweird.f32 %v1960
  %vm1968 = vmor %vm1966, %vm1967
  %v1969 = vsel %vm1968, %v1960, %v1965
  %v1970 = vrsqrt.pop %v1655
  %v1971 = vmul.f32 %v1970, %v1655
  %v1972 = vmul.f32 %v1971, %v1970
  %v1973 = vmul.f32 0.5, %v1972
  %v1974 = vsub.f32 1.5, %v1973
  %v1975 = vmul.f32 %v1970, %v1974
  %vm1976 = vweird.f32 %v1655
  %vm1977 = vweird.f32 %v1970
  %vm1978 = vmor %vm1976, %vm1977
  %v1979 = vsel %vm1978, %v1970, %v1975
  %v1980 = vrsqrt.pop %v1656
  %v1981 = vmul.f32 %v1980, %v1656
  %v1982 = vmul.f32 %v1981, %v1980
  %v1983 = vmul.f32 0.5, %v1982
  %v1984 = vsub.f32 1.5, %v1983
  %v1985 = vmul.f32 %v1980, %v1984
  %vm1986 = vweird.f32 %v1656
  %vm1987 = vweird.f32 %v1980
  %vm1988 = vmor %vm1986, %vm1987
  %v1989 = vsel %vm1988, %v1980, %v1985
  %v1990 = vrsqrt.pop %v1657
  %v1991 = vmul.f32 %v1990, %v1657
  %v1992 = vmul.f32 %v1991, %v1990
  %v1993 = vmul.f32 0.5, %v1992
  %v1994 = vsub.f32 1.5, %v1993
  %v1995 = vmul.f32 %v1990, %v1994
  %vm1996 = vweird.f32 %v1657
  %vm1997 = vweird.f32 %v1990
  %vm1998 = vmor %vm1996, %vm1997
  %v1999 = vsel %vm1998, %v1990, %v1995
  %v2000 = vrsqrt.pop %v1658
  %v2001 = vmul.f32 %v2000, %v1658
  %v2002 = vmul.f32 %v2001, %v2000
  %v2003 = vmul.f32 0.5, %v2002
  %v2004 = vsub.f32 1.5, %v2003
  %v2005 = vmul.f32 %v2000, %v2004
  %vm2006 = vweird.f32 %v1658
  %vm2007 = vweird.f32 %v2000
  %vm2008 = vmor %vm2006, %vm2007
  %v2009 = vsel %vm2008, %v2000, %v2005
  %v2010 = vrsqrt.pop %v1659
  %v2011 = vmul.f32 %v2010, %v1659
  %v2012 = vmul.f32 %v2011, %v2010
  %v2013 = vmul.f32 0.5, %v2012
  %v2014 = vsub.f32 1.5, %v2013
  %v2015 = vmul.f32 %v2010, %v2014
  %vm2016 = vweird.f32 %v1659
  %vm2017 = vweird.f32 %v2010
  %vm2018 = vmor %vm2016, %vm2017
  %v2019 = vsel %vm2018, %v2010, %v2015
  %v2020 = vrsqrt.pop %v1660
  %v2021 = vmul.f32 %v2020, %v1660
  %v2022 = vmul.f32 %v2021, %v2020
  %v2023 = vmul.f32 0.5, %v2022
  %v2024 = vsub.f32 1.5, %v2023
  %v2025 = vmul.f32 %v2020, %v2024
  %vm2026 = vweird.f32 %v1660
  %vm2027 = vweird.f32 %v2020
  %vm2028 = vmor %vm2026, %vm2027
  %v2029 = vsel %vm2028, %v2020, %v2025
  %v2030 = vrsqrt.pop %v1661
  %v2031 = vmul.f32 %v2030, %v1661
  %v2032 = vmul.f32 %v2031, %v2030
  %v2033 = vmul.f32 0.5, %v2032
  %v2034 = vsub.f32 1.5, %v2033
  %v2035 = vmul.f32 %v2030, %v2034
  %vm2036 = vweird.f32 %v1661
  %vm2037 = vweird.f32 %v2030
  %vm2038 = vmor %vm2036, %vm2037
  %v2039 = vsel %vm2038, %v2030, %v2035
  %v2040 = vrsqrt.pop %v1662
  %v2041 = vmul.f32 %v2040, %v1662
  %v2042 = vmul.f32 %v2041, %v2040
  %v2043 = vmul.f32 0.5, %v2042
  %v2044 = vsub.f32 1.5, %v2043
  %v2045 = vmul.f32 %v2040, %v2044
  %vm2046 = vweird.f32 %v1662
  %vm2047 = vweird.f32 %v2040
  %vm2048 = vmor %vm2046, %vm2047
  %v2049 = vsel %vm2048, %v2040, %v2045
  %v2050 = vrsqrt.pop %v1663
  %v2051 = vmul.f32 %v2050, %v1663
  %v2052 = vmul.f32 %v2051, %v2050
  %v2053 = vmul.f32 0.5, %v2052
  %v2054 = vsub.f32 1.5, %v2053
  %v2055 = vmul.f32 %v2050, %v2054
  %vm2056 = vweird.f32 %v1663
  %vm2057 = vweird.f32 %v2050
  %vm2058 = vmor %vm2056, %vm2057
  %v2059 = vsel %vm2058, %v2050, %v2055
  %v2060 = vrsqrt.pop %v1664
  %v2061 = vmul.f32 %v2060, %v1664
  %v2062 = vmul.f32 %v2061, %v2060
  %v2063 = vmul.f32 0.5, %v2062
  %v2064 = vsub.f32 1.5, %v2063
  %v2065 = vmul.f32 %v2060, %v2064
  %vm2066 = vweird.f32 %v1664
  %vm2067 = vweird.f32 %v2060
  %vm2068 = vmor %vm2066, %vm2067
  %v2069 = vsel %vm2068, %v2060, %v2065
  %v2070 = vrsqrt.pop %v1665
  %v2071 = vmul.f32 %v2070, %v1665
  %v2072 = vmul.f32 %v2071, %v2070
  %v2073 = vmul.f32 0.5, %v2072
  %v2074 = vsub.f32 1.5, %v2073
  %v2075 = vmul.f32 %v2070, %v2074
  %vm2076 = vweird.f32 %v1665
  %vm2077 = vweird.f32 %v2070
  %vm2078 = vmor %vm2076, %vm2077
  %v2079 = vsel %vm2078, %v2070, %v2075
  %v2080 = vrsqrt.pop %v1666
  %v2081 = vmul.f32 %v2080, %v1666
  %v2082 = vmul.f32 %v2081, %v2080
  %v2083 = vmul.f32 0.5, %v2082
  %v2084 = vsub.f32 1.5, %v2083
  %v2085 = vmul.f32 %v2080, %v2084
  %vm2086 = vweird.f32 %v1666
  %vm2087 = vweird.f32 %v2080
  %vm2088 = vmor %vm2086, %vm2087
  %v2089 = vsel %vm2088, %v2080, %v2085
  %v2090 = vrsqrt.pop %v1667
  %v2091 = vmul.f32 %v2090, %v1667
  %v2092 = vmul.f32 %v2091, %v2090
  %v2093 = vmul.f32 0.5, %v2092
  %v2094 = vsub.f32 1.5, %v2093
  %v2095 = vmul.f32 %v2090, %v2094
  %vm2096 = vweird.f32 %v1667
  %vm2097 = vweird.f32 %v2090
  %vm2098 = vmor %vm2096, %vm2097
  %v2099 = vsel %vm2098, %v2090, %v2095
  %v2100 = vrsqrt.pop %v1668
  %v2101 = vmul.f32 %v2100, %v1668
  %v2102 = vmul.f32 %v2101, %v2100
  %v2103 = vmul.f32 0.5, %v2102
  %v2104 = vsub.f32 1.5, %v2103
  %v2105 = vmul.f32 %v2100, %v2104
  %vm2106 = vweird.f32 %v1668
  %vm2107 = vweird.f32 %v2100
  %vm2108 = vmor %vm2106, %vm2107
  %v2109 = vsel %vm2108, %v2100, %v2105
  %v2110 = vrsqrt.pop %v1669
  %v2111 = vmul.f32 %v2110, %v1669
  %v2112 = vmul.f32 %v2111, %v2110
  %v2113 = vmul.f32 0.5, %v2112
  %v2114 = vsub.f32 1.5, %v2113
  %v2115 = vmul.f32 %v2110, %v2114
  %vm2116 = vweird.f32 %v1669
  %vm2117 = vweird.f32 %v2110
  %vm2118 = vmor %vm2116, %vm2117
  %v2119 = vsel %vm2118, %v2110, %v2115
  %v2120 = vrsqrt.pop %v1670
  %v2121 = vmul.f32 %v2120, %v1670
  %v2122 = vmul.f32 %v2121, %v2120
  %v2123 = vmul.f32 0.5, %v2122
  %v2124 = vsub.f32 1.5, %v2123
  %v2125 = vmul.f32 %v2120, %v2124
  %vm2126 = vweird.f32 %v1670
  %vm2127 = vweird.f32 %v2120
  %vm2128 = vmor %vm2126, %vm2127
  %v2129 = vsel %vm2128, %v2120, %v2125
  %v2130 = vrsqrt.pop %v1671
  %v2131 = vmul.f32 %v2130, %v1671
  %v2132 = vmul.f32 %v2131, %v2130
  %v2133 = vmul.f32 0.5, %v2132
  %v2134 = vsub.f32 1.5, %v2133
  %v2135 = vmul.f32 %v2130, %v2134
  %vm2136 = vweird.f32 %v1671
  %vm2137 = vweird.f32 %v2130
  %vm2138 = vmor %vm2136, %vm2137
  %v2139 = vsel %vm2138, %v2130, %v2135
  %v2140 = vrsqrt.pop %v1672
  %v2141 = vmul.f32 %v2140, %v1672
  %v2142 = vmul.f32 %v2141, %v2140
  %v2143 = vmul.f32 0.5, %v2142
  %v2144 = vsub.f32 1.5, %v2143
  %v2145 = vmul.f32 %v2140, %v2144
  %vm2146 = vweird.f32 %v1672
  %vm2147 = vweird.f32 %v2140
  %vm2148 = vmor %vm2146, %vm2147
  %v2149 = vsel %vm2148, %v2140, %v2145
  %v2150 = vrsqrt.pop %v1673
  %v2151 = vmul.f32 %v2150, %v1673
  %v2152 = vmul.f32 %v2151, %v2150
  %v2153 = vmul.f32 0.5, %v2152
  %v2154 = vsub.f32 1.5, %v2153
  %v2155 = vmul.f32 %v2150, %v2154
  %vm2156 = vweird.f32 %v1673
  %vm2157 = vweird.f32 %v2150
  %vm2158 = vmor %vm2156, %vm2157
  %v2159 = vsel %vm2158, %v2150, %v2155
  %v2160 = vrsqrt.pop %v1674
  %v2161 = vmul.f32 %v2160, %v1674
  %v2162 = vmul.f32 %v2161, %v2160
  %v2163 = vmul.f32 0.5, %v2162
  %v2164 = vsub.f32 1.5, %v2163
  %v2165 = vmul.f32 %v2160, %v2164
  %vm2166 = vweird.f32 %v1674
  %vm2167 = vweird.f32 %v2160
  %vm2168 = vmor %vm2166, %vm2167
  %v2169 = vsel %vm2168, %v2160, %v2165
  %v2170 = vrsqrt.pop %v1675
  %v2171 = vmul.f32 %v2170, %v1675
  %v2172 = vmul.f32 %v2171, %v2170
  %v2173 = vmul.f32 0.5, %v2172
  %v2174 = vsub.f32 1.5, %v2173
  %v2175 = vmul.f32 %v2170, %v2174
  %vm2176 = vweird.f32 %v1675
  %vm2177 = vweird.f32 %v2170
  %vm2178 = vmor %vm2176, %vm2177
  %v2179 = vsel %vm2178, %v2170, %v2175
  %v2180 = vrsqrt.pop %v1676
  %v2181 = vmul.f32 %v2180, %v1676
  %v2182 = vmul.f32 %v2181, %v2180
  %v2183 = vmul.f32 0.5, %v2182
  %v2184 = vsub.f32 1.5, %v2183
  %v2185 = vmul.f32 %v2180, %v2184
  %vm2186 = vweird.f32 %v1676
  %vm2187 = vweird.f32 %v2180
  %vm2188 = vmor %vm2186, %vm2187
  %v2189 = vsel %vm2188, %v2180, %v2185
  %v2190 = vrsqrt.pop %v1677
  %v2191 = vmul.f32 %v2190, %v1677
  %v2192 = vmul.f32 %v2191, %v2190
  %v2193 = vmul.f32 0.5, %v2192
  %v2194 = vsub.f32 1.5, %v2193
  %v2195 = vmul.f32 %v2190, %v2194
  %vm2196 = vweird.f32 %v1677
  %vm2197 = vweird.f32 %v2190
  %vm2198 = vmor %vm2196, %vm2197
  %v2199 = vsel %vm2198, %v2190, %v2195
  %v2200 = vrsqrt.pop %v1678
  %v2201 = vmul.f32 %v2200, %v1678
  %v2202 = vmul.f32 %v2201, %v2200
  %v2203 = vmul.f32 0.5, %v2202
  %v2204 = vsub.f32 1.5, %v2203
  %v2205 = vmul.f32 %v2200, %v2204
  %vm2206 = vweird.f32 %v1678
  %vm2207 = vweird.f32 %v2200
  %vm2208 = vmor %vm2206, %vm2207
  %v2209 = vsel %vm2208, %v2200, %v2205
  %v2210 = vrsqrt.pop %v1679
  %v2211 = vmul.f32 %v2210, %v1679
  %v2212 = vmul.f32 %v2211, %v2210
  %v2213 = vmul.f32 0.5, %v2212
  %v2214 = vsub.f32 1.5, %v2213
  %v2215 = vmul.f32 %v2210, %v2214
  %vm2216 = vweird.f32 %v1679
  %vm2217 = vweird.f32 %v2210
  %vm2218 = vmor %vm2216, %vm2217
  %v2219 = vsel %vm2218, %v2210, %v2215
  %v2220 = vrsqrt.pop %v1680
  %v2221 = vmul.f32 %v2220, %v1680
  %v2222 = vmul.f32 %v2221, %v2220
  %v2223 = vmul.f32 0.5, %v2222
  %v2224 = vsub.f32 1.5, %v2223
  %v2225 = vmul.f32 %v2220, %v2224
  %vm2226 = vweird.f32 %v1680
  %vm2227 = vweird.f32 %v2220
  %vm2228 = vmor %vm2226, %vm2227
  %v2229 = vsel %vm2228, %v2220, %v2225
  %v2230 = vrsqrt.pop %v1681
  %v2231 = vmul.f32 %v2230, %v1681
  %v2232 = vmul.f32 %v2231, %v2230
  %v2233 = vmul.f32 0.5, %v2232
  %v2234 = vsub.f32 1.5, %v2233
  %v2235 = vmul.f32 %v2230, %v2234
  %vm2236 = vweird.f32 %v1681
  %vm2237 = vweird.f32 %v2230
  %vm2238 = vmor %vm2236, %vm2237
  %v2239 = vsel %vm2238, %v2230, %v2235
  %v2240 = vrsqrt.pop %v1682
  %v2241 = vmul.f32 %v2240, %v1682
  %v2242 = vmul.f32 %v2241, %v2240
  %v2243 = vmul.f32 0.5, %v2242
  %v2244 = vsub.f32 1.5, %v2243
  %v2245 = vmul.f32 %v2240, %v2244
  %vm2246 = vweird.f32 %v1682
  %vm2247 = vweird.f32 %v2240
  %vm2248 = vmor %vm2246, %vm2247
  %v2249 = vsel %vm2248, %v2240, %v2245
  %v2250 = vrsqrt.pop %v1683
  %v2251 = vmul.f32 %v2250, %v1683
  %v2252 = vmul.f32 %v2251, %v2250
  %v2253 = vmul.f32 0.5, %v2252
  %v2254 = vsub.f32 1.5, %v2253
  %v2255 = vmul.f32 %v2250, %v2254
  %vm2256 = vweird.f32 %v1683
  %vm2257 = vweird.f32 %v2250
  %vm2258 = vmor %vm2256, %vm2257
  %v2259 = vsel %vm2258, %v2250, %v2255
  %v2260 = vrsqrt.pop %v1684
  %v2261 = vmul.f32 %v2260, %v1684
  %v2262 = vmul.f32 %v2261, %v2260
  %v2263 = vmul.f32 0.5, %v2262
  %v2264 = vsub.f32 1.5, %v2263
  %v2265 = vmul.f32 %v2260, %v2264
  %vm2266 = vweird.f32 %v1684
  %vm2267 = vweird.f32 %v2260
  %vm2268 = vmor %vm2266, %vm2267
  %v2269 = vsel %vm2268, %v2260, %v2265
  %v2270 = vrsqrt.pop %v1685
  %v2271 = vmul.f32 %v2270, %v1685
  %v2272 = vmul.f32 %v2271, %v2270
  %v2273 = vmul.f32 0.5, %v2272
  %v2274 = vsub.f32 1.5, %v2273
  %v2275 = vmul.f32 %v2270, %v2274
  %vm2276 = vweird.f32 %v1685
  %vm2277 = vweird.f32 %v2270
  %vm2278 = vmor %vm2276, %vm2277
  %v2279 = vsel %vm2278, %v2270, %v2275
  %v2280 = vrsqrt.pop %v1686
  %v2281 = vmul.f32 %v2280, %v1686
  %v2282 = vmul.f32 %v2281, %v2280
  %v2283 = vmul.f32 0.5, %v2282
  %v2284 = vsub.f32 1.5, %v2283
  %v2285 = vmul.f32 %v2280, %v2284
  %vm2286 = vweird.f32 %v1686
  %vm2287 = vweird.f32 %v2280
  %vm2288 = vmor %vm2286, %vm2287
  %v2289 = vsel %vm2288, %v2280, %v2285
  %v2290 = vrsqrt.pop %v1687
  %v2291 = vmul.f32 %v2290, %v1687
  %v2292 = vmul.f32 %v2291, %v2290
  %v2293 = vmul.f32 0.5, %v2292
  %v2294 = vsub.f32 1.5, %v2293
  %v2295 = vmul.f32 %v2290, %v2294
  %vm2296 = vweird.f32 %v1687
  %vm2297 = vweird.f32 %v2290
  %vm2298 = vmor %vm2296, %vm2297
  %v2299 = vsel %vm2298, %v2290, %v2295
  %v2300 = vrsqrt.pop %v1688
  %v2301 = vmul.f32 %v2300, %v1688
  %v2302 = vmul.f32 %v2301, %v2300
  %v2303 = vmul.f32 0.5, %v2302
  %v2304 = vsub.f32 1.5, %v2303
  %v2305 = vmul.f32 %v2300, %v2304
  %vm2306 = vweird.f32 %v1688
  %vm2307 = vweird.f32 %v2300
  %vm2308 = vmor %vm2306, %vm2307
  %v2309 = vsel %vm2308, %v2300, %v2305
  %v2310 = vrsqrt.pop %v1689
  %v2311 = vmul.f32 %v2310, %v1689
  %v2312 = vmul.f32 %v2311, %v2310
  %v2313 = vmul.f32 0.5, %v2312
  %v2314 = vsub.f32 1.5, %v2313
  %v2315 = vmul.f32 %v2310, %v2314
  %vm2316 = vweird.f32 %v1689
  %vm2317 = vweird.f32 %v2310
  %vm2318 = vmor %vm2316, %vm2317
  %v2319 = vsel %vm2318, %v2310, %v2315
  %v2320 = vrsqrt.pop %v1690
  %v2321 = vmul.f32 %v2320, %v1690
  %v2322 = vmul.f32 %v2321, %v2320
  %v2323 = vmul.f32 0.5, %v2322
  %v2324 = vsub.f32 1.5, %v2323
  %v2325 = vmul.f32 %v2320, %v2324
  %vm2326 = vweird.f32 %v1690
  %vm2327 = vweird.f32 %v2320
  %vm2328 = vmor %vm2326, %vm2327
  %v2329 = vsel %vm2328, %v2320, %v2325
  %v2330 = vrsqrt.pop %v1691
  %v2331 = vmul.f32 %v2330, %v1691
  %v2332 = vmul.f32 %v2331, %v2330
  %v2333 = vmul.f32 0.5, %v2332
  %v2334 = vsub.f32 1.5, %v2333
  %v2335 = vmul.f32 %v2330, %v2334
  %vm2336 = vweird.f32 %v1691
  %vm2337 = vweird.f32 %v2330
  %vm2338 = vmor %vm2336, %vm2337
  %v2339 = vsel %vm2338, %v2330, %v2335
  %v2340 = vrsqrt.pop %v1692
  %v2341 = vmul.f32 %v2340, %v1692
  %v2342 = vmul.f32 %v2341, %v2340
  %v2343 = vmul.f32 0.5, %v2342
  %v2344 = vsub.f32 1.5, %v2343
  %v2345 = vmul.f32 %v2340, %v2344
  %vm2346 = vweird.f32 %v1692
  %vm2347 = vweird.f32 %v2340
  %vm2348 = vmor %vm2346, %vm2347
  %v2349 = vsel %vm2348, %v2340, %v2345
  %v2350 = vrsqrt.pop %v1693
  %v2351 = vmul.f32 %v2350, %v1693
  %v2352 = vmul.f32 %v2351, %v2350
  %v2353 = vmul.f32 0.5, %v2352
  %v2354 = vsub.f32 1.5, %v2353
  %v2355 = vmul.f32 %v2350, %v2354
  %vm2356 = vweird.f32 %v1693
  %vm2357 = vweird.f32 %v2350
  %vm2358 = vmor %vm2356, %vm2357
  %v2359 = vsel %vm2358, %v2350, %v2355
  %v2360 = vrsqrt.pop %v1694
  %v2361 = vmul.f32 %v2360, %v1694
  %v2362 = vmul.f32 %v2361, %v2360
  %v2363 = vmul.f32 0.5, %v2362
  %v2364 = vsub.f32 1.5, %v2363
  %v2365 = vmul.f32 %v2360, %v2364
  %vm2366 = vweird.f32 %v1694
  %vm2367 = vweird.f32 %v2360
  %vm2368 = vmor %vm2366, %vm2367
  %v2369 = vsel %vm2368, %v2360, %v2365
  %v2370 = vrsqrt.pop %v1695
  %v2371 = vmul.f32 %v2370, %v1695
  %v2372 = vmul.f32 %v2371, %v2370
  %v2373 = vmul.f32 0.5, %v2372
  %v2374 = vsub.f32 1.5, %v2373
  %v2375 = vmul.f32 %v2370, %v2374
  %vm2376 = vweird.f32 %v1695
  %vm2377 = vweird.f32 %v2370
  %vm2378 = vmor %vm2376, %vm2377
  %v2379 = vsel %vm2378, %v2370, %v2375
  %v2380 = vrsqrt.pop %v1696
  %v2381 = vmul.f32 %v2380, %v1696
  %v2382 = vmul.f32 %v2381, %v2380
  %v2383 = vmul.f32 0.5, %v2382
  %v2384 = vsub.f32 1.5, %v2383
  %v2385 = vmul.f32 %v2380, %v2384
  %vm2386 = vweird.f32 %v1696
  %vm2387 = vweird.f32 %v2380
  %vm2388 = vmor %vm2386, %vm2387
  %v2389 = vsel %vm2388, %v2380, %v2385
  %v2390 = vrsqrt.pop %v1697
  %v2391 = vmul.f32 %v2390, %v1697
  %v2392 = vmul.f32 %v2391, %v2390
  %v2393 = vmul.f32 0.5, %v2392
  %v2394 = vsub.f32 1.5, %v2393
  %v2395 = vmul.f32 %v2390, %v2394
  %vm2396 = vweird.f32 %v1697
  %vm2397 = vweird.f32 %v2390
  %vm2398 = vmor %vm2396, %vm2397
  %v2399 = vsel %vm2398, %v2390, %v2395
  %v2400 = vrsqrt.pop %v1698
  %v2401 = vmul.f32 %v2400, %v1698
  %v2402 = vmul.f32 %v2401, %v2400
  %v2403 = vmul.f32 0.5, %v2402
  %v2404 = vsub.f32 1.5, %v2403
  %v2405 = vmul.f32 %v2400, %v2404
  %vm2406 = vweird.f32 %v1698
  %vm2407 = vweird.f32 %v2400
  %vm2408 = vmor %vm2406, %vm2407
  %v2409 = vsel %vm2408, %v2400, %v2405
  %v2410 = vrsqrt.pop %v1699
  %v2411 = vmul.f32 %v2410, %v1699
  %v2412 = vmul.f32 %v2411, %v2410
  %v2413 = vmul.f32 0.5, %v2412
  %v2414 = vsub.f32 1.5, %v2413
  %v2415 = vmul.f32 %v2410, %v2414
  %vm2416 = vweird.f32 %v1699
  %vm2417 = vweird.f32 %v2410
  %vm2418 = vmor %vm2416, %vm2417
  %v2419 = vsel %vm2418, %v2410, %v2415
  %v2420 = vrsqrt.pop %v1700
  %v2421 = vmul.f32 %v2420, %v1700
  %v2422 = vmul.f32 %v2421, %v2420
  %v2423 = vmul.f32 0.5, %v2422
  %v2424 = vsub.f32 1.5, %v2423
  %v2425 = vmul.f32 %v2420, %v2424
  %vm2426 = vweird.f32 %v1700
  %vm2427 = vweird.f32 %v2420
  %vm2428 = vmor %vm2426, %vm2427
  %v2429 = vsel %vm2428, %v2420, %v2425
  %v2430 = vrsqrt.pop %v1701
  %v2431 = vmul.f32 %v2430, %v1701
  %v2432 = vmul.f32 %v2431, %v2430
  %v2433 = vmul.f32 0.5, %v2432
  %v2434 = vsub.f32 1.5, %v2433
  %v2435 = vmul.f32 %v2430, %v2434
  %vm2436 = vweird.f32 %v1701
  %vm2437 = vweird.f32 %v2430
  %vm2438 = vmor %vm2436, %vm2437
  %v2439 = vsel %vm2438, %v2430, %v2435
  %v2440 = vrsqrt.pop %v1702
  %v2441 = vmul.f32 %v2440, %v1702
  %v2442 = vmul.f32 %v2441, %v2440
  %v2443 = vmul.f32 0.5, %v2442
  %v2444 = vsub.f32 1.5, %v2443
  %v2445 = vmul.f32 %v2440, %v2444
  %vm2446 = vweird.f32 %v1702
  %vm2447 = vweird.f32 %v2440
  %vm2448 = vmor %vm2446, %vm2447
  %v2449 = vsel %vm2448, %v2440, %v2445
  %v2450 = vrsqrt.pop %v1703
  %v2451 = vmul.f32 %v2450, %v1703
  %v2452 = vmul.f32 %v2451, %v2450
  %v2453 = vmul.f32 0.5, %v2452
  %v2454 = vsub.f32 1.5, %v2453
  %v2455 = vmul.f32 %v2450, %v2454
  %vm2456 = vweird.f32 %v1703
  %vm2457 = vweird.f32 %v2450
  %vm2458 = vmor %vm2456, %vm2457
  %v2459 = vsel %vm2458, %v2450, %v2455
  %v2460 = vrsqrt.pop %v1704
  %v2461 = vmul.f32 %v2460, %v1704
  %v2462 = vmul.f32 %v2461, %v2460
  %v2463 = vmul.f32 0.5, %v2462
  %v2464 = vsub.f32 1.5, %v2463
  %v2465 = vmul.f32 %v2460, %v2464
  %vm2466 = vweird.f32 %v1704
  %vm2467 = vweird.f32 %v2460
  %vm2468 = vmor %vm2466, %vm2467
  %v2469 = vsel %vm2468, %v2460, %v2465
  %v2470 = vrsqrt.pop %v1705
  %v2471 = vmul.f32 %v2470, %v1705
  %v2472 = vmul.f32 %v2471, %v2470
  %v2473 = vmul.f32 0.5, %v2472
  %v2474 = vsub.f32 1.5, %v2473
  %v2475 = vmul.f32 %v2470, %v2474
  %vm2476 = vweird.f32 %v1705
  %vm2477 = vweird.f32 %v2470
  %vm2478 = vmor %vm2476, %vm2477
  %v2479 = vsel %vm2478, %v2470, %v2475
  %v2480 = vrsqrt.pop %v1706
  %v2481 = vmul.f32 %v2480, %v1706
  %v2482 = vmul.f32 %v2481, %v2480
  %v2483 = vmul.f32 0.5, %v2482
  %v2484 = vsub.f32 1.5, %v2483
  %v2485 = vmul.f32 %v2480, %v2484
  %vm2486 = vweird.f32 %v1706
  %vm2487 = vweird.f32 %v2480
  %vm2488 = vmor %vm2486, %vm2487
  %v2489 = vsel %vm2488, %v2480, %v2485
  %v2490 = vrsqrt.pop %v1707
  %v2491 = vmul.f32 %v2490, %v1707
  %v2492 = vmul.f32 %v2491, %v2490
  %v2493 = vmul.f32 0.5, %v2492
  %v2494 = vsub.f32 1.5, %v2493
  %v2495 = vmul.f32 %v2490, %v2494
  %vm2496 = vweird.f32 %v1707
  %vm2497 = vweird.f32 %v2490
  %vm2498 = vmor %vm2496, %vm2497
  %v2499 = vsel %vm2498, %v2490, %v2495
  %v2500 = vrsqrt.pop %v1708
  %v2501 = vmul.f32 %v2500, %v1708
  %v2502 = vmul.f32 %v2501, %v2500
  %v2503 = vmul.f32 0.5, %v2502
  %v2504 = vsub.f32 1.5, %v2503
  %v2505 = vmul.f32 %v2500, %v2504
  %vm2506 = vweird.f32 %v1708
  %vm2507 = vweird.f32 %v2500
  %vm2508 = vmor %vm2506, %vm2507
  %v2509 = vsel %vm2508, %v2500, %v2505
  %v2510 = vrsqrt.pop %v1709
  %v2511 = vmul.f32 %v2510, %v1709
  %v2512 = vmul.f32 %v2511, %v2510
  %v2513 = vmul.f32 0.5, %v2512
  %v2514 = vsub.f32 1.5, %v2513
  %v2515 = vmul.f32 %v2510, %v2514
  %vm2516 = vweird.f32 %v1709
  %vm2517 = vweird.f32 %v2510
  %vm2518 = vmor %vm2516, %vm2517
  %v2519 = vsel %vm2518, %v2510, %v2515
  %v2520 = vrsqrt.pop %v1710
  %v2521 = vmul.f32 %v2520, %v1710
  %v2522 = vmul.f32 %v2521, %v2520
  %v2523 = vmul.f32 0.5, %v2522
  %v2524 = vsub.f32 1.5, %v2523
  %v2525 = vmul.f32 %v2520, %v2524
  %vm2526 = vweird.f32 %v1710
  %vm2527 = vweird.f32 %v2520
  %vm2528 = vmor %vm2526, %vm2527
  %v2529 = vsel %vm2528, %v2520, %v2525
  %v2530 = vrsqrt.pop %v1711
  %v2531 = vmul.f32 %v2530, %v1711
  %v2532 = vmul.f32 %v2531, %v2530
  %v2533 = vmul.f32 0.5, %v2532
  %v2534 = vsub.f32 1.5, %v2533
  %v2535 = vmul.f32 %v2530, %v2534
  %vm2536 = vweird.f32 %v1711
  %vm2537 = vweird.f32 %v2530
  %vm2538 = vmor %vm2536, %vm2537
  %v2539 = vsel %vm2538, %v2530, %v2535
  %v2540 = vrsqrt.pop %v1712
  %v2541 = vmul.f32 %v2540, %v1712
  %v2542 = vmul.f32 %v2541, %v2540
  %v2543 = vmul.f32 0.5, %v2542
  %v2544 = vsub.f32 1.5, %v2543
  %v2545 = vmul.f32 %v2540, %v2544
  %vm2546 = vweird.f32 %v1712
  %vm2547 = vweird.f32 %v2540
  %vm2548 = vmor %vm2546, %vm2547
  %v2549 = vsel %vm2548, %v2540, %v2545
  %v2550 = vrsqrt.pop %v1713
  %v2551 = vmul.f32 %v2550, %v1713
  %v2552 = vmul.f32 %v2551, %v2550
  %v2553 = vmul.f32 0.5, %v2552
  %v2554 = vsub.f32 1.5, %v2553
  %v2555 = vmul.f32 %v2550, %v2554
  %vm2556 = vweird.f32 %v1713
  %vm2557 = vweird.f32 %v2550
  %vm2558 = vmor %vm2556, %vm2557
  %v2559 = vsel %vm2558, %v2550, %v2555
  %v2560 = vrsqrt.pop %v1714
  %v2561 = vmul.f32 %v2560, %v1714
  %v2562 = vmul.f32 %v2561, %v2560
  %v2563 = vmul.f32 0.5, %v2562
  %v2564 = vsub.f32 1.5, %v2563
  %v2565 = vmul.f32 %v2560, %v2564
  %vm2566 = vweird.f32 %v1714
  %vm2567 = vweird.f32 %v2560
  %vm2568 = vmor %vm2566, %vm2567
  %v2569 = vsel %vm2568, %v2560, %v2565
  %v2570 = vrsqrt.pop %v1715
  %v2571 = vmul.f32 %v2570, %v1715
  %v2572 = vmul.f32 %v2571, %v2570
  %v2573 = vmul.f32 0.5, %v2572
  %v2574 = vsub.f32 1.5, %v2573
  %v2575 = vmul.f32 %v2570, %v2574
  %vm2576 = vweird.f32 %v1715
  %vm2577 = vweird.f32 %v2570
  %vm2578 = vmor %vm2576, %vm2577
  %v2579 = vsel %vm2578, %v2570, %v2575
  %v2580 = vrsqrt.pop %v1716
  %v2581 = vmul.f32 %v2580, %v1716
  %v2582 = vmul.f32 %v2581, %v2580
  %v2583 = vmul.f32 0.5, %v2582
  %v2584 = vsub.f32 1.5, %v2583
  %v2585 = vmul.f32 %v2580, %v2584
  %vm2586 = vweird.f32 %v1716
  %vm2587 = vweird.f32 %v2580
  %vm2588 = vmor %vm2586, %vm2587
  %v2589 = vsel %vm2588, %v2580, %v2585
  %v2590 = vrsqrt.pop %v1717
  %v2591 = vmul.f32 %v2590, %v1717
  %v2592 = vmul.f32 %v2591, %v2590
  %v2593 = vmul.f32 0.5, %v2592
  %v2594 = vsub.f32 1.5, %v2593
  %v2595 = vmul.f32 %v2590, %v2594
  %vm2596 = vweird.f32 %v1717
  %vm2597 = vweird.f32 %v2590
  %vm2598 = vmor %vm2596, %vm2597
  %v2599 = vsel %vm2598, %v2590, %v2595
  %v2600 = vrsqrt.pop %v1718
  %v2601 = vmul.f32 %v2600, %v1718
  %v2602 = vmul.f32 %v2601, %v2600
  %v2603 = vmul.f32 0.5, %v2602
  %v2604 = vsub.f32 1.5, %v2603
  %v2605 = vmul.f32 %v2600, %v2604
  %vm2606 = vweird.f32 %v1718
  %vm2607 = vweird.f32 %v2600
  %vm2608 = vmor %vm2606, %vm2607
  %v2609 = vsel %vm2608, %v2600, %v2605
  %v2610 = vrsqrt.pop %v1719
  %v2611 = vmul.f32 %v2610, %v1719
  %v2612 = vmul.f32 %v2611, %v2610
  %v2613 = vmul.f32 0.5, %v2612
  %v2614 = vsub.f32 1.5, %v2613
  %v2615 = vmul.f32 %v2610, %v2614
  %vm2616 = vweird.f32 %v1719
  %vm2617 = vweird.f32 %v2610
  %vm2618 = vmor %vm2616, %vm2617
  %v2619 = vsel %vm2618, %v2610, %v2615
  %v2620 = vrsqrt.pop %v1720
  %v2621 = vmul.f32 %v2620, %v1720
  %v2622 = vmul.f32 %v2621, %v2620
  %v2623 = vmul.f32 0.5, %v2622
  %v2624 = vsub.f32 1.5, %v2623
  %v2625 = vmul.f32 %v2620, %v2624
  %vm2626 = vweird.f32 %v1720
  %vm2627 = vweird.f32 %v2620
  %vm2628 = vmor %vm2626, %vm2627
  %v2629 = vsel %vm2628, %v2620, %v2625
  %v2630 = vrsqrt.pop %v1721
  %v2631 = vmul.f32 %v2630, %v1721
  %v2632 = vmul.f32 %v2631, %v2630
  %v2633 = vmul.f32 0.5, %v2632
  %v2634 = vsub.f32 1.5, %v2633
  %v2635 = vmul.f32 %v2630, %v2634
  %vm2636 = vweird.f32 %v1721
  %vm2637 = vweird.f32 %v2630
  %vm2638 = vmor %vm2636, %vm2637
  %v2639 = vsel %vm2638, %v2630, %v2635
  %v2640 = vrsqrt.pop %v1722
  %v2641 = vmul.f32 %v2640, %v1722
  %v2642 = vmul.f32 %v2641, %v2640
  %v2643 = vmul.f32 0.5, %v2642
  %v2644 = vsub.f32 1.5, %v2643
  %v2645 = vmul.f32 %v2640, %v2644
  %vm2646 = vweird.f32 %v1722
  %vm2647 = vweird.f32 %v2640
  %vm2648 = vmor %vm2646, %vm2647
  %v2649 = vsel %vm2648, %v2640, %v2645
  %v2650 = vrsqrt.pop %v1723
  %v2651 = vmul.f32 %v2650, %v1723
  %v2652 = vmul.f32 %v2651, %v2650
  %v2653 = vmul.f32 0.5, %v2652
  %v2654 = vsub.f32 1.5, %v2653
  %v2655 = vmul.f32 %v2650, %v2654
  %vm2656 = vweird.f32 %v1723
  %vm2657 = vweird.f32 %v2650
  %vm2658 = vmor %vm2656, %vm2657
  %v2659 = vsel %vm2658, %v2650, %v2655
  %v2660 = vrsqrt.pop %v1724
  %v2661 = vmul.f32 %v2660, %v1724
  %v2662 = vmul.f32 %v2661, %v2660
  %v2663 = vmul.f32 0.5, %v2662
  %v2664 = vsub.f32 1.5, %v2663
  %v2665 = vmul.f32 %v2660, %v2664
  %vm2666 = vweird.f32 %v1724
  %vm2667 = vweird.f32 %v2660
  %vm2668 = vmor %vm2666, %vm2667
  %v2669 = vsel %vm2668, %v2660, %v2665
  %v2670 = vrsqrt.pop %v1725
  %v2671 = vmul.f32 %v2670, %v1725
  %v2672 = vmul.f32 %v2671, %v2670
  %v2673 = vmul.f32 0.5, %v2672
  %v2674 = vsub.f32 1.5, %v2673
  %v2675 = vmul.f32 %v2670, %v2674
  %vm2676 = vweird.f32 %v1725
  %vm2677 = vweird.f32 %v2670
  %vm2678 = vmor %vm2676, %vm2677
  %v2679 = vsel %vm2678, %v2670, %v2675
  %v2680 = vrsqrt.pop %v1726
  %v2681 = vmul.f32 %v2680, %v1726
  %v2682 = vmul.f32 %v2681, %v2680
  %v2683 = vmul.f32 0.5, %v2682
  %v2684 = vsub.f32 1.5, %v2683
  %v2685 = vmul.f32 %v2680, %v2684
  %vm2686 = vweird.f32 %v1726
  %vm2687 = vweird.f32 %v2680
  %vm2688 = vmor %vm2686, %vm2687
  %v2689 = vsel %vm2688, %v2680, %v2685
  %v2690 = vrsqrt.pop %v1727
  %v2691 = vmul.f32 %v2690, %v1727
  %v2692 = vmul.f32 %v2691, %v2690
  %v2693 = vmul.f32 0.5, %v2692
  %v2694 = vsub.f32 1.5, %v2693
  %v2695 = vmul.f32 %v2690, %v2694
  %vm2696 = vweird.f32 %v1727
  %vm2697 = vweird.f32 %v2690
  %vm2698 = vmor %vm2696, %vm2697
  %v2699 = vsel %vm2698, %v2690, %v2695
  %v2700 = vrsqrt.pop %v1728
  %v2701 = vmul.f32 %v2700, %v1728
  %v2702 = vmul.f32 %v2701, %v2700
  %v2703 = vmul.f32 0.5, %v2702
  %v2704 = vsub.f32 1.5, %v2703
  %v2705 = vmul.f32 %v2700, %v2704
  %vm2706 = vweird.f32 %v1728
  %vm2707 = vweird.f32 %v2700
  %vm2708 = vmor %vm2706, %vm2707
  %v2709 = vsel %vm2708, %v2700, %v2705
  %v2710 = vrsqrt.pop %v1729
  %v2711 = vmul.f32 %v2710, %v1729
  %v2712 = vmul.f32 %v2711, %v2710
  %v2713 = vmul.f32 0.5, %v2712
  %v2714 = vsub.f32 1.5, %v2713
  %v2715 = vmul.f32 %v2710, %v2714
  %vm2716 = vweird.f32 %v1729
  %vm2717 = vweird.f32 %v2710
  %vm2718 = vmor %vm2716, %vm2717
  %v2719 = vsel %vm2718, %v2710, %v2715
  %v2720 = vrsqrt.pop %v1730
  %v2721 = vmul.f32 %v2720, %v1730
  %v2722 = vmul.f32 %v2721, %v2720
  %v2723 = vmul.f32 0.5, %v2722
  %v2724 = vsub.f32 1.5, %v2723
  %v2725 = vmul.f32 %v2720, %v2724
  %vm2726 = vweird.f32 %v1730
  %vm2727 = vweird.f32 %v2720
  %vm2728 = vmor %vm2726, %vm2727
  %v2729 = vsel %vm2728, %v2720, %v2725
  %v2730 = vrsqrt.pop %v1731
  %v2731 = vmul.f32 %v2730, %v1731
  %v2732 = vmul.f32 %v2731, %v2730
  %v2733 = vmul.f32 0.5, %v2732
  %v2734 = vsub.f32 1.5, %v2733
  %v2735 = vmul.f32 %v2730, %v2734
  %vm2736 = vweird.f32 %v1731
  %vm2737 = vweird.f32 %v2730
  %vm2738 = vmor %vm2736, %vm2737
  %v2739 = vsel %vm2738, %v2730, %v2735
  %v2740 = vrsqrt.pop %v1732
  %v2741 = vmul.f32 %v2740, %v1732
  %v2742 = vmul.f32 %v2741, %v2740
  %v2743 = vmul.f32 0.5, %v2742
  %v2744 = vsub.f32 1.5, %v2743
  %v2745 = vmul.f32 %v2740, %v2744
  %vm2746 = vweird.f32 %v1732
  %vm2747 = vweird.f32 %v2740
  %vm2748 = vmor %vm2746, %vm2747
  %v2749 = vsel %vm2748, %v2740, %v2745
  %v2750 = vrsqrt.pop %v1733
  %v2751 = vmul.f32 %v2750, %v1733
  %v2752 = vmul.f32 %v2751, %v2750
  %v2753 = vmul.f32 0.5, %v2752
  %v2754 = vsub.f32 1.5, %v2753
  %v2755 = vmul.f32 %v2750, %v2754
  %vm2756 = vweird.f32 %v1733
  %vm2757 = vweird.f32 %v2750
  %vm2758 = vmor %vm2756, %vm2757
  %v2759 = vsel %vm2758, %v2750, %v2755
  %v2760 = vrsqrt.pop %v1734
  %v2761 = vmul.f32 %v2760, %v1734
  %v2762 = vmul.f32 %v2761, %v2760
  %v2763 = vmul.f32 0.5, %v2762
  %v2764 = vsub.f32 1.5, %v2763
  %v2765 = vmul.f32 %v2760, %v2764
  %vm2766 = vweird.f32 %v1734
  %vm2767 = vweird.f32 %v2760
  %vm2768 = vmor %vm2766, %vm2767
  %v2769 = vsel %vm2768, %v2760, %v2765
  %v2770 = vrsqrt.pop %v1735
  %v2771 = vmul.f32 %v2770, %v1735
  %v2772 = vmul.f32 %v2771, %v2770
  %v2773 = vmul.f32 0.5, %v2772
  %v2774 = vsub.f32 1.5, %v2773
  %v2775 = vmul.f32 %v2770, %v2774
  %vm2776 = vweird.f32 %v1735
  %vm2777 = vweird.f32 %v2770
  %vm2778 = vmor %vm2776, %vm2777
  %v2779 = vsel %vm2778, %v2770, %v2775
  %v2780 = vrsqrt.pop %v1736
  %v2781 = vmul.f32 %v2780, %v1736
  %v2782 = vmul.f32 %v2781, %v2780
  %v2783 = vmul.f32 0.5, %v2782
  %v2784 = vsub.f32 1.5, %v2783
  %v2785 = vmul.f32 %v2780, %v2784
  %vm2786 = vweird.f32 %v1736
  %vm2787 = vweird.f32 %v2780
  %vm2788 = vmor %vm2786, %vm2787
  %v2789 = vsel %vm2788, %v2780, %v2785
  %v2790 = vrsqrt.pop %v1737
  %v2791 = vmul.f32 %v2790, %v1737
  %v2792 = vmul.f32 %v2791, %v2790
  %v2793 = vmul.f32 0.5, %v2792
  %v2794 = vsub.f32 1.5, %v2793
  %v2795 = vmul.f32 %v2790, %v2794
  %vm2796 = vweird.f32 %v1737
  %vm2797 = vweird.f32 %v2790
  %vm2798 = vmor %vm2796, %vm2797
  %v2799 = vsel %vm2798, %v2790, %v2795
  %v2800 = vrsqrt.pop %v1738
  %v2801 = vmul.f32 %v2800, %v1738
  %v2802 = vmul.f32 %v2801, %v2800
  %v2803 = vmul.f32 0.5, %v2802
  %v2804 = vsub.f32 1.5, %v2803
  %v2805 = vmul.f32 %v2800, %v2804
  %vm2806 = vweird.f32 %v1738
  %vm2807 = vweird.f32 %v2800
  %vm2808 = vmor %vm2806, %vm2807
  %v2809 = vsel %vm2808, %v2800, %v2805
  %v2810 = vrsqrt.pop %v1739
  %v2811 = vmul.f32 %v2810, %v1739
  %v2812 = vmul.f32 %v2811, %v2810
  %v2813 = vmul.f32 0.5, %v2812
  %v2814 = vsub.f32 1.5, %v2813
  %v2815 = vmul.f32 %v2810, %v2814
  %vm2816 = vweird.f32 %v1739
  %vm2817 = vweird.f32 %v2810
  %vm2818 = vmor %vm2816, %vm2817
  %v2819 = vsel %vm2818, %v2810, %v2815
  %s2820 = smul.u32 0, 864
  %s2821 = scalar_lea.vmem %s1, %s2820
  %v2822 = vld [vmem:[%s2821] sm:$0xff]
  %v2823 = vld [vmem:[%s2821 + $0x8] sm:$0xff]
  %v2824 = vld [vmem:[%s2821 + $0x10] sm:$0xff]
  %v2825 = vld [vmem:[%s2821 + $0x18] sm:$0xff]
  %v2826 = vld [vmem:[%s2821 + $0x20] sm:$0xff]
  %v2827 = vld [vmem:[%s2821 + $0x28] sm:$0xff]
  %v2828 = vld [vmem:[%s2821 + $0x30] sm:$0xff]
  %v2829 = vld [vmem:[%s2821 + $0x38] sm:$0xff]
  %v2830 = vld [vmem:[%s2821 + $0x40] sm:$0xff]
  %v2831 = vld [vmem:[%s2821 + $0x48] sm:$0xff]
  %v2832 = vld [vmem:[%s2821 + $0x50] sm:$0xff]
  %v2833 = vld [vmem:[%s2821 + $0x58] sm:$0xff]
  %v2834 = vld [vmem:[%s2821 + $0x60] sm:$0xff]
  %v2835 = vld [vmem:[%s2821 + $0x68] sm:$0xff]
  %v2836 = vld [vmem:[%s2821 + $0x70] sm:$0xff]
  %v2837 = vld [vmem:[%s2821 + $0x78] sm:$0xff]
  %v2838 = vld [vmem:[%s2821 + $0x80] sm:$0xff]
  %v2839 = vld [vmem:[%s2821 + $0x88] sm:$0xff]
  %v2840 = vld [vmem:[%s2821 + $0x90] sm:$0xff]
  %v2841 = vld [vmem:[%s2821 + $0x98] sm:$0xff]
  %v2842 = vld [vmem:[%s2821 + $0xa0] sm:$0xff]
  %v2843 = vld [vmem:[%s2821 + $0xa8] sm:$0xff]
  %v2844 = vld [vmem:[%s2821 + $0xb0] sm:$0xff]
  %v2845 = vld [vmem:[%s2821 + $0xb8] sm:$0xff]
  %v2846 = vld [vmem:[%s2821 + $0xc0] sm:$0xff]
  %v2847 = vld [vmem:[%s2821 + $0xc8] sm:$0xff]
  %v2848 = vld [vmem:[%s2821 + $0xd0] sm:$0xff]
  %v2849 = vld [vmem:[%s2821 + $0xd8] sm:$0xff]
  %v2850 = vld [vmem:[%s2821 + $0xe0] sm:$0xff]
  %v2851 = vld [vmem:[%s2821 + $0xe8] sm:$0xff]
  %v2852 = vld [vmem:[%s2821 + $0xf0] sm:$0xff]
  %v2853 = vld [vmem:[%s2821 + $0xf8] sm:$0xff]
  %v2854 = vld [vmem:[%s2821 + $0x100] sm:$0xff]
  %v2855 = vld [vmem:[%s2821 + $0x108] sm:$0xff]
  %v2856 = vld [vmem:[%s2821 + $0x110] sm:$0xff]
  %v2857 = vld [vmem:[%s2821 + $0x118] sm:$0xff]
  %v2858 = vld [vmem:[%s2821 + $0x120] sm:$0xff]
  %v2859 = vld [vmem:[%s2821 + $0x128] sm:$0xff]
  %v2860 = vld [vmem:[%s2821 + $0x130] sm:$0xff]
  %v2861 = vld [vmem:[%s2821 + $0x138] sm:$0xff]
  %v2862 = vld [vmem:[%s2821 + $0x140] sm:$0xff]
  %v2863 = vld [vmem:[%s2821 + $0x148] sm:$0xff]
  %v2864 = vld [vmem:[%s2821 + $0x150] sm:$0xff]
  %v2865 = vld [vmem:[%s2821 + $0x158] sm:$0xff]
  %v2866 = vld [vmem:[%s2821 + $0x160] sm:$0xff]
  %v2867 = vld [vmem:[%s2821 + $0x168] sm:$0xff]
  %v2868 = vld [vmem:[%s2821 + $0x170] sm:$0xff]
  %v2869 = vld [vmem:[%s2821 + $0x178] sm:$0xff]
  %v2870 = vld [vmem:[%s2821 + $0x180] sm:$0xff]
  %v2871 = vld [vmem:[%s2821 + $0x188] sm:$0xff]
  %v2872 = vld [vmem:[%s2821 + $0x190] sm:$0xff]
  %v2873 = vld [vmem:[%s2821 + $0x198] sm:$0xff]
  %v2874 = vld [vmem:[%s2821 + $0x1a0] sm:$0xff]
  %v2875 = vld [vmem:[%s2821 + $0x1a8] sm:$0xff]
  %v2876 = vld [vmem:[%s2821 + $0x1b0] sm:$0xff]
  %v2877 = vld [vmem:[%s2821 + $0x1b8] sm:$0xff]
  %v2878 = vld [vmem:[%s2821 + $0x1c0] sm:$0xff]
  %v2879 = vld [vmem:[%s2821 + $0x1c8] sm:$0xff]
  %v2880 = vld [vmem:[%s2821 + $0x1d0] sm:$0xff]
  %v2881 = vld [vmem:[%s2821 + $0x1d8] sm:$0xff]
  %v2882 = vld [vmem:[%s2821 + $0x1e0] sm:$0xff]
  %v2883 = vld [vmem:[%s2821 + $0x1e8] sm:$0xff]
  %v2884 = vld [vmem:[%s2821 + $0x1f0] sm:$0xff]
  %v2885 = vld [vmem:[%s2821 + $0x1f8] sm:$0xff]
  %v2886 = vld [vmem:[%s2821 + $0x200] sm:$0xff]
  %v2887 = vld [vmem:[%s2821 + $0x208] sm:$0xff]
  %v2888 = vld [vmem:[%s2821 + $0x210] sm:$0xff]
  %v2889 = vld [vmem:[%s2821 + $0x218] sm:$0xff]
  %v2890 = vld [vmem:[%s2821 + $0x220] sm:$0xff]
  %v2891 = vld [vmem:[%s2821 + $0x228] sm:$0xff]
  %v2892 = vld [vmem:[%s2821 + $0x230] sm:$0xff]
  %v2893 = vld [vmem:[%s2821 + $0x238] sm:$0xff]
  %v2894 = vld [vmem:[%s2821 + $0x240] sm:$0xff]
  %v2895 = vld [vmem:[%s2821 + $0x248] sm:$0xff]
  %v2896 = vld [vmem:[%s2821 + $0x250] sm:$0xff]
  %v2897 = vld [vmem:[%s2821 + $0x258] sm:$0xff]
  %v2898 = vld [vmem:[%s2821 + $0x260] sm:$0xff]
  %v2899 = vld [vmem:[%s2821 + $0x268] sm:$0xff]
  %v2900 = vld [vmem:[%s2821 + $0x270] sm:$0xff]
  %v2901 = vld [vmem:[%s2821 + $0x278] sm:$0xff]
  %v2902 = vld [vmem:[%s2821 + $0x280] sm:$0xff]
  %v2903 = vld [vmem:[%s2821 + $0x288] sm:$0xff]
  %v2904 = vld [vmem:[%s2821 + $0x290] sm:$0xff]
  %v2905 = vld [vmem:[%s2821 + $0x298] sm:$0xff]
  %v2906 = vld [vmem:[%s2821 + $0x2a0] sm:$0xff]
  %v2907 = vld [vmem:[%s2821 + $0x2a8] sm:$0xff]
  %v2908 = vld [vmem:[%s2821 + $0x2b0] sm:$0xff]
  %v2909 = vld [vmem:[%s2821 + $0x2b8] sm:$0xff]
  %v2910 = vld [vmem:[%s2821 + $0x2c0] sm:$0xff]
  %v2911 = vld [vmem:[%s2821 + $0x2c8] sm:$0xff]
  %v2912 = vld [vmem:[%s2821 + $0x2d0] sm:$0xff]
  %v2913 = vld [vmem:[%s2821 + $0x2d8] sm:$0xff]
  %v2914 = vld [vmem:[%s2821 + $0x2e0] sm:$0xff]
  %v2915 = vld [vmem:[%s2821 + $0x2e8] sm:$0xff]
  %v2916 = vld [vmem:[%s2821 + $0x2f0] sm:$0xff]
  %v2917 = vld [vmem:[%s2821 + $0x2f8] sm:$0xff]
  %v2918 = vld [vmem:[%s2821 + $0x300] sm:$0xff]
  %v2919 = vld [vmem:[%s2821 + $0x308] sm:$0xff]
  %v2920 = vld [vmem:[%s2821 + $0x310] sm:$0xff]
  %v2921 = vld [vmem:[%s2821 + $0x318] sm:$0xff]
  %v2922 = vld [vmem:[%s2821 + $0x320] sm:$0xff]
  %v2923 = vld [vmem:[%s2821 + $0x328] sm:$0xff]
  %v2924 = vld [vmem:[%s2821 + $0x330] sm:$0xff]
  %v2925 = vld [vmem:[%s2821 + $0x338] sm:$0xff]
  %v2926 = vld [vmem:[%s2821 + $0x340] sm:$0xff]
  %v2927 = vld [vmem:[%s2821 + $0x348] sm:$0xff]
  %v2928 = vld [vmem:[%s2821 + $0x350] sm:$0xff]
  %v2929 = vld [vmem:[%s2821 + $0x358] sm:$0xff]
  %v2930 = vmul.f32 %v2822, %v1749
  %v2931 = vmul.f32 %v2823, %v1759
  %v2932 = vmul.f32 %v2824, %v1769
  %v2933 = vmul.f32 %v2825, %v1779
  %v2934 = vmul.f32 %v2826, %v1789
  %v2935 = vmul.f32 %v2827, %v1799
  %v2936 = vmul.f32 %v2828, %v1809
  %v2937 = vmul.f32 %v2829, %v1819
  %v2938 = vmul.f32 %v2830, %v1829
  %v2939 = vmul.f32 %v2831, %v1839
  %v2940 = vmul.f32 %v2832, %v1849
  %v2941 = vmul.f32 %v2833, %v1859
  %v2942 = vmul.f32 %v2834, %v1869
  %v2943 = vmul.f32 %v2835, %v1879
  %v2944 = vmul.f32 %v2836, %v1889
  %v2945 = vmul.f32 %v2837, %v1899
  %v2946 = vmul.f32 %v2838, %v1909
  %v2947 = vmul.f32 %v2839, %v1919
  %v2948 = vmul.f32 %v2840, %v1929
  %v2949 = vmul.f32 %v2841, %v1939
  %v2950 = vmul.f32 %v2842, %v1949
  %v2951 = vmul.f32 %v2843, %v1959
  %v2952 = vmul.f32 %v2844, %v1969
  %v2953 = vmul.f32 %v2845, %v1979
  %v2954 = vmul.f32 %v2846, %v1989
  %v2955 = vmul.f32 %v2847, %v1999
  %v2956 = vmul.f32 %v2848, %v2009
  %v2957 = vmul.f32 %v2849, %v2019
  %v2958 = vmul.f32 %v2850, %v2029
  %v2959 = vmul.f32 %v2851, %v2039
  %v2960 = vmul.f32 %v2852, %v2049
  %v2961 = vmul.f32 %v2853, %v2059
  %v2962 = vmul.f32 %v2854, %v2069
  %v2963 = vmul.f32 %v2855, %v2079
  %v2964 = vmul.f32 %v2856, %v2089
  %v2965 = vmul.f32 %v2857, %v2099
  %v2966 = vmul.f32 %v2858, %v2109
  %v2967 = vmul.f32 %v2859, %v2119
  %v2968 = vmul.f32 %v2860, %v2129
  %v2969 = vmul.f32 %v2861, %v2139
  %v2970 = vmul.f32 %v2862, %v2149
  %v2971 = vmul.f32 %v2863, %v2159
  %v2972 = vmul.f32 %v2864, %v2169
  %v2973 = vmul.f32 %v2865, %v2179
  %v2974 = vmul.f32 %v2866, %v2189
  %v2975 = vmul.f32 %v2867, %v2199
  %v2976 = vmul.f32 %v2868, %v2209
  %v2977 = vmul.f32 %v2869, %v2219
  %v2978 = vmul.f32 %v2870, %v2229
  %v2979 = vmul.f32 %v2871, %v2239
  %v2980 = vmul.f32 %v2872, %v2249
  %v2981 = vmul.f32 %v2873, %v2259
  %v2982 = vmul.f32 %v2874, %v2269
  %v2983 = vmul.f32 %v2875, %v2279
  %v2984 = vmul.f32 %v2876, %v2289
  %v2985 = vmul.f32 %v2877, %v2299
  %v2986 = vmul.f32 %v2878, %v2309
  %v2987 = vmul.f32 %v2879, %v2319
  %v2988 = vmul.f32 %v2880, %v2329
  %v2989 = vmul.f32 %v2881, %v2339
  %v2990 = vmul.f32 %v2882, %v2349
  %v2991 = vmul.f32 %v2883, %v2359
  %v2992 = vmul.f32 %v2884, %v2369
  %v2993 = vmul.f32 %v2885, %v2379
  %v2994 = vmul.f32 %v2886, %v2389
  %v2995 = vmul.f32 %v2887, %v2399
  %v2996 = vmul.f32 %v2888, %v2409
  %v2997 = vmul.f32 %v2889, %v2419
  %v2998 = vmul.f32 %v2890, %v2429
  %v2999 = vmul.f32 %v2891, %v2439
  %v3000 = vmul.f32 %v2892, %v2449
  %v3001 = vmul.f32 %v2893, %v2459
  %v3002 = vmul.f32 %v2894, %v2469
  %v3003 = vmul.f32 %v2895, %v2479
  %v3004 = vmul.f32 %v2896, %v2489
  %v3005 = vmul.f32 %v2897, %v2499
  %v3006 = vmul.f32 %v2898, %v2509
  %v3007 = vmul.f32 %v2899, %v2519
  %v3008 = vmul.f32 %v2900, %v2529
  %v3009 = vmul.f32 %v2901, %v2539
  %v3010 = vmul.f32 %v2902, %v2549
  %v3011 = vmul.f32 %v2903, %v2559
  %v3012 = vmul.f32 %v2904, %v2569
  %v3013 = vmul.f32 %v2905, %v2579
  %v3014 = vmul.f32 %v2906, %v2589
  %v3015 = vmul.f32 %v2907, %v2599
  %v3016 = vmul.f32 %v2908, %v2609
  %v3017 = vmul.f32 %v2909, %v2619
  %v3018 = vmul.f32 %v2910, %v2629
  %v3019 = vmul.f32 %v2911, %v2639
  %v3020 = vmul.f32 %v2912, %v2649
  %v3021 = vmul.f32 %v2913, %v2659
  %v3022 = vmul.f32 %v2914, %v2669
  %v3023 = vmul.f32 %v2915, %v2679
  %v3024 = vmul.f32 %v2916, %v2689
  %v3025 = vmul.f32 %v2917, %v2699
  %v3026 = vmul.f32 %v2918, %v2709
  %v3027 = vmul.f32 %v2919, %v2719
  %v3028 = vmul.f32 %v2920, %v2729
  %v3029 = vmul.f32 %v2921, %v2739
  %v3030 = vmul.f32 %v2922, %v2749
  %v3031 = vmul.f32 %v2923, %v2759
  %v3032 = vmul.f32 %v2924, %v2769
  %v3033 = vmul.f32 %v2925, %v2779
  %v3034 = vmul.f32 %v2926, %v2789
  %v3035 = vmul.f32 %v2927, %v2799
  %v3036 = vmul.f32 %v2928, %v2809
  %v3037 = vmul.f32 %v2929, %v2819
  %v3038 = vmul.f32 %v1092, %v2930
  %v3039 = vmul.f32 %v1093, %v2931
  %v3040 = vmul.f32 %v1094, %v2932
  %v3041 = vmul.f32 %v1095, %v2933
  %v3042 = vmul.f32 %v1096, %v2934
  %v3043 = vmul.f32 %v1097, %v2935
  %v3044 = vmul.f32 %v1098, %v2936
  %v3045 = vmul.f32 %v1099, %v2937
  %v3046 = vmul.f32 %v1100, %v2938
  %v3047 = vmul.f32 %v1101, %v2939
  %v3048 = vmul.f32 %v1102, %v2940
  %v3049 = vmul.f32 %v1103, %v2941
  %v3050 = vmul.f32 %v1104, %v2942
  %v3051 = vmul.f32 %v1105, %v2943
  %v3052 = vmul.f32 %v1106, %v2944
  %v3053 = vmul.f32 %v1107, %v2945
  %v3054 = vmul.f32 %v1108, %v2946
  %v3055 = vmul.f32 %v1109, %v2947
  %v3056 = vmul.f32 %v1110, %v2948
  %v3057 = vmul.f32 %v1111, %v2949
  %v3058 = vmul.f32 %v1112, %v2950
  %v3059 = vmul.f32 %v1113, %v2951
  %v3060 = vmul.f32 %v1114, %v2952
  %v3061 = vmul.f32 %v1115, %v2953
  %v3062 = vmul.f32 %v1116, %v2954
  %v3063 = vmul.f32 %v1117, %v2955
  %v3064 = vmul.f32 %v1118, %v2956
  %v3065 = vmul.f32 %v1119, %v2957
  %v3066 = vmul.f32 %v1120, %v2958
  %v3067 = vmul.f32 %v1121, %v2959
  %v3068 = vmul.f32 %v1122, %v2960
  %v3069 = vmul.f32 %v1123, %v2961
  %v3070 = vmul.f32 %v1124, %v2962
  %v3071 = vmul.f32 %v1125, %v2963
  %v3072 = vmul.f32 %v1126, %v2964
  %v3073 = vmul.f32 %v1127, %v2965
  %v3074 = vmul.f32 %v1128, %v2966
  %v3075 = vmul.f32 %v1129, %v2967
  %v3076 = vmul.f32 %v1130, %v2968
  %v3077 = vmul.f32 %v1131, %v2969
  %v3078 = vmul.f32 %v1132, %v2970
  %v3079 = vmul.f32 %v1133, %v2971
  %v3080 = vmul.f32 %v1134, %v2972
  %v3081 = vmul.f32 %v1135, %v2973
  %v3082 = vmul.f32 %v1136, %v2974
  %v3083 = vmul.f32 %v1137, %v2975
  %v3084 = vmul.f32 %v1138, %v2976
  %v3085 = vmul.f32 %v1139, %v2977
  %v3086 = vmul.f32 %v1140, %v2978
  %v3087 = vmul.f32 %v1141, %v2979
  %v3088 = vmul.f32 %v1142, %v2980
  %v3089 = vmul.f32 %v1143, %v2981
  %v3090 = vmul.f32 %v1144, %v2982
  %v3091 = vmul.f32 %v1145, %v2983
  %v3092 = vmul.f32 %v1146, %v2984
  %v3093 = vmul.f32 %v1147, %v2985
  %v3094 = vmul.f32 %v1148, %v2986
  %v3095 = vmul.f32 %v1149, %v2987
  %v3096 = vmul.f32 %v1150, %v2988
  %v3097 = vmul.f32 %v1151, %v2989
  %v3098 = vmul.f32 %v1152, %v2990
  %v3099 = vmul.f32 %v1153, %v2991
  %v3100 = vmul.f32 %v1154, %v2992
  %v3101 = vmul.f32 %v1155, %v2993
  %v3102 = vmul.f32 %v1156, %v2994
  %v3103 = vmul.f32 %v1157, %v2995
  %v3104 = vmul.f32 %v1158, %v2996
  %v3105 = vmul.f32 %v1159, %v2997
  %v3106 = vmul.f32 %v1160, %v2998
  %v3107 = vmul.f32 %v1161, %v2999
  %v3108 = vmul.f32 %v1162, %v3000
  %v3109 = vmul.f32 %v1163, %v3001
  %v3110 = vmul.f32 %v1164, %v3002
  %v3111 = vmul.f32 %v1165, %v3003
  %v3112 = vmul.f32 %v1166, %v3004
  %v3113 = vmul.f32 %v1167, %v3005
  %v3114 = vmul.f32 %v1168, %v3006
  %v3115 = vmul.f32 %v1169, %v3007
  %v3116 = vmul.f32 %v1170, %v3008
  %v3117 = vmul.f32 %v1171, %v3009
  %v3118 = vmul.f32 %v1172, %v3010
  %v3119 = vmul.f32 %v1173, %v3011
  %v3120 = vmul.f32 %v1174, %v3012
  %v3121 = vmul.f32 %v1175, %v3013
  %v3122 = vmul.f32 %v1176, %v3014
  %v3123 = vmul.f32 %v1177, %v3015
  %v3124 = vmul.f32 %v1178, %v3016
  %v3125 = vmul.f32 %v1179, %v3017
  %v3126 = vmul.f32 %v1180, %v3018
  %v3127 = vmul.f32 %v1181, %v3019
  %v3128 = vmul.f32 %v1182, %v3020
  %v3129 = vmul.f32 %v1183, %v3021
  %v3130 = vmul.f32 %v1184, %v3022
  %v3131 = vmul.f32 %v1185, %v3023
  %v3132 = vmul.f32 %v1186, %v3024
  %v3133 = vmul.f32 %v1187, %v3025
  %v3134 = vmul.f32 %v1188, %v3026
  %v3135 = vmul.f32 %v1189, %v3027
  %v3136 = vmul.f32 %v1190, %v3028
  %v3137 = vmul.f32 %v1191, %v3029
  %v3138 = vmul.f32 %v1192, %v3030
  %v3139 = vmul.f32 %v1193, %v3031
  %v3140 = vmul.f32 %v1194, %v3032
  %v3141 = vmul.f32 %v1195, %v3033
  %v3142 = vmul.f32 %v1196, %v3034
  %v3143 = vmul.f32 %v1197, %v3035
  %v3144 = vmul.f32 %v1198, %v3036
  %v3145 = vmul.f32 %v1199, %v3037
  %3254 = vrot.lane.b32.xlu0 %v3038, 1
  %v3255 = vpop.permute.xlu0 %3254
  %3256 = vrot.lane.b32.xlu0 %v3039, 1
  %v3257 = vpop.permute.xlu0 %3256
  %3258 = vrot.lane.b32.xlu0 %v3040, 1
  %v3259 = vpop.permute.xlu0 %3258
  %3260 = vrot.lane.b32.xlu0 %v3041, 1
  %v3261 = vpop.permute.xlu0 %3260
  %3262 = vrot.lane.b32.xlu0 %v3042, 1
  %v3263 = vpop.permute.xlu0 %3262
  %3264 = vrot.lane.b32.xlu0 %v3043, 1
  %v3265 = vpop.permute.xlu0 %3264
  %3266 = vrot.lane.b32.xlu0 %v3044, 1
  %v3267 = vpop.permute.xlu0 %3266
  %3268 = vrot.lane.b32.xlu0 %v3045, 1
  %v3269 = vpop.permute.xlu0 %3268
  %3270 = vrot.lane.b32.xlu0 %v3046, 1
  %v3271 = vpop.permute.xlu0 %3270
  %3272 = vrot.lane.b32.xlu0 %v3047, 1
  %v3273 = vpop.permute.xlu0 %3272
  %3274 = vrot.lane.b32.xlu0 %v3048, 1
  %v3275 = vpop.permute.xlu0 %3274
  %3276 = vrot.lane.b32.xlu0 %v3049, 1
  %v3277 = vpop.permute.xlu0 %3276
  %3278 = vrot.lane.b32.xlu0 %v3050, 1
  %v3279 = vpop.permute.xlu0 %3278
  %3280 = vrot.lane.b32.xlu0 %v3051, 1
  %v3281 = vpop.permute.xlu0 %3280
  %3282 = vrot.lane.b32.xlu0 %v3052, 1
  %v3283 = vpop.permute.xlu0 %3282
  %3284 = vrot.lane.b32.xlu0 %v3053, 1
  %v3285 = vpop.permute.xlu0 %3284
  %3286 = vrot.lane.b32.xlu0 %v3054, 1
  %v3287 = vpop.permute.xlu0 %3286
  %3288 = vrot.lane.b32.xlu0 %v3055, 1
  %v3289 = vpop.permute.xlu0 %3288
  %3290 = vrot.lane.b32.xlu0 %v3056, 1
  %v3291 = vpop.permute.xlu0 %3290
  %3292 = vrot.lane.b32.xlu0 %v3057, 1
  %v3293 = vpop.permute.xlu0 %3292
  %3294 = vrot.lane.b32.xlu0 %v3058, 1
  %v3295 = vpop.permute.xlu0 %3294
  %3296 = vrot.lane.b32.xlu0 %v3059, 1
  %v3297 = vpop.permute.xlu0 %3296
  %3298 = vrot.lane.b32.xlu0 %v3060, 1
  %v3299 = vpop.permute.xlu0 %3298
  %3300 = vrot.lane.b32.xlu0 %v3061, 1
  %v3301 = vpop.permute.xlu0 %3300
  %3302 = vrot.lane.b32.xlu0 %v3062, 1
  %v3303 = vpop.permute.xlu0 %3302
  %3304 = vrot.lane.b32.xlu0 %v3063, 1
  %v3305 = vpop.permute.xlu0 %3304
  %3306 = vrot.lane.b32.xlu0 %v3064, 1
  %v3307 = vpop.permute.xlu0 %3306
  %3308 = vrot.lane.b32.xlu0 %v3065, 1
  %v3309 = vpop.permute.xlu0 %3308
  %3310 = vrot.lane.b32.xlu0 %v3066, 1
  %v3311 = vpop.permute.xlu0 %3310
  %3312 = vrot.lane.b32.xlu0 %v3067, 1
  %v3313 = vpop.permute.xlu0 %3312
  %3314 = vrot.lane.b32.xlu0 %v3068, 1
  %v3315 = vpop.permute.xlu0 %3314
  %3316 = vrot.lane.b32.xlu0 %v3069, 1
  %v3317 = vpop.permute.xlu0 %3316
  %3318 = vrot.lane.b32.xlu0 %v3070, 1
  %v3319 = vpop.permute.xlu0 %3318
  %3320 = vrot.lane.b32.xlu0 %v3071, 1
  %v3321 = vpop.permute.xlu0 %3320
  %3322 = vrot.lane.b32.xlu0 %v3072, 1
  %v3323 = vpop.permute.xlu0 %3322
  %3324 = vrot.lane.b32.xlu0 %v3073, 1
  %v3325 = vpop.permute.xlu0 %3324
  %3326 = vrot.lane.b32.xlu0 %v3074, 1
  %v3327 = vpop.permute.xlu0 %3326
  %3328 = vrot.lane.b32.xlu0 %v3075, 1
  %v3329 = vpop.permute.xlu0 %3328
  %3330 = vrot.lane.b32.xlu0 %v3076, 1
  %v3331 = vpop.permute.xlu0 %3330
  %3332 = vrot.lane.b32.xlu0 %v3077, 1
  %v3333 = vpop.permute.xlu0 %3332
  %3334 = vrot.lane.b32.xlu0 %v3078, 1
  %v3335 = vpop.permute.xlu0 %3334
  %3336 = vrot.lane.b32.xlu0 %v3079, 1
  %v3337 = vpop.permute.xlu0 %3336
  %3338 = vrot.lane.b32.xlu0 %v3080, 1
  %v3339 = vpop.permute.xlu0 %3338
  %3340 = vrot.lane.b32.xlu0 %v3081, 1
  %v3341 = vpop.permute.xlu0 %3340
  %3342 = vrot.lane.b32.xlu0 %v3082, 1
  %v3343 = vpop.permute.xlu0 %3342
  %3344 = vrot.lane.b32.xlu0 %v3083, 1
  %v3345 = vpop.permute.xlu0 %3344
  %3346 = vrot.lane.b32.xlu0 %v3084, 1
  %v3347 = vpop.permute.xlu0 %3346
  %3348 = vrot.lane.b32.xlu0 %v3085, 1
  %v3349 = vpop.permute.xlu0 %3348
  %3350 = vrot.lane.b32.xlu0 %v3086, 1
  %v3351 = vpop.permute.xlu0 %3350
  %3352 = vrot.lane.b32.xlu0 %v3087, 1
  %v3353 = vpop.permute.xlu0 %3352
  %3354 = vrot.lane.b32.xlu0 %v3088, 1
  %v3355 = vpop.permute.xlu0 %3354
  %3356 = vrot.lane.b32.xlu0 %v3089, 1
  %v3357 = vpop.permute.xlu0 %3356
  %3358 = vrot.lane.b32.xlu0 %v3090, 1
  %v3359 = vpop.permute.xlu0 %3358
  %3360 = vrot.lane.b32.xlu0 %v3091, 1
  %v3361 = vpop.permute.xlu0 %3360
  %3362 = vrot.lane.b32.xlu0 %v3092, 1
  %v3363 = vpop.permute.xlu0 %3362
  %3364 = vrot.lane.b32.xlu0 %v3093, 1
  %v3365 = vpop.permute.xlu0 %3364
  %3366 = vrot.lane.b32.xlu0 %v3094, 1
  %v3367 = vpop.permute.xlu0 %3366
  %3368 = vrot.lane.b32.xlu0 %v3095, 1
  %v3369 = vpop.permute.xlu0 %3368
  %3370 = vrot.lane.b32.xlu0 %v3096, 1
  %v3371 = vpop.permute.xlu0 %3370
  %3372 = vrot.lane.b32.xlu0 %v3097, 1
  %v3373 = vpop.permute.xlu0 %3372
  %3374 = vrot.lane.b32.xlu0 %v3098, 1
  %v3375 = vpop.permute.xlu0 %3374
  %3376 = vrot.lane.b32.xlu0 %v3099, 1
  %v3377 = vpop.permute.xlu0 %3376
  %3378 = vrot.lane.b32.xlu0 %v3100, 1
  %v3379 = vpop.permute.xlu0 %3378
  %3380 = vrot.lane.b32.xlu0 %v3101, 1
  %v3381 = vpop.permute.xlu0 %3380
  %3382 = vrot.lane.b32.xlu0 %v3102, 1
  %v3383 = vpop.permute.xlu0 %3382
  %3384 = vrot.lane.b32.xlu0 %v3103, 1
  %v3385 = vpop.permute.xlu0 %3384
  %3386 = vrot.lane.b32.xlu0 %v3104, 1
  %v3387 = vpop.permute.xlu0 %3386
  %3388 = vrot.lane.b32.xlu0 %v3105, 1
  %v3389 = vpop.permute.xlu0 %3388
  %3390 = vrot.lane.b32.xlu0 %v3106, 1
  %v3391 = vpop.permute.xlu0 %3390
  %3392 = vrot.lane.b32.xlu0 %v3107, 1
  %v3393 = vpop.permute.xlu0 %3392
  %3394 = vrot.lane.b32.xlu0 %v3108, 1
  %v3395 = vpop.permute.xlu0 %3394
  %3396 = vrot.lane.b32.xlu0 %v3109, 1
  %v3397 = vpop.permute.xlu0 %3396
  %3398 = vrot.lane.b32.xlu0 %v3110, 1
  %v3399 = vpop.permute.xlu0 %3398
  %3400 = vrot.lane.b32.xlu0 %v3111, 1
  %v3401 = vpop.permute.xlu0 %3400
  %3402 = vrot.lane.b32.xlu0 %v3112, 1
  %v3403 = vpop.permute.xlu0 %3402
  %3404 = vrot.lane.b32.xlu0 %v3113, 1
  %v3405 = vpop.permute.xlu0 %3404
  %3406 = vrot.lane.b32.xlu0 %v3114, 1
  %v3407 = vpop.permute.xlu0 %3406
  %3408 = vrot.lane.b32.xlu0 %v3115, 1
  %v3409 = vpop.permute.xlu0 %3408
  %3410 = vrot.lane.b32.xlu0 %v3116, 1
  %v3411 = vpop.permute.xlu0 %3410
  %3412 = vrot.lane.b32.xlu0 %v3117, 1
  %v3413 = vpop.permute.xlu0 %3412
  %3414 = vrot.lane.b32.xlu0 %v3118, 1
  %v3415 = vpop.permute.xlu0 %3414
  %3416 = vrot.lane.b32.xlu0 %v3119, 1
  %v3417 = vpop.permute.xlu0 %3416
  %3418 = vrot.lane.b32.xlu0 %v3120, 1
  %v3419 = vpop.permute.xlu0 %3418
  %3420 = vrot.lane.b32.xlu0 %v3121, 1
  %v3421 = vpop.permute.xlu0 %3420
  %3422 = vrot.lane.b32.xlu0 %v3122, 1
  %v3423 = vpop.permute.xlu0 %3422
  %3424 = vrot.lane.b32.xlu0 %v3123, 1
  %v3425 = vpop.permute.xlu0 %3424
  %3426 = vrot.lane.b32.xlu0 %v3124, 1
  %v3427 = vpop.permute.xlu0 %3426
  %3428 = vrot.lane.b32.xlu0 %v3125, 1
  %v3429 = vpop.permute.xlu0 %3428
  %3430 = vrot.lane.b32.xlu0 %v3126, 1
  %v3431 = vpop.permute.xlu0 %3430
  %3432 = vrot.lane.b32.xlu0 %v3127, 1
  %v3433 = vpop.permute.xlu0 %3432
  %3434 = vrot.lane.b32.xlu0 %v3128, 1
  %v3435 = vpop.permute.xlu0 %3434
  %3436 = vrot.lane.b32.xlu0 %v3129, 1
  %v3437 = vpop.permute.xlu0 %3436
  %3438 = vrot.lane.b32.xlu0 %v3130, 1
  %v3439 = vpop.permute.xlu0 %3438
  %3440 = vrot.lane.b32.xlu0 %v3131, 1
  %v3441 = vpop.permute.xlu0 %3440
  %3442 = vrot.lane.b32.xlu0 %v3132, 1
  %v3443 = vpop.permute.xlu0 %3442
  %3444 = vrot.lane.b32.xlu0 %v3133, 1
  %v3445 = vpop.permute.xlu0 %3444
  %3446 = vrot.lane.b32.xlu0 %v3134, 1
  %v3447 = vpop.permute.xlu0 %3446
  %3448 = vrot.lane.b32.xlu0 %v3135, 1
  %v3449 = vpop.permute.xlu0 %3448
  %3450 = vrot.lane.b32.xlu0 %v3136, 1
  %v3451 = vpop.permute.xlu0 %3450
  %3452 = vrot.lane.b32.xlu0 %v3137, 1
  %v3453 = vpop.permute.xlu0 %3452
  %3454 = vrot.lane.b32.xlu0 %v3138, 1
  %v3455 = vpop.permute.xlu0 %3454
  %3456 = vrot.lane.b32.xlu0 %v3139, 1
  %v3457 = vpop.permute.xlu0 %3456
  %3458 = vrot.lane.b32.xlu0 %v3140, 1
  %v3459 = vpop.permute.xlu0 %3458
  %3460 = vrot.lane.b32.xlu0 %v3141, 1
  %v3461 = vpop.permute.xlu0 %3460
  %3462 = vrot.lane.b32.xlu0 %v3142, 1
  %v3463 = vpop.permute.xlu0 %3462
  %3464 = vrot.lane.b32.xlu0 %v3143, 1
  %v3465 = vpop.permute.xlu0 %3464
  %3466 = vrot.lane.b32.xlu0 %v3144, 1
  %v3467 = vpop.permute.xlu0 %3466
  %3468 = vrot.lane.b32.xlu0 %v3145, 1
  %v3469 = vpop.permute.xlu0 %3468
  %v3578 = vsub.f32 %v2822, %v3255
  %v3579 = vsub.f32 %v2823, %v3257
  %v3580 = vsub.f32 %v2824, %v3259
  %v3581 = vsub.f32 %v2825, %v3261
  %v3582 = vsub.f32 %v2826, %v3263
  %v3583 = vsub.f32 %v2827, %v3265
  %v3584 = vsub.f32 %v2828, %v3267
  %v3585 = vsub.f32 %v2829, %v3269
  %v3586 = vsub.f32 %v2830, %v3271
  %v3587 = vsub.f32 %v2831, %v3273
  %v3588 = vsub.f32 %v2832, %v3275
  %v3589 = vsub.f32 %v2833, %v3277
  %v3590 = vsub.f32 %v2834, %v3279
  %v3591 = vsub.f32 %v2835, %v3281
  %v3592 = vsub.f32 %v2836, %v3283
  %v3593 = vsub.f32 %v2837, %v3285
  %v3594 = vsub.f32 %v2838, %v3287
  %v3595 = vsub.f32 %v2839, %v3289
  %v3596 = vsub.f32 %v2840, %v3291
  %v3597 = vsub.f32 %v2841, %v3293
  %v3598 = vsub.f32 %v2842, %v3295
  %v3599 = vsub.f32 %v2843, %v3297
  %v3600 = vsub.f32 %v2844, %v3299
  %v3601 = vsub.f32 %v2845, %v3301
  %v3602 = vsub.f32 %v2846, %v3303
  %v3603 = vsub.f32 %v2847, %v3305
  %v3604 = vsub.f32 %v2848, %v3307
  %v3605 = vsub.f32 %v2849, %v3309
  %v3606 = vsub.f32 %v2850, %v3311
  %v3607 = vsub.f32 %v2851, %v3313
  %v3608 = vsub.f32 %v2852, %v3315
  %v3609 = vsub.f32 %v2853, %v3317
  %v3610 = vsub.f32 %v2854, %v3319
  %v3611 = vsub.f32 %v2855, %v3321
  %v3612 = vsub.f32 %v2856, %v3323
  %v3613 = vsub.f32 %v2857, %v3325
  %v3614 = vsub.f32 %v2858, %v3327
  %v3615 = vsub.f32 %v2859, %v3329
  %v3616 = vsub.f32 %v2860, %v3331
  %v3617 = vsub.f32 %v2861, %v3333
  %v3618 = vsub.f32 %v2862, %v3335
  %v3619 = vsub.f32 %v2863, %v3337
  %v3620 = vsub.f32 %v2864, %v3339
  %v3621 = vsub.f32 %v2865, %v3341
  %v3622 = vsub.f32 %v2866, %v3343
  %v3623 = vsub.f32 %v2867, %v3345
  %v3624 = vsub.f32 %v2868, %v3347
  %v3625 = vsub.f32 %v2869, %v3349
  %v3626 = vsub.f32 %v2870, %v3351
  %v3627 = vsub.f32 %v2871, %v3353
  %v3628 = vsub.f32 %v2872, %v3355
  %v3629 = vsub.f32 %v2873, %v3357
  %v3630 = vsub.f32 %v2874, %v3359
  %v3631 = vsub.f32 %v2875, %v3361
  %v3632 = vsub.f32 %v2876, %v3363
  %v3633 = vsub.f32 %v2877, %v3365
  %v3634 = vsub.f32 %v2878, %v3367
  %v3635 = vsub.f32 %v2879, %v3369
  %v3636 = vsub.f32 %v2880, %v3371
  %v3637 = vsub.f32 %v2881, %v3373
  %v3638 = vsub.f32 %v2882, %v3375
  %v3639 = vsub.f32 %v2883, %v3377
  %v3640 = vsub.f32 %v2884, %v3379
  %v3641 = vsub.f32 %v2885, %v3381
  %v3642 = vsub.f32 %v2886, %v3383
  %v3643 = vsub.f32 %v2887, %v3385
  %v3644 = vsub.f32 %v2888, %v3387
  %v3645 = vsub.f32 %v2889, %v3389
  %v3646 = vsub.f32 %v2890, %v3391
  %v3647 = vsub.f32 %v2891, %v3393
  %v3648 = vsub.f32 %v2892, %v3395
  %v3649 = vsub.f32 %v2893, %v3397
  %v3650 = vsub.f32 %v2894, %v3399
  %v3651 = vsub.f32 %v2895, %v3401
  %v3652 = vsub.f32 %v2896, %v3403
  %v3653 = vsub.f32 %v2897, %v3405
  %v3654 = vsub.f32 %v2898, %v3407
  %v3655 = vsub.f32 %v2899, %v3409
  %v3656 = vsub.f32 %v2900, %v3411
  %v3657 = vsub.f32 %v2901, %v3413
  %v3658 = vsub.f32 %v2902, %v3415
  %v3659 = vsub.f32 %v2903, %v3417
  %v3660 = vsub.f32 %v2904, %v3419
  %v3661 = vsub.f32 %v2905, %v3421
  %v3662 = vsub.f32 %v2906, %v3423
  %v3663 = vsub.f32 %v2907, %v3425
  %v3664 = vsub.f32 %v2908, %v3427
  %v3665 = vsub.f32 %v2909, %v3429
  %v3666 = vsub.f32 %v2910, %v3431
  %v3667 = vsub.f32 %v2911, %v3433
  %v3668 = vsub.f32 %v2912, %v3435
  %v3669 = vsub.f32 %v2913, %v3437
  %v3670 = vsub.f32 %v2914, %v3439
  %v3671 = vsub.f32 %v2915, %v3441
  %v3672 = vsub.f32 %v2916, %v3443
  %v3673 = vsub.f32 %v2917, %v3445
  %v3674 = vsub.f32 %v2918, %v3447
  %v3675 = vsub.f32 %v2919, %v3449
  %v3676 = vsub.f32 %v2920, %v3451
  %v3677 = vsub.f32 %v2921, %v3453
  %v3678 = vsub.f32 %v2922, %v3455
  %v3679 = vsub.f32 %v2923, %v3457
  %v3680 = vsub.f32 %v2924, %v3459
  %v3681 = vsub.f32 %v2925, %v3461
  %v3682 = vsub.f32 %v2926, %v3463
  %v3683 = vsub.f32 %v2927, %v3465
  %v3684 = vsub.f32 %v2928, %v3467
  %v3685 = vsub.f32 %v2929, %v3469
  %3687 = vset.pattern.permute.xlu0 0
  %3688 = vperm.xlu0 %3687, %v2930
  %v3689 = vpop.permute.xlu0 %3688
  %3692 = vset.pattern.permute.xlu0 0
  %3693 = vperm.xlu0 %3692, %v2931
  %v3694 = vpop.permute.xlu0 %3693
  %3697 = vset.pattern.permute.xlu0 0
  %3698 = vperm.xlu0 %3697, %v2932
  %v3699 = vpop.permute.xlu0 %3698
  %3702 = vset.pattern.permute.xlu0 0
  %3703 = vperm.xlu0 %3702, %v2933
  %v3704 = vpop.permute.xlu0 %3703
  %3707 = vset.pattern.permute.xlu0 0
  %3708 = vperm.xlu0 %3707, %v2934
  %v3709 = vpop.permute.xlu0 %3708
  %3712 = vset.pattern.permute.xlu0 0
  %3713 = vperm.xlu0 %3712, %v2935
  %v3714 = vpop.permute.xlu0 %3713
  %3717 = vset.pattern.permute.xlu0 0
  %3718 = vperm.xlu0 %3717, %v2936
  %v3719 = vpop.permute.xlu0 %3718
  %3722 = vset.pattern.permute.xlu0 0
  %3723 = vperm.xlu0 %3722, %v2937
  %v3724 = vpop.permute.xlu0 %3723
  %3727 = vset.pattern.permute.xlu0 0
  %3728 = vperm.xlu0 %3727, %v2938
  %v3729 = vpop.permute.xlu0 %3728
  %3732 = vset.pattern.permute.xlu0 0
  %3733 = vperm.xlu0 %3732, %v2939
  %v3734 = vpop.permute.xlu0 %3733
  %3737 = vset.pattern.permute.xlu0 0
  %3738 = vperm.xlu0 %3737, %v2940
  %v3739 = vpop.permute.xlu0 %3738
  %3742 = vset.pattern.permute.xlu0 0
  %3743 = vperm.xlu0 %3742, %v2941
  %v3744 = vpop.permute.xlu0 %3743
  %3747 = vset.pattern.permute.xlu0 0
  %3748 = vperm.xlu0 %3747, %v2942
  %v3749 = vpop.permute.xlu0 %3748
  %3752 = vset.pattern.permute.xlu0 0
  %3753 = vperm.xlu0 %3752, %v2943
  %v3754 = vpop.permute.xlu0 %3753
  %3757 = vset.pattern.permute.xlu0 0
  %3758 = vperm.xlu0 %3757, %v2944
  %v3759 = vpop.permute.xlu0 %3758
  %3762 = vset.pattern.permute.xlu0 0
  %3763 = vperm.xlu0 %3762, %v2945
  %v3764 = vpop.permute.xlu0 %3763
  %3767 = vset.pattern.permute.xlu0 0
  %3768 = vperm.xlu0 %3767, %v2946
  %v3769 = vpop.permute.xlu0 %3768
  %3772 = vset.pattern.permute.xlu0 0
  %3773 = vperm.xlu0 %3772, %v2947
  %v3774 = vpop.permute.xlu0 %3773
  %3777 = vset.pattern.permute.xlu0 0
  %3778 = vperm.xlu0 %3777, %v2948
  %v3779 = vpop.permute.xlu0 %3778
  %3782 = vset.pattern.permute.xlu0 0
  %3783 = vperm.xlu0 %3782, %v2949
  %v3784 = vpop.permute.xlu0 %3783
  %3787 = vset.pattern.permute.xlu0 0
  %3788 = vperm.xlu0 %3787, %v2950
  %v3789 = vpop.permute.xlu0 %3788
  %3792 = vset.pattern.permute.xlu0 0
  %3793 = vperm.xlu0 %3792, %v2951
  %v3794 = vpop.permute.xlu0 %3793
  %3797 = vset.pattern.permute.xlu0 0
  %3798 = vperm.xlu0 %3797, %v2952
  %v3799 = vpop.permute.xlu0 %3798
  %3802 = vset.pattern.permute.xlu0 0
  %3803 = vperm.xlu0 %3802, %v2953
  %v3804 = vpop.permute.xlu0 %3803
  %3807 = vset.pattern.permute.xlu0 0
  %3808 = vperm.xlu0 %3807, %v2954
  %v3809 = vpop.permute.xlu0 %3808
  %3812 = vset.pattern.permute.xlu0 0
  %3813 = vperm.xlu0 %3812, %v2955
  %v3814 = vpop.permute.xlu0 %3813
  %3817 = vset.pattern.permute.xlu0 0
  %3818 = vperm.xlu0 %3817, %v2956
  %v3819 = vpop.permute.xlu0 %3818
  %3822 = vset.pattern.permute.xlu0 0
  %3823 = vperm.xlu0 %3822, %v2957
  %v3824 = vpop.permute.xlu0 %3823
  %3827 = vset.pattern.permute.xlu0 0
  %3828 = vperm.xlu0 %3827, %v2958
  %v3829 = vpop.permute.xlu0 %3828
  %3832 = vset.pattern.permute.xlu0 0
  %3833 = vperm.xlu0 %3832, %v2959
  %v3834 = vpop.permute.xlu0 %3833
  %3837 = vset.pattern.permute.xlu0 0
  %3838 = vperm.xlu0 %3837, %v2960
  %v3839 = vpop.permute.xlu0 %3838
  %3842 = vset.pattern.permute.xlu0 0
  %3843 = vperm.xlu0 %3842, %v2961
  %v3844 = vpop.permute.xlu0 %3843
  %3847 = vset.pattern.permute.xlu0 0
  %3848 = vperm.xlu0 %3847, %v2962
  %v3849 = vpop.permute.xlu0 %3848
  %3852 = vset.pattern.permute.xlu0 0
  %3853 = vperm.xlu0 %3852, %v2963
  %v3854 = vpop.permute.xlu0 %3853
  %3857 = vset.pattern.permute.xlu0 0
  %3858 = vperm.xlu0 %3857, %v2964
  %v3859 = vpop.permute.xlu0 %3858
  %3862 = vset.pattern.permute.xlu0 0
  %3863 = vperm.xlu0 %3862, %v2965
  %v3864 = vpop.permute.xlu0 %3863
  %3867 = vset.pattern.permute.xlu0 0
  %3868 = vperm.xlu0 %3867, %v2966
  %v3869 = vpop.permute.xlu0 %3868
  %3872 = vset.pattern.permute.xlu0 0
  %3873 = vperm.xlu0 %3872, %v2967
  %v3874 = vpop.permute.xlu0 %3873
  %3877 = vset.pattern.permute.xlu0 0
  %3878 = vperm.xlu0 %3877, %v2968
  %v3879 = vpop.permute.xlu0 %3878
  %3882 = vset.pattern.permute.xlu0 0
  %3883 = vperm.xlu0 %3882, %v2969
  %v3884 = vpop.permute.xlu0 %3883
  %3887 = vset.pattern.permute.xlu0 0
  %3888 = vperm.xlu0 %3887, %v2970
  %v3889 = vpop.permute.xlu0 %3888
  %3892 = vset.pattern.permute.xlu0 0
  %3893 = vperm.xlu0 %3892, %v2971
  %v3894 = vpop.permute.xlu0 %3893
  %3897 = vset.pattern.permute.xlu0 0
  %3898 = vperm.xlu0 %3897, %v2972
  %v3899 = vpop.permute.xlu0 %3898
  %3902 = vset.pattern.permute.xlu0 0
  %3903 = vperm.xlu0 %3902, %v2973
  %v3904 = vpop.permute.xlu0 %3903
  %3907 = vset.pattern.permute.xlu0 0
  %3908 = vperm.xlu0 %3907, %v2974
  %v3909 = vpop.permute.xlu0 %3908
  %3912 = vset.pattern.permute.xlu0 0
  %3913 = vperm.xlu0 %3912, %v2975
  %v3914 = vpop.permute.xlu0 %3913
  %3917 = vset.pattern.permute.xlu0 0
  %3918 = vperm.xlu0 %3917, %v2976
  %v3919 = vpop.permute.xlu0 %3918
  %3922 = vset.pattern.permute.xlu0 0
  %3923 = vperm.xlu0 %3922, %v2977
  %v3924 = vpop.permute.xlu0 %3923
  %3927 = vset.pattern.permute.xlu0 0
  %3928 = vperm.xlu0 %3927, %v2978
  %v3929 = vpop.permute.xlu0 %3928
  %3932 = vset.pattern.permute.xlu0 0
  %3933 = vperm.xlu0 %3932, %v2979
  %v3934 = vpop.permute.xlu0 %3933
  %3937 = vset.pattern.permute.xlu0 0
  %3938 = vperm.xlu0 %3937, %v2980
  %v3939 = vpop.permute.xlu0 %3938
  %3942 = vset.pattern.permute.xlu0 0
  %3943 = vperm.xlu0 %3942, %v2981
  %v3944 = vpop.permute.xlu0 %3943
  %3947 = vset.pattern.permute.xlu0 0
  %3948 = vperm.xlu0 %3947, %v2982
  %v3949 = vpop.permute.xlu0 %3948
  %3952 = vset.pattern.permute.xlu0 0
  %3953 = vperm.xlu0 %3952, %v2983
  %v3954 = vpop.permute.xlu0 %3953
  %3957 = vset.pattern.permute.xlu0 0
  %3958 = vperm.xlu0 %3957, %v2984
  %v3959 = vpop.permute.xlu0 %3958
  %3962 = vset.pattern.permute.xlu0 0
  %3963 = vperm.xlu0 %3962, %v2985
  %v3964 = vpop.permute.xlu0 %3963
  %3967 = vset.pattern.permute.xlu0 0
  %3968 = vperm.xlu0 %3967, %v2986
  %v3969 = vpop.permute.xlu0 %3968
  %3972 = vset.pattern.permute.xlu0 0
  %3973 = vperm.xlu0 %3972, %v2987
  %v3974 = vpop.permute.xlu0 %3973
  %3977 = vset.pattern.permute.xlu0 0
  %3978 = vperm.xlu0 %3977, %v2988
  %v3979 = vpop.permute.xlu0 %3978
  %3982 = vset.pattern.permute.xlu0 0
  %3983 = vperm.xlu0 %3982, %v2989
  %v3984 = vpop.permute.xlu0 %3983
  %3987 = vset.pattern.permute.xlu0 0
  %3988 = vperm.xlu0 %3987, %v2990
  %v3989 = vpop.permute.xlu0 %3988
  %3992 = vset.pattern.permute.xlu0 0
  %3993 = vperm.xlu0 %3992, %v2991
  %v3994 = vpop.permute.xlu0 %3993
  %3997 = vset.pattern.permute.xlu0 0
  %3998 = vperm.xlu0 %3997, %v2992
  %v3999 = vpop.permute.xlu0 %3998
  %4002 = vset.pattern.permute.xlu0 0
  %4003 = vperm.xlu0 %4002, %v2993
  %v4004 = vpop.permute.xlu0 %4003
  %4007 = vset.pattern.permute.xlu0 0
  %4008 = vperm.xlu0 %4007, %v2994
  %v4009 = vpop.permute.xlu0 %4008
  %4012 = vset.pattern.permute.xlu0 0
  %4013 = vperm.xlu0 %4012, %v2995
  %v4014 = vpop.permute.xlu0 %4013
  %4017 = vset.pattern.permute.xlu0 0
  %4018 = vperm.xlu0 %4017, %v2996
  %v4019 = vpop.permute.xlu0 %4018
  %4022 = vset.pattern.permute.xlu0 0
  %4023 = vperm.xlu0 %4022, %v2997
  %v4024 = vpop.permute.xlu0 %4023
  %4027 = vset.pattern.permute.xlu0 0
  %4028 = vperm.xlu0 %4027, %v2998
  %v4029 = vpop.permute.xlu0 %4028
  %4032 = vset.pattern.permute.xlu0 0
  %4033 = vperm.xlu0 %4032, %v2999
  %v4034 = vpop.permute.xlu0 %4033
  %4037 = vset.pattern.permute.xlu0 0
  %4038 = vperm.xlu0 %4037, %v3000
  %v4039 = vpop.permute.xlu0 %4038
  %4042 = vset.pattern.permute.xlu0 0
  %4043 = vperm.xlu0 %4042, %v3001
  %v4044 = vpop.permute.xlu0 %4043
  %4047 = vset.pattern.permute.xlu0 0
  %4048 = vperm.xlu0 %4047, %v3002
  %v4049 = vpop.permute.xlu0 %4048
  %4052 = vset.pattern.permute.xlu0 0
  %4053 = vperm.xlu0 %4052, %v3003
  %v4054 = vpop.permute.xlu0 %4053
  %4057 = vset.pattern.permute.xlu0 0
  %4058 = vperm.xlu0 %4057, %v3004
  %v4059 = vpop.permute.xlu0 %4058
  %4062 = vset.pattern.permute.xlu0 0
  %4063 = vperm.xlu0 %4062, %v3005
  %v4064 = vpop.permute.xlu0 %4063
  %4067 = vset.pattern.permute.xlu0 0
  %4068 = vperm.xlu0 %4067, %v3006
  %v4069 = vpop.permute.xlu0 %4068
  %4072 = vset.pattern.permute.xlu0 0
  %4073 = vperm.xlu0 %4072, %v3007
  %v4074 = vpop.permute.xlu0 %4073
  %4077 = vset.pattern.permute.xlu0 0
  %4078 = vperm.xlu0 %4077, %v3008
  %v4079 = vpop.permute.xlu0 %4078
  %4082 = vset.pattern.permute.xlu0 0
  %4083 = vperm.xlu0 %4082, %v3009
  %v4084 = vpop.permute.xlu0 %4083
  %4087 = vset.pattern.permute.xlu0 0
  %4088 = vperm.xlu0 %4087, %v3010
  %v4089 = vpop.permute.xlu0 %4088
  %4092 = vset.pattern.permute.xlu0 0
  %4093 = vperm.xlu0 %4092, %v3011
  %v4094 = vpop.permute.xlu0 %4093
  %4097 = vset.pattern.permute.xlu0 0
  %4098 = vperm.xlu0 %4097, %v3012
  %v4099 = vpop.permute.xlu0 %4098
  %4102 = vset.pattern.permute.xlu0 0
  %4103 = vperm.xlu0 %4102, %v3013
  %v4104 = vpop.permute.xlu0 %4103
  %4107 = vset.pattern.permute.xlu0 0
  %4108 = vperm.xlu0 %4107, %v3014
  %v4109 = vpop.permute.xlu0 %4108
  %4112 = vset.pattern.permute.xlu0 0
  %4113 = vperm.xlu0 %4112, %v3015
  %v4114 = vpop.permute.xlu0 %4113
  %4117 = vset.pattern.permute.xlu0 0
  %4118 = vperm.xlu0 %4117, %v3016
  %v4119 = vpop.permute.xlu0 %4118
  %4122 = vset.pattern.permute.xlu0 0
  %4123 = vperm.xlu0 %4122, %v3017
  %v4124 = vpop.permute.xlu0 %4123
  %4127 = vset.pattern.permute.xlu0 0
  %4128 = vperm.xlu0 %4127, %v3018
  %v4129 = vpop.permute.xlu0 %4128
  %4132 = vset.pattern.permute.xlu0 0
  %4133 = vperm.xlu0 %4132, %v3019
  %v4134 = vpop.permute.xlu0 %4133
  %4137 = vset.pattern.permute.xlu0 0
  %4138 = vperm.xlu0 %4137, %v3020
  %v4139 = vpop.permute.xlu0 %4138
  %4142 = vset.pattern.permute.xlu0 0
  %4143 = vperm.xlu0 %4142, %v3021
  %v4144 = vpop.permute.xlu0 %4143
  %4147 = vset.pattern.permute.xlu0 0
  %4148 = vperm.xlu0 %4147, %v3022
  %v4149 = vpop.permute.xlu0 %4148
  %4152 = vset.pattern.permute.xlu0 0
  %4153 = vperm.xlu0 %4152, %v3023
  %v4154 = vpop.permute.xlu0 %4153
  %4157 = vset.pattern.permute.xlu0 0
  %4158 = vperm.xlu0 %4157, %v3024
  %v4159 = vpop.permute.xlu0 %4158
  %4162 = vset.pattern.permute.xlu0 0
  %4163 = vperm.xlu0 %4162, %v3025
  %v4164 = vpop.permute.xlu0 %4163
  %4167 = vset.pattern.permute.xlu0 0
  %4168 = vperm.xlu0 %4167, %v3026
  %v4169 = vpop.permute.xlu0 %4168
  %4172 = vset.pattern.permute.xlu0 0
  %4173 = vperm.xlu0 %4172, %v3027
  %v4174 = vpop.permute.xlu0 %4173
  %4177 = vset.pattern.permute.xlu0 0
  %4178 = vperm.xlu0 %4177, %v3028
  %v4179 = vpop.permute.xlu0 %4178
  %4182 = vset.pattern.permute.xlu0 0
  %4183 = vperm.xlu0 %4182, %v3029
  %v4184 = vpop.permute.xlu0 %4183
  %4187 = vset.pattern.permute.xlu0 0
  %4188 = vperm.xlu0 %4187, %v3030
  %v4189 = vpop.permute.xlu0 %4188
  %4192 = vset.pattern.permute.xlu0 0
  %4193 = vperm.xlu0 %4192, %v3031
  %v4194 = vpop.permute.xlu0 %4193
  %4197 = vset.pattern.permute.xlu0 0
  %4198 = vperm.xlu0 %4197, %v3032
  %v4199 = vpop.permute.xlu0 %4198
  %4202 = vset.pattern.permute.xlu0 0
  %4203 = vperm.xlu0 %4202, %v3033
  %v4204 = vpop.permute.xlu0 %4203
  %4207 = vset.pattern.permute.xlu0 0
  %4208 = vperm.xlu0 %4207, %v3034
  %v4209 = vpop.permute.xlu0 %4208
  %4212 = vset.pattern.permute.xlu0 0
  %4213 = vperm.xlu0 %4212, %v3035
  %v4214 = vpop.permute.xlu0 %4213
  %4217 = vset.pattern.permute.xlu0 0
  %4218 = vperm.xlu0 %4217, %v3036
  %v4219 = vpop.permute.xlu0 %4218
  %4222 = vset.pattern.permute.xlu0 0
  %4223 = vperm.xlu0 %4222, %v3037
  %v4224 = vpop.permute.xlu0 %4223
  %v4226 = vmul.f32 %v11, %v3689
  %v4227 = vmul.f32 %v12, %v3694
  %v4228 = vmul.f32 %v13, %v3699
  %v4229 = vmul.f32 %v14, %v3704
  %v4230 = vmul.f32 %v15, %v3709
  %v4231 = vmul.f32 %v16, %v3714
  %v4232 = vmul.f32 %v17, %v3719
  %v4233 = vmul.f32 %v18, %v3724
  %v4234 = vmul.f32 %v19, %v3729
  %v4235 = vmul.f32 %v20, %v3734
  %v4236 = vmul.f32 %v21, %v3739
  %v4237 = vmul.f32 %v22, %v3744
  %v4238 = vmul.f32 %v23, %v3749
  %v4239 = vmul.f32 %v24, %v3754
  %v4240 = vmul.f32 %v25, %v3759
  %v4241 = vmul.f32 %v26, %v3764
  %v4242 = vmul.f32 %v27, %v3769
  %v4243 = vmul.f32 %v28, %v3774
  %v4244 = vmul.f32 %v29, %v3779
  %v4245 = vmul.f32 %v30, %v3784
  %v4246 = vmul.f32 %v31, %v3789
  %v4247 = vmul.f32 %v32, %v3794
  %v4248 = vmul.f32 %v33, %v3799
  %v4249 = vmul.f32 %v34, %v3804
  %v4250 = vmul.f32 %v35, %v3809
  %v4251 = vmul.f32 %v36, %v3814
  %v4252 = vmul.f32 %v37, %v3819
  %v4253 = vmul.f32 %v38, %v3824
  %v4254 = vmul.f32 %v39, %v3829
  %v4255 = vmul.f32 %v40, %v3834
  %v4256 = vmul.f32 %v41, %v3839
  %v4257 = vmul.f32 %v42, %v3844
  %v4258 = vmul.f32 %v43, %v3849
  %v4259 = vmul.f32 %v44, %v3854
  %v4260 = vmul.f32 %v45, %v3859
  %v4261 = vmul.f32 %v46, %v3864
  %v4262 = vmul.f32 %v47, %v3869
  %v4263 = vmul.f32 %v48, %v3874
  %v4264 = vmul.f32 %v49, %v3879
  %v4265 = vmul.f32 %v50, %v3884
  %v4266 = vmul.f32 %v51, %v3889
  %v4267 = vmul.f32 %v52, %v3894
  %v4268 = vmul.f32 %v53, %v3899
  %v4269 = vmul.f32 %v54, %v3904
  %v4270 = vmul.f32 %v55, %v3909
  %v4271 = vmul.f32 %v56, %v3914
  %v4272 = vmul.f32 %v57, %v3919
  %v4273 = vmul.f32 %v58, %v3924
  %v4274 = vmul.f32 %v59, %v3929
  %v4275 = vmul.f32 %v60, %v3934
  %v4276 = vmul.f32 %v61, %v3939
  %v4277 = vmul.f32 %v62, %v3944
  %v4278 = vmul.f32 %v63, %v3949
  %v4279 = vmul.f32 %v64, %v3954
  %v4280 = vmul.f32 %v65, %v3959
  %v4281 = vmul.f32 %v66, %v3964
  %v4282 = vmul.f32 %v67, %v3969
  %v4283 = vmul.f32 %v68, %v3974
  %v4284 = vmul.f32 %v69, %v3979
  %v4285 = vmul.f32 %v70, %v3984
  %v4286 = vmul.f32 %v71, %v3989
  %v4287 = vmul.f32 %v72, %v3994
  %v4288 = vmul.f32 %v73, %v3999
  %v4289 = vmul.f32 %v74, %v4004
  %v4290 = vmul.f32 %v75, %v4009
  %v4291 = vmul.f32 %v76, %v4014
  %v4292 = vmul.f32 %v77, %v4019
  %v4293 = vmul.f32 %v78, %v4024
  %v4294 = vmul.f32 %v79, %v4029
  %v4295 = vmul.f32 %v80, %v4034
  %v4296 = vmul.f32 %v81, %v4039
  %v4297 = vmul.f32 %v82, %v4044
  %v4298 = vmul.f32 %v83, %v4049
  %v4299 = vmul.f32 %v84, %v4054
  %v4300 = vmul.f32 %v85, %v4059
  %v4301 = vmul.f32 %v86, %v4064
  %v4302 = vmul.f32 %v87, %v4069
  %v4303 = vmul.f32 %v88, %v4074
  %v4304 = vmul.f32 %v89, %v4079
  %v4305 = vmul.f32 %v90, %v4084
  %v4306 = vmul.f32 %v91, %v4089
  %v4307 = vmul.f32 %v92, %v4094
  %v4308 = vmul.f32 %v93, %v4099
  %v4309 = vmul.f32 %v94, %v4104
  %v4310 = vmul.f32 %v95, %v4109
  %v4311 = vmul.f32 %v96, %v4114
  %v4312 = vmul.f32 %v97, %v4119
  %v4313 = vmul.f32 %v98, %v4124
  %v4314 = vmul.f32 %v99, %v4129
  %v4315 = vmul.f32 %v100, %v4134
  %v4316 = vmul.f32 %v101, %v4139
  %v4317 = vmul.f32 %v102, %v4144
  %v4318 = vmul.f32 %v103, %v4149
  %v4319 = vmul.f32 %v104, %v4154
  %v4320 = vmul.f32 %v105, %v4159
  %v4321 = vmul.f32 %v106, %v4164
  %v4322 = vmul.f32 %v107, %v4169
  %v4323 = vmul.f32 %v108, %v4174
  %v4324 = vmul.f32 %v109, %v4179
  %v4325 = vmul.f32 %v110, %v4184
  %v4326 = vmul.f32 %v111, %v4189
  %v4327 = vmul.f32 %v112, %v4194
  %v4328 = vmul.f32 %v113, %v4199
  %v4329 = vmul.f32 %v114, %v4204
  %v4330 = vmul.f32 %v115, %v4209
  %v4331 = vmul.f32 %v116, %v4214
  %v4332 = vmul.f32 %v117, %v4219
  %v4333 = vmul.f32 %v118, %v4224
  %4335 = vset.pattern.permute.xlu0 1
  %4336 = vperm.xlu0 %4335, %v3578
  %v4337 = vpop.permute.xlu0 %4336
  %4340 = vset.pattern.permute.xlu0 1
  %4341 = vperm.xlu0 %4340, %v3579
  %v4342 = vpop.permute.xlu0 %4341
  %4345 = vset.pattern.permute.xlu0 1
  %4346 = vperm.xlu0 %4345, %v3580
  %v4347 = vpop.permute.xlu0 %4346
  %4350 = vset.pattern.permute.xlu0 1
  %4351 = vperm.xlu0 %4350, %v3581
  %v4352 = vpop.permute.xlu0 %4351
  %4355 = vset.pattern.permute.xlu0 1
  %4356 = vperm.xlu0 %4355, %v3582
  %v4357 = vpop.permute.xlu0 %4356
  %4360 = vset.pattern.permute.xlu0 1
  %4361 = vperm.xlu0 %4360, %v3583
  %v4362 = vpop.permute.xlu0 %4361
  %4365 = vset.pattern.permute.xlu0 1
  %4366 = vperm.xlu0 %4365, %v3584
  %v4367 = vpop.permute.xlu0 %4366
  %4370 = vset.pattern.permute.xlu0 1
  %4371 = vperm.xlu0 %4370, %v3585
  %v4372 = vpop.permute.xlu0 %4371
  %4375 = vset.pattern.permute.xlu0 1
  %4376 = vperm.xlu0 %4375, %v3586
  %v4377 = vpop.permute.xlu0 %4376
  %4380 = vset.pattern.permute.xlu0 1
  %4381 = vperm.xlu0 %4380, %v3587
  %v4382 = vpop.permute.xlu0 %4381
  %4385 = vset.pattern.permute.xlu0 1
  %4386 = vperm.xlu0 %4385, %v3588
  %v4387 = vpop.permute.xlu0 %4386
  %4390 = vset.pattern.permute.xlu0 1
  %4391 = vperm.xlu0 %4390, %v3589
  %v4392 = vpop.permute.xlu0 %4391
  %4395 = vset.pattern.permute.xlu0 1
  %4396 = vperm.xlu0 %4395, %v3590
  %v4397 = vpop.permute.xlu0 %4396
  %4400 = vset.pattern.permute.xlu0 1
  %4401 = vperm.xlu0 %4400, %v3591
  %v4402 = vpop.permute.xlu0 %4401
  %4405 = vset.pattern.permute.xlu0 1
  %4406 = vperm.xlu0 %4405, %v3592
  %v4407 = vpop.permute.xlu0 %4406
  %4410 = vset.pattern.permute.xlu0 1
  %4411 = vperm.xlu0 %4410, %v3593
  %v4412 = vpop.permute.xlu0 %4411
  %4415 = vset.pattern.permute.xlu0 1
  %4416 = vperm.xlu0 %4415, %v3594
  %v4417 = vpop.permute.xlu0 %4416
  %4420 = vset.pattern.permute.xlu0 1
  %4421 = vperm.xlu0 %4420, %v3595
  %v4422 = vpop.permute.xlu0 %4421
  %4425 = vset.pattern.permute.xlu0 1
  %4426 = vperm.xlu0 %4425, %v3596
  %v4427 = vpop.permute.xlu0 %4426
  %4430 = vset.pattern.permute.xlu0 1
  %4431 = vperm.xlu0 %4430, %v3597
  %v4432 = vpop.permute.xlu0 %4431
  %4435 = vset.pattern.permute.xlu0 1
  %4436 = vperm.xlu0 %4435, %v3598
  %v4437 = vpop.permute.xlu0 %4436
  %4440 = vset.pattern.permute.xlu0 1
  %4441 = vperm.xlu0 %4440, %v3599
  %v4442 = vpop.permute.xlu0 %4441
  %4445 = vset.pattern.permute.xlu0 1
  %4446 = vperm.xlu0 %4445, %v3600
  %v4447 = vpop.permute.xlu0 %4446
  %4450 = vset.pattern.permute.xlu0 1
  %4451 = vperm.xlu0 %4450, %v3601
  %v4452 = vpop.permute.xlu0 %4451
  %4455 = vset.pattern.permute.xlu0 1
  %4456 = vperm.xlu0 %4455, %v3602
  %v4457 = vpop.permute.xlu0 %4456
  %4460 = vset.pattern.permute.xlu0 1
  %4461 = vperm.xlu0 %4460, %v3603
  %v4462 = vpop.permute.xlu0 %4461
  %4465 = vset.pattern.permute.xlu0 1
  %4466 = vperm.xlu0 %4465, %v3604
  %v4467 = vpop.permute.xlu0 %4466
  %4470 = vset.pattern.permute.xlu0 1
  %4471 = vperm.xlu0 %4470, %v3605
  %v4472 = vpop.permute.xlu0 %4471
  %4475 = vset.pattern.permute.xlu0 1
  %4476 = vperm.xlu0 %4475, %v3606
  %v4477 = vpop.permute.xlu0 %4476
  %4480 = vset.pattern.permute.xlu0 1
  %4481 = vperm.xlu0 %4480, %v3607
  %v4482 = vpop.permute.xlu0 %4481
  %4485 = vset.pattern.permute.xlu0 1
  %4486 = vperm.xlu0 %4485, %v3608
  %v4487 = vpop.permute.xlu0 %4486
  %4490 = vset.pattern.permute.xlu0 1
  %4491 = vperm.xlu0 %4490, %v3609
  %v4492 = vpop.permute.xlu0 %4491
  %4495 = vset.pattern.permute.xlu0 1
  %4496 = vperm.xlu0 %4495, %v3610
  %v4497 = vpop.permute.xlu0 %4496
  %4500 = vset.pattern.permute.xlu0 1
  %4501 = vperm.xlu0 %4500, %v3611
  %v4502 = vpop.permute.xlu0 %4501
  %4505 = vset.pattern.permute.xlu0 1
  %4506 = vperm.xlu0 %4505, %v3612
  %v4507 = vpop.permute.xlu0 %4506
  %4510 = vset.pattern.permute.xlu0 1
  %4511 = vperm.xlu0 %4510, %v3613
  %v4512 = vpop.permute.xlu0 %4511
  %4515 = vset.pattern.permute.xlu0 1
  %4516 = vperm.xlu0 %4515, %v3614
  %v4517 = vpop.permute.xlu0 %4516
  %4520 = vset.pattern.permute.xlu0 1
  %4521 = vperm.xlu0 %4520, %v3615
  %v4522 = vpop.permute.xlu0 %4521
  %4525 = vset.pattern.permute.xlu0 1
  %4526 = vperm.xlu0 %4525, %v3616
  %v4527 = vpop.permute.xlu0 %4526
  %4530 = vset.pattern.permute.xlu0 1
  %4531 = vperm.xlu0 %4530, %v3617
  %v4532 = vpop.permute.xlu0 %4531
  %4535 = vset.pattern.permute.xlu0 1
  %4536 = vperm.xlu0 %4535, %v3618
  %v4537 = vpop.permute.xlu0 %4536
  %4540 = vset.pattern.permute.xlu0 1
  %4541 = vperm.xlu0 %4540, %v3619
  %v4542 = vpop.permute.xlu0 %4541
  %4545 = vset.pattern.permute.xlu0 1
  %4546 = vperm.xlu0 %4545, %v3620
  %v4547 = vpop.permute.xlu0 %4546
  %4550 = vset.pattern.permute.xlu0 1
  %4551 = vperm.xlu0 %4550, %v3621
  %v4552 = vpop.permute.xlu0 %4551
  %4555 = vset.pattern.permute.xlu0 1
  %4556 = vperm.xlu0 %4555, %v3622
  %v4557 = vpop.permute.xlu0 %4556
  %4560 = vset.pattern.permute.xlu0 1
  %4561 = vperm.xlu0 %4560, %v3623
  %v4562 = vpop.permute.xlu0 %4561
  %4565 = vset.pattern.permute.xlu0 1
  %4566 = vperm.xlu0 %4565, %v3624
  %v4567 = vpop.permute.xlu0 %4566
  %4570 = vset.pattern.permute.xlu0 1
  %4571 = vperm.xlu0 %4570, %v3625
  %v4572 = vpop.permute.xlu0 %4571
  %4575 = vset.pattern.permute.xlu0 1
  %4576 = vperm.xlu0 %4575, %v3626
  %v4577 = vpop.permute.xlu0 %4576
  %4580 = vset.pattern.permute.xlu0 1
  %4581 = vperm.xlu0 %4580, %v3627
  %v4582 = vpop.permute.xlu0 %4581
  %4585 = vset.pattern.permute.xlu0 1
  %4586 = vperm.xlu0 %4585, %v3628
  %v4587 = vpop.permute.xlu0 %4586
  %4590 = vset.pattern.permute.xlu0 1
  %4591 = vperm.xlu0 %4590, %v3629
  %v4592 = vpop.permute.xlu0 %4591
  %4595 = vset.pattern.permute.xlu0 1
  %4596 = vperm.xlu0 %4595, %v3630
  %v4597 = vpop.permute.xlu0 %4596
  %4600 = vset.pattern.permute.xlu0 1
  %4601 = vperm.xlu0 %4600, %v3631
  %v4602 = vpop.permute.xlu0 %4601
  %4605 = vset.pattern.permute.xlu0 1
  %4606 = vperm.xlu0 %4605, %v3632
  %v4607 = vpop.permute.xlu0 %4606
  %4610 = vset.pattern.permute.xlu0 1
  %4611 = vperm.xlu0 %4610, %v3633
  %v4612 = vpop.permute.xlu0 %4611
  %4615 = vset.pattern.permute.xlu0 1
  %4616 = vperm.xlu0 %4615, %v3634
  %v4617 = vpop.permute.xlu0 %4616
  %4620 = vset.pattern.permute.xlu0 1
  %4621 = vperm.xlu0 %4620, %v3635
  %v4622 = vpop.permute.xlu0 %4621
  %4625 = vset.pattern.permute.xlu0 1
  %4626 = vperm.xlu0 %4625, %v3636
  %v4627 = vpop.permute.xlu0 %4626
  %4630 = vset.pattern.permute.xlu0 1
  %4631 = vperm.xlu0 %4630, %v3637
  %v4632 = vpop.permute.xlu0 %4631
  %4635 = vset.pattern.permute.xlu0 1
  %4636 = vperm.xlu0 %4635, %v3638
  %v4637 = vpop.permute.xlu0 %4636
  %4640 = vset.pattern.permute.xlu0 1
  %4641 = vperm.xlu0 %4640, %v3639
  %v4642 = vpop.permute.xlu0 %4641
  %4645 = vset.pattern.permute.xlu0 1
  %4646 = vperm.xlu0 %4645, %v3640
  %v4647 = vpop.permute.xlu0 %4646
  %4650 = vset.pattern.permute.xlu0 1
  %4651 = vperm.xlu0 %4650, %v3641
  %v4652 = vpop.permute.xlu0 %4651
  %4655 = vset.pattern.permute.xlu0 1
  %4656 = vperm.xlu0 %4655, %v3642
  %v4657 = vpop.permute.xlu0 %4656
  %4660 = vset.pattern.permute.xlu0 1
  %4661 = vperm.xlu0 %4660, %v3643
  %v4662 = vpop.permute.xlu0 %4661
  %4665 = vset.pattern.permute.xlu0 1
  %4666 = vperm.xlu0 %4665, %v3644
  %v4667 = vpop.permute.xlu0 %4666
  %4670 = vset.pattern.permute.xlu0 1
  %4671 = vperm.xlu0 %4670, %v3645
  %v4672 = vpop.permute.xlu0 %4671
  %4675 = vset.pattern.permute.xlu0 1
  %4676 = vperm.xlu0 %4675, %v3646
  %v4677 = vpop.permute.xlu0 %4676
  %4680 = vset.pattern.permute.xlu0 1
  %4681 = vperm.xlu0 %4680, %v3647
  %v4682 = vpop.permute.xlu0 %4681
  %4685 = vset.pattern.permute.xlu0 1
  %4686 = vperm.xlu0 %4685, %v3648
  %v4687 = vpop.permute.xlu0 %4686
  %4690 = vset.pattern.permute.xlu0 1
  %4691 = vperm.xlu0 %4690, %v3649
  %v4692 = vpop.permute.xlu0 %4691
  %4695 = vset.pattern.permute.xlu0 1
  %4696 = vperm.xlu0 %4695, %v3650
  %v4697 = vpop.permute.xlu0 %4696
  %4700 = vset.pattern.permute.xlu0 1
  %4701 = vperm.xlu0 %4700, %v3651
  %v4702 = vpop.permute.xlu0 %4701
  %4705 = vset.pattern.permute.xlu0 1
  %4706 = vperm.xlu0 %4705, %v3652
  %v4707 = vpop.permute.xlu0 %4706
  %4710 = vset.pattern.permute.xlu0 1
  %4711 = vperm.xlu0 %4710, %v3653
  %v4712 = vpop.permute.xlu0 %4711
  %4715 = vset.pattern.permute.xlu0 1
  %4716 = vperm.xlu0 %4715, %v3654
  %v4717 = vpop.permute.xlu0 %4716
  %4720 = vset.pattern.permute.xlu0 1
  %4721 = vperm.xlu0 %4720, %v3655
  %v4722 = vpop.permute.xlu0 %4721
  %4725 = vset.pattern.permute.xlu0 1
  %4726 = vperm.xlu0 %4725, %v3656
  %v4727 = vpop.permute.xlu0 %4726
  %4730 = vset.pattern.permute.xlu0 1
  %4731 = vperm.xlu0 %4730, %v3657
  %v4732 = vpop.permute.xlu0 %4731
  %4735 = vset.pattern.permute.xlu0 1
  %4736 = vperm.xlu0 %4735, %v3658
  %v4737 = vpop.permute.xlu0 %4736
  %4740 = vset.pattern.permute.xlu0 1
  %4741 = vperm.xlu0 %4740, %v3659
  %v4742 = vpop.permute.xlu0 %4741
  %4745 = vset.pattern.permute.xlu0 1
  %4746 = vperm.xlu0 %4745, %v3660
  %v4747 = vpop.permute.xlu0 %4746
  %4750 = vset.pattern.permute.xlu0 1
  %4751 = vperm.xlu0 %4750, %v3661
  %v4752 = vpop.permute.xlu0 %4751
  %4755 = vset.pattern.permute.xlu0 1
  %4756 = vperm.xlu0 %4755, %v3662
  %v4757 = vpop.permute.xlu0 %4756
  %4760 = vset.pattern.permute.xlu0 1
  %4761 = vperm.xlu0 %4760, %v3663
  %v4762 = vpop.permute.xlu0 %4761
  %4765 = vset.pattern.permute.xlu0 1
  %4766 = vperm.xlu0 %4765, %v3664
  %v4767 = vpop.permute.xlu0 %4766
  %4770 = vset.pattern.permute.xlu0 1
  %4771 = vperm.xlu0 %4770, %v3665
  %v4772 = vpop.permute.xlu0 %4771
  %4775 = vset.pattern.permute.xlu0 1
  %4776 = vperm.xlu0 %4775, %v3666
  %v4777 = vpop.permute.xlu0 %4776
  %4780 = vset.pattern.permute.xlu0 1
  %4781 = vperm.xlu0 %4780, %v3667
  %v4782 = vpop.permute.xlu0 %4781
  %4785 = vset.pattern.permute.xlu0 1
  %4786 = vperm.xlu0 %4785, %v3668
  %v4787 = vpop.permute.xlu0 %4786
  %4790 = vset.pattern.permute.xlu0 1
  %4791 = vperm.xlu0 %4790, %v3669
  %v4792 = vpop.permute.xlu0 %4791
  %4795 = vset.pattern.permute.xlu0 1
  %4796 = vperm.xlu0 %4795, %v3670
  %v4797 = vpop.permute.xlu0 %4796
  %4800 = vset.pattern.permute.xlu0 1
  %4801 = vperm.xlu0 %4800, %v3671
  %v4802 = vpop.permute.xlu0 %4801
  %4805 = vset.pattern.permute.xlu0 1
  %4806 = vperm.xlu0 %4805, %v3672
  %v4807 = vpop.permute.xlu0 %4806
  %4810 = vset.pattern.permute.xlu0 1
  %4811 = vperm.xlu0 %4810, %v3673
  %v4812 = vpop.permute.xlu0 %4811
  %4815 = vset.pattern.permute.xlu0 1
  %4816 = vperm.xlu0 %4815, %v3674
  %v4817 = vpop.permute.xlu0 %4816
  %4820 = vset.pattern.permute.xlu0 1
  %4821 = vperm.xlu0 %4820, %v3675
  %v4822 = vpop.permute.xlu0 %4821
  %4825 = vset.pattern.permute.xlu0 1
  %4826 = vperm.xlu0 %4825, %v3676
  %v4827 = vpop.permute.xlu0 %4826
  %4830 = vset.pattern.permute.xlu0 1
  %4831 = vperm.xlu0 %4830, %v3677
  %v4832 = vpop.permute.xlu0 %4831
  %4835 = vset.pattern.permute.xlu0 1
  %4836 = vperm.xlu0 %4835, %v3678
  %v4837 = vpop.permute.xlu0 %4836
  %4840 = vset.pattern.permute.xlu0 1
  %4841 = vperm.xlu0 %4840, %v3679
  %v4842 = vpop.permute.xlu0 %4841
  %4845 = vset.pattern.permute.xlu0 1
  %4846 = vperm.xlu0 %4845, %v3680
  %v4847 = vpop.permute.xlu0 %4846
  %4850 = vset.pattern.permute.xlu0 1
  %4851 = vperm.xlu0 %4850, %v3681
  %v4852 = vpop.permute.xlu0 %4851
  %4855 = vset.pattern.permute.xlu0 1
  %4856 = vperm.xlu0 %4855, %v3682
  %v4857 = vpop.permute.xlu0 %4856
  %4860 = vset.pattern.permute.xlu0 1
  %4861 = vperm.xlu0 %4860, %v3683
  %v4862 = vpop.permute.xlu0 %4861
  %4865 = vset.pattern.permute.xlu0 1
  %4866 = vperm.xlu0 %4865, %v3684
  %v4867 = vpop.permute.xlu0 %4866
  %4870 = vset.pattern.permute.xlu0 1
  %4871 = vperm.xlu0 %4870, %v3685
  %v4872 = vpop.permute.xlu0 %4871
  %v4874 = vadd.f32 %v4226, %v4337
  %v4875 = vadd.f32 %v4227, %v4342
  %v4876 = vadd.f32 %v4228, %v4347
  %v4877 = vadd.f32 %v4229, %v4352
  %v4878 = vadd.f32 %v4230, %v4357
  %v4879 = vadd.f32 %v4231, %v4362
  %v4880 = vadd.f32 %v4232, %v4367
  %v4881 = vadd.f32 %v4233, %v4372
  %v4882 = vadd.f32 %v4234, %v4377
  %v4883 = vadd.f32 %v4235, %v4382
  %v4884 = vadd.f32 %v4236, %v4387
  %v4885 = vadd.f32 %v4237, %v4392
  %v4886 = vadd.f32 %v4238, %v4397
  %v4887 = vadd.f32 %v4239, %v4402
  %v4888 = vadd.f32 %v4240, %v4407
  %v4889 = vadd.f32 %v4241, %v4412
  %v4890 = vadd.f32 %v4242, %v4417
  %v4891 = vadd.f32 %v4243, %v4422
  %v4892 = vadd.f32 %v4244, %v4427
  %v4893 = vadd.f32 %v4245, %v4432
  %v4894 = vadd.f32 %v4246, %v4437
  %v4895 = vadd.f32 %v4247, %v4442
  %v4896 = vadd.f32 %v4248, %v4447
  %v4897 = vadd.f32 %v4249, %v4452
  %v4898 = vadd.f32 %v4250, %v4457
  %v4899 = vadd.f32 %v4251, %v4462
  %v4900 = vadd.f32 %v4252, %v4467
  %v4901 = vadd.f32 %v4253, %v4472
  %v4902 = vadd.f32 %v4254, %v4477
  %v4903 = vadd.f32 %v4255, %v4482
  %v4904 = vadd.f32 %v4256, %v4487
  %v4905 = vadd.f32 %v4257, %v4492
  %v4906 = vadd.f32 %v4258, %v4497
  %v4907 = vadd.f32 %v4259, %v4502
  %v4908 = vadd.f32 %v4260, %v4507
  %v4909 = vadd.f32 %v4261, %v4512
  %v4910 = vadd.f32 %v4262, %v4517
  %v4911 = vadd.f32 %v4263, %v4522
  %v4912 = vadd.f32 %v4264, %v4527
  %v4913 = vadd.f32 %v4265, %v4532
  %v4914 = vadd.f32 %v4266, %v4537
  %v4915 = vadd.f32 %v4267, %v4542
  %v4916 = vadd.f32 %v4268, %v4547
  %v4917 = vadd.f32 %v4269, %v4552
  %v4918 = vadd.f32 %v4270, %v4557
  %v4919 = vadd.f32 %v4271, %v4562
  %v4920 = vadd.f32 %v4272, %v4567
  %v4921 = vadd.f32 %v4273, %v4572
  %v4922 = vadd.f32 %v4274, %v4577
  %v4923 = vadd.f32 %v4275, %v4582
  %v4924 = vadd.f32 %v4276, %v4587
  %v4925 = vadd.f32 %v4277, %v4592
  %v4926 = vadd.f32 %v4278, %v4597
  %v4927 = vadd.f32 %v4279, %v4602
  %v4928 = vadd.f32 %v4280, %v4607
  %v4929 = vadd.f32 %v4281, %v4612
  %v4930 = vadd.f32 %v4282, %v4617
  %v4931 = vadd.f32 %v4283, %v4622
  %v4932 = vadd.f32 %v4284, %v4627
  %v4933 = vadd.f32 %v4285, %v4632
  %v4934 = vadd.f32 %v4286, %v4637
  %v4935 = vadd.f32 %v4287, %v4642
  %v4936 = vadd.f32 %v4288, %v4647
  %v4937 = vadd.f32 %v4289, %v4652
  %v4938 = vadd.f32 %v4290, %v4657
  %v4939 = vadd.f32 %v4291, %v4662
  %v4940 = vadd.f32 %v4292, %v4667
  %v4941 = vadd.f32 %v4293, %v4672
  %v4942 = vadd.f32 %v4294, %v4677
  %v4943 = vadd.f32 %v4295, %v4682
  %v4944 = vadd.f32 %v4296, %v4687
  %v4945 = vadd.f32 %v4297, %v4692
  %v4946 = vadd.f32 %v4298, %v4697
  %v4947 = vadd.f32 %v4299, %v4702
  %v4948 = vadd.f32 %v4300, %v4707
  %v4949 = vadd.f32 %v4301, %v4712
  %v4950 = vadd.f32 %v4302, %v4717
  %v4951 = vadd.f32 %v4303, %v4722
  %v4952 = vadd.f32 %v4304, %v4727
  %v4953 = vadd.f32 %v4305, %v4732
  %v4954 = vadd.f32 %v4306, %v4737
  %v4955 = vadd.f32 %v4307, %v4742
  %v4956 = vadd.f32 %v4308, %v4747
  %v4957 = vadd.f32 %v4309, %v4752
  %v4958 = vadd.f32 %v4310, %v4757
  %v4959 = vadd.f32 %v4311, %v4762
  %v4960 = vadd.f32 %v4312, %v4767
  %v4961 = vadd.f32 %v4313, %v4772
  %v4962 = vadd.f32 %v4314, %v4777
  %v4963 = vadd.f32 %v4315, %v4782
  %v4964 = vadd.f32 %v4316, %v4787
  %v4965 = vadd.f32 %v4317, %v4792
  %v4966 = vadd.f32 %v4318, %v4797
  %v4967 = vadd.f32 %v4319, %v4802
  %v4968 = vadd.f32 %v4320, %v4807
  %v4969 = vadd.f32 %v4321, %v4812
  %v4970 = vadd.f32 %v4322, %v4817
  %v4971 = vadd.f32 %v4323, %v4822
  %v4972 = vadd.f32 %v4324, %v4827
  %v4973 = vadd.f32 %v4325, %v4832
  %v4974 = vadd.f32 %v4326, %v4837
  %v4975 = vadd.f32 %v4327, %v4842
  %v4976 = vadd.f32 %v4328, %v4847
  %v4977 = vadd.f32 %v4329, %v4852
  %v4978 = vadd.f32 %v4330, %v4857
  %v4979 = vadd.f32 %v4331, %v4862
  %v4980 = vadd.f32 %v4332, %v4867
  %v4981 = vadd.f32 %v4333, %v4872
  %v4982 = vmax.f32 %v4874, 0.0
  %v4983 = vmax.f32 %v4875, 0.0
  %v4984 = vmax.f32 %v4876, 0.0
  %v4985 = vmax.f32 %v4877, 0.0
  %v4986 = vmax.f32 %v4878, 0.0
  %v4987 = vmax.f32 %v4879, 0.0
  %v4988 = vmax.f32 %v4880, 0.0
  %v4989 = vmax.f32 %v4881, 0.0
  %v4990 = vmax.f32 %v4882, 0.0
  %v4991 = vmax.f32 %v4883, 0.0
  %v4992 = vmax.f32 %v4884, 0.0
  %v4993 = vmax.f32 %v4885, 0.0
  %v4994 = vmax.f32 %v4886, 0.0
  %v4995 = vmax.f32 %v4887, 0.0
  %v4996 = vmax.f32 %v4888, 0.0
  %v4997 = vmax.f32 %v4889, 0.0
  %v4998 = vmax.f32 %v4890, 0.0
  %v4999 = vmax.f32 %v4891, 0.0
  %v5000 = vmax.f32 %v4892, 0.0
  %v5001 = vmax.f32 %v4893, 0.0
  %v5002 = vmax.f32 %v4894, 0.0
  %v5003 = vmax.f32 %v4895, 0.0
  %v5004 = vmax.f32 %v4896, 0.0
  %v5005 = vmax.f32 %v4897, 0.0
  %v5006 = vmax.f32 %v4898, 0.0
  %v5007 = vmax.f32 %v4899, 0.0
  %v5008 = vmax.f32 %v4900, 0.0
  %v5009 = vmax.f32 %v4901, 0.0
  %v5010 = vmax.f32 %v4902, 0.0
  %v5011 = vmax.f32 %v4903, 0.0
  %v5012 = vmax.f32 %v4904, 0.0
  %v5013 = vmax.f32 %v4905, 0.0
  %v5014 = vmax.f32 %v4906, 0.0
  %v5015 = vmax.f32 %v4907, 0.0
  %v5016 = vmax.f32 %v4908, 0.0
  %v5017 = vmax.f32 %v4909, 0.0
  %v5018 = vmax.f32 %v4910, 0.0
  %v5019 = vmax.f32 %v4911, 0.0
  %v5020 = vmax.f32 %v4912, 0.0
  %v5021 = vmax.f32 %v4913, 0.0
  %v5022 = vmax.f32 %v4914, 0.0
  %v5023 = vmax.f32 %v4915, 0.0
  %v5024 = vmax.f32 %v4916, 0.0
  %v5025 = vmax.f32 %v4917, 0.0
  %v5026 = vmax.f32 %v4918, 0.0
  %v5027 = vmax.f32 %v4919, 0.0
  %v5028 = vmax.f32 %v4920, 0.0
  %v5029 = vmax.f32 %v4921, 0.0
  %v5030 = vmax.f32 %v4922, 0.0
  %v5031 = vmax.f32 %v4923, 0.0
  %v5032 = vmax.f32 %v4924, 0.0
  %v5033 = vmax.f32 %v4925, 0.0
  %v5034 = vmax.f32 %v4926, 0.0
  %v5035 = vmax.f32 %v4927, 0.0
  %v5036 = vmax.f32 %v4928, 0.0
  %v5037 = vmax.f32 %v4929, 0.0
  %v5038 = vmax.f32 %v4930, 0.0
  %v5039 = vmax.f32 %v4931, 0.0
  %v5040 = vmax.f32 %v4932, 0.0
  %v5041 = vmax.f32 %v4933, 0.0
  %v5042 = vmax.f32 %v4934, 0.0
  %v5043 = vmax.f32 %v4935, 0.0
  %v5044 = vmax.f32 %v4936, 0.0
  %v5045 = vmax.f32 %v4937, 0.0
  %v5046 = vmax.f32 %v4938, 0.0
  %v5047 = vmax.f32 %v4939, 0.0
  %v5048 = vmax.f32 %v4940, 0.0
  %v5049 = vmax.f32 %v4941, 0.0
  %v5050 = vmax.f32 %v4942, 0.0
  %v5051 = vmax.f32 %v4943, 0.0
  %v5052 = vmax.f32 %v4944, 0.0
  %v5053 = vmax.f32 %v4945, 0.0
  %v5054 = vmax.f32 %v4946, 0.0
  %v5055 = vmax.f32 %v4947, 0.0
  %v5056 = vmax.f32 %v4948, 0.0
  %v5057 = vmax.f32 %v4949, 0.0
  %v5058 = vmax.f32 %v4950, 0.0
  %v5059 = vmax.f32 %v4951, 0.0
  %v5060 = vmax.f32 %v4952, 0.0
  %v5061 = vmax.f32 %v4953, 0.0
  %v5062 = vmax.f32 %v4954, 0.0
  %v5063 = vmax.f32 %v4955, 0.0
  %v5064 = vmax.f32 %v4956, 0.0
  %v5065 = vmax.f32 %v4957, 0.0
  %v5066 = vmax.f32 %v4958, 0.0
  %v5067 = vmax.f32 %v4959, 0.0
  %v5068 = vmax.f32 %v4960, 0.0
  %v5069 = vmax.f32 %v4961, 0.0
  %v5070 = vmax.f32 %v4962, 0.0
  %v5071 = vmax.f32 %v4963, 0.0
  %v5072 = vmax.f32 %v4964, 0.0
  %v5073 = vmax.f32 %v4965, 0.0
  %v5074 = vmax.f32 %v4966, 0.0
  %v5075 = vmax.f32 %v4967, 0.0
  %v5076 = vmax.f32 %v4968, 0.0
  %v5077 = vmax.f32 %v4969, 0.0
  %v5078 = vmax.f32 %v4970, 0.0
  %v5079 = vmax.f32 %v4971, 0.0
  %v5080 = vmax.f32 %v4972, 0.0
  %v5081 = vmax.f32 %v4973, 0.0
  %v5082 = vmax.f32 %v4974, 0.0
  %v5083 = vmax.f32 %v4975, 0.0
  %v5084 = vmax.f32 %v4976, 0.0
  %v5085 = vmax.f32 %v4977, 0.0
  %v5086 = vmax.f32 %v4978, 0.0
  %v5087 = vmax.f32 %v4979, 0.0
  %v5088 = vmax.f32 %v4980, 0.0
  %v5089 = vmax.f32 %v4981, 0.0
  %5090 = vst.msk [vmem:[%s2] sm:$0xff] %vm119, %v4982
  %5091 = vst.msk [vmem:[%s2 + $0x8] sm:$0xff] %vm119, %v4983
  %5092 = vst.msk [vmem:[%s2 + $0x10] sm:$0xff] %vm119, %v4984
  %5093 = vst.msk [vmem:[%s2 + $0x18] sm:$0xff] %vm119, %v4985
  %5094 = vst.msk [vmem:[%s2 + $0x20] sm:$0xff] %vm119, %v4986
  %5095 = vst.msk [vmem:[%s2 + $0x28] sm:$0xff] %vm119, %v4987
  %5096 = vst.msk [vmem:[%s2 + $0x30] sm:$0xff] %vm119, %v4988
  %5097 = vst.msk [vmem:[%s2 + $0x38] sm:$0xff] %vm119, %v4989
  %5098 = vst.msk [vmem:[%s2 + $0x40] sm:$0xff] %vm119, %v4990
  %5099 = vst.msk [vmem:[%s2 + $0x48] sm:$0xff] %vm119, %v4991
  %5100 = vst.msk [vmem:[%s2 + $0x50] sm:$0xff] %vm119, %v4992
  %5101 = vst.msk [vmem:[%s2 + $0x58] sm:$0xff] %vm119, %v4993
  %5102 = vst.msk [vmem:[%s2 + $0x60] sm:$0xff] %vm119, %v4994
  %5103 = vst.msk [vmem:[%s2 + $0x68] sm:$0xff] %vm119, %v4995
  %5104 = vst.msk [vmem:[%s2 + $0x70] sm:$0xff] %vm119, %v4996
  %5105 = vst.msk [vmem:[%s2 + $0x78] sm:$0xff] %vm119, %v4997
  %5106 = vst.msk [vmem:[%s2 + $0x80] sm:$0xff] %vm119, %v4998
  %5107 = vst.msk [vmem:[%s2 + $0x88] sm:$0xff] %vm119, %v4999
  %5108 = vst.msk [vmem:[%s2 + $0x90] sm:$0xff] %vm119, %v5000
  %5109 = vst.msk [vmem:[%s2 + $0x98] sm:$0xff] %vm119, %v5001
  %5110 = vst.msk [vmem:[%s2 + $0xa0] sm:$0xff] %vm119, %v5002
  %5111 = vst.msk [vmem:[%s2 + $0xa8] sm:$0xff] %vm119, %v5003
  %5112 = vst.msk [vmem:[%s2 + $0xb0] sm:$0xff] %vm119, %v5004
  %5113 = vst.msk [vmem:[%s2 + $0xb8] sm:$0xff] %vm119, %v5005
  %5114 = vst.msk [vmem:[%s2 + $0xc0] sm:$0xff] %vm119, %v5006
  %5115 = vst.msk [vmem:[%s2 + $0xc8] sm:$0xff] %vm119, %v5007
  %5116 = vst.msk [vmem:[%s2 + $0xd0] sm:$0xff] %vm119, %v5008
  %5117 = vst.msk [vmem:[%s2 + $0xd8] sm:$0xff] %vm119, %v5009
  %5118 = vst.msk [vmem:[%s2 + $0xe0] sm:$0xff] %vm119, %v5010
  %5119 = vst.msk [vmem:[%s2 + $0xe8] sm:$0xff] %vm119, %v5011
  %5120 = vst.msk [vmem:[%s2 + $0xf0] sm:$0xff] %vm119, %v5012
  %5121 = vst.msk [vmem:[%s2 + $0xf8] sm:$0xff] %vm119, %v5013
  %5122 = vst.msk [vmem:[%s2 + $0x100] sm:$0xff] %vm119, %v5014
  %5123 = vst.msk [vmem:[%s2 + $0x108] sm:$0xff] %vm119, %v5015
  %5124 = vst.msk [vmem:[%s2 + $0x110] sm:$0xff] %vm119, %v5016
  %5125 = vst.msk [vmem:[%s2 + $0x118] sm:$0xff] %vm119, %v5017
  %5126 = vst.msk [vmem:[%s2 + $0x120] sm:$0xff] %vm119, %v5018
  %5127 = vst.msk [vmem:[%s2 + $0x128] sm:$0xff] %vm119, %v5019
  %5128 = vst.msk [vmem:[%s2 + $0x130] sm:$0xff] %vm119, %v5020
  %5129 = vst.msk [vmem:[%s2 + $0x138] sm:$0xff] %vm119, %v5021
  %5130 = vst.msk [vmem:[%s2 + $0x140] sm:$0xff] %vm119, %v5022
  %5131 = vst.msk [vmem:[%s2 + $0x148] sm:$0xff] %vm119, %v5023
  %5132 = vst.msk [vmem:[%s2 + $0x150] sm:$0xff] %vm119, %v5024
  %5133 = vst.msk [vmem:[%s2 + $0x158] sm:$0xff] %vm119, %v5025
  %5134 = vst.msk [vmem:[%s2 + $0x160] sm:$0xff] %vm119, %v5026
  %5135 = vst.msk [vmem:[%s2 + $0x168] sm:$0xff] %vm119, %v5027
  %5136 = vst.msk [vmem:[%s2 + $0x170] sm:$0xff] %vm119, %v5028
  %5137 = vst.msk [vmem:[%s2 + $0x178] sm:$0xff] %vm119, %v5029
  %5138 = vst.msk [vmem:[%s2 + $0x180] sm:$0xff] %vm119, %v5030
  %5139 = vst.msk [vmem:[%s2 + $0x188] sm:$0xff] %vm119, %v5031
  %5140 = vst.msk [vmem:[%s2 + $0x190] sm:$0xff] %vm119, %v5032
  %5141 = vst.msk [vmem:[%s2 + $0x198] sm:$0xff] %vm119, %v5033
  %5142 = vst.msk [vmem:[%s2 + $0x1a0] sm:$0xff] %vm119, %v5034
  %5143 = vst.msk [vmem:[%s2 + $0x1a8] sm:$0xff] %vm119, %v5035
  %5144 = vst.msk [vmem:[%s2 + $0x1b0] sm:$0xff] %vm119, %v5036
  %5145 = vst.msk [vmem:[%s2 + $0x1b8] sm:$0xff] %vm119, %v5037
  %5146 = vst.msk [vmem:[%s2 + $0x1c0] sm:$0xff] %vm119, %v5038
  %5147 = vst.msk [vmem:[%s2 + $0x1c8] sm:$0xff] %vm119, %v5039
  %5148 = vst.msk [vmem:[%s2 + $0x1d0] sm:$0xff] %vm119, %v5040
  %5149 = vst.msk [vmem:[%s2 + $0x1d8] sm:$0xff] %vm119, %v5041
  %5150 = vst.msk [vmem:[%s2 + $0x1e0] sm:$0xff] %vm119, %v5042
  %5151 = vst.msk [vmem:[%s2 + $0x1e8] sm:$0xff] %vm119, %v5043
  %5152 = vst.msk [vmem:[%s2 + $0x1f0] sm:$0xff] %vm119, %v5044
  %5153 = vst.msk [vmem:[%s2 + $0x1f8] sm:$0xff] %vm119, %v5045
  %5154 = vst.msk [vmem:[%s2 + $0x200] sm:$0xff] %vm119, %v5046
  %5155 = vst.msk [vmem:[%s2 + $0x208] sm:$0xff] %vm119, %v5047
  %5156 = vst.msk [vmem:[%s2 + $0x210] sm:$0xff] %vm119, %v5048
  %5157 = vst.msk [vmem:[%s2 + $0x218] sm:$0xff] %vm119, %v5049
  %5158 = vst.msk [vmem:[%s2 + $0x220] sm:$0xff] %vm119, %v5050
  %5159 = vst.msk [vmem:[%s2 + $0x228] sm:$0xff] %vm119, %v5051
  %5160 = vst.msk [vmem:[%s2 + $0x230] sm:$0xff] %vm119, %v5052
  %5161 = vst.msk [vmem:[%s2 + $0x238] sm:$0xff] %vm119, %v5053
  %5162 = vst.msk [vmem:[%s2 + $0x240] sm:$0xff] %vm119, %v5054
  %5163 = vst.msk [vmem:[%s2 + $0x248] sm:$0xff] %vm119, %v5055
  %5164 = vst.msk [vmem:[%s2 + $0x250] sm:$0xff] %vm119, %v5056
  %5165 = vst.msk [vmem:[%s2 + $0x258] sm:$0xff] %vm119, %v5057
  %5166 = vst.msk [vmem:[%s2 + $0x260] sm:$0xff] %vm119, %v5058
  %5167 = vst.msk [vmem:[%s2 + $0x268] sm:$0xff] %vm119, %v5059
  %5168 = vst.msk [vmem:[%s2 + $0x270] sm:$0xff] %vm119, %v5060
  %5169 = vst.msk [vmem:[%s2 + $0x278] sm:$0xff] %vm119, %v5061
  %5170 = vst.msk [vmem:[%s2 + $0x280] sm:$0xff] %vm119, %v5062
  %5171 = vst.msk [vmem:[%s2 + $0x288] sm:$0xff] %vm119, %v5063
  %5172 = vst.msk [vmem:[%s2 + $0x290] sm:$0xff] %vm119, %v5064
  %5173 = vst.msk [vmem:[%s2 + $0x298] sm:$0xff] %vm119, %v5065
  %5174 = vst.msk [vmem:[%s2 + $0x2a0] sm:$0xff] %vm119, %v5066
  %5175 = vst.msk [vmem:[%s2 + $0x2a8] sm:$0xff] %vm119, %v5067
  %5176 = vst.msk [vmem:[%s2 + $0x2b0] sm:$0xff] %vm119, %v5068
  %5177 = vst.msk [vmem:[%s2 + $0x2b8] sm:$0xff] %vm119, %v5069
  %5178 = vst.msk [vmem:[%s2 + $0x2c0] sm:$0xff] %vm119, %v5070
  %5179 = vst.msk [vmem:[%s2 + $0x2c8] sm:$0xff] %vm119, %v5071
  %5180 = vst.msk [vmem:[%s2 + $0x2d0] sm:$0xff] %vm119, %v5072
  %5181 = vst.msk [vmem:[%s2 + $0x2d8] sm:$0xff] %vm119, %v5073
  %5182 = vst.msk [vmem:[%s2 + $0x2e0] sm:$0xff] %vm119, %v5074
  %5183 = vst.msk [vmem:[%s2 + $0x2e8] sm:$0xff] %vm119, %v5075
  %5184 = vst.msk [vmem:[%s2 + $0x2f0] sm:$0xff] %vm119, %v5076
  %5185 = vst.msk [vmem:[%s2 + $0x2f8] sm:$0xff] %vm119, %v5077
  %5186 = vst.msk [vmem:[%s2 + $0x300] sm:$0xff] %vm119, %v5078
  %5187 = vst.msk [vmem:[%s2 + $0x308] sm:$0xff] %vm119, %v5079
  %5188 = vst.msk [vmem:[%s2 + $0x310] sm:$0xff] %vm119, %v5080
  %5189 = vst.msk [vmem:[%s2 + $0x318] sm:$0xff] %vm119, %v5081
  %5190 = vst.msk [vmem:[%s2 + $0x320] sm:$0xff] %vm119, %v5082
  %5191 = vst.msk [vmem:[%s2 + $0x328] sm:$0xff] %vm119, %v5083
  %5192 = vst.msk [vmem:[%s2 + $0x330] sm:$0xff] %vm119, %v5084
  %5193 = vst.msk [vmem:[%s2 + $0x338] sm:$0xff] %vm119, %v5085
  %5194 = vst.msk [vmem:[%s2 + $0x340] sm:$0xff] %vm119, %v5086
  %5195 = vst.msk [vmem:[%s2 + $0x348] sm:$0xff] %vm119, %v5087
  %5196 = vst.msk [vmem:[%s2 + $0x350] sm:$0xff] %vm119, %v5088
  %5197 = vst.msk [vmem:[%s2 + $0x358] sm:$0xff] %vm119, %v5089
  // Predicated region
  $region10: #{tpu_custom_call.1} parent=0 // pred_check
    _
  $region11: #{tpu_custom_call.1} parent=0 // pred_check_branch
    %5199 = sbr.rel (0) target = $region13
  $region12: #{tpu_custom_call.1} parent=0 // pred_region
    _
  $region13: #{tpu_custom_call.1} parent=0 // pred_fallthru
    _
  // Predicated region
  $region14: #{tpu_custom_call.1} parent=0 // pred_check
    _
  $region15: #{tpu_custom_call.1} parent=0 // pred_check_branch
    %5201 = sbr.rel (0) target = $region17
  $region16: #{tpu_custom_call.1} parent=0 // pred_region
    _
  $region17: #{tpu_custom_call.1} parent=0 // pred_fallthru
    _

</llo_original>
